<compile_context>
chip_gen: v5e
topology: v5e:2x2
jax: 0.10.0
libtpu: 0.0.40
codegen_flags: <defaults>
</compile_context>

<pallas_src>
import jax
import jax.numpy as jnp
from jax.experimental import pallas as pl
from jax.experimental.pallas import tpu as pltpu


# ----------------------------- model config ---------------------------------
VOCAB = 256          # config.vocab_size
D_MODEL = 64         # config.embedding_dim
N_LAYERS = 2         # config.num_layers
N_HEADS = 2          # attn_config.num_heads (== num_query_groups, plain MHA)
HEAD_DIM = 32        # attn_config.head_dim
HALF = HEAD_DIM // 2
HD = N_HEADS * HEAD_DIM
INTER = 128          # ff_config.intermediate_size (gated SiLU)
KV_CACHE_MAX = 16    # config.kv_cache_max
ROT_BASE = 10000.0   # attn_config.rotary_base
ROT_PCT = 1.0        # attn_config.rotary_percentage
EPS = 1e-6
MASK_VALUE = -1e30
SCALE = float(HEAD_DIM) ** -0.5   # Python float -> folded into q inside the kernel

BATCH = 2
SEQ = 8
M = BATCH * SEQ
BH = BATCH * N_HEADS
CACHE_W = BH * HEAD_DIM            # 128 lanes -> lane-dense cache rows

_N_MISC = 7          # tok, pos_col, pos_row, cos, sin, emb, final_norm
_PER_LAYER = 9       # attn_norm, w_qkv, w_o, ff_norm, w1, w3, w2, k_cache, v_cache


# ------------------------------ fused kernel --------------------------------
def _rms(x, w):
  var = jnp.mean(x * x, axis=-1, keepdims=True)
  return x * jax.lax.rsqrt(var + EPS) * w


def _matmul_nt(x, w):
  # y = x @ W.T  for PyTorch (out, in) weight layout; f32 accumulation on the MXU.
  return jax.lax.dot_general(x, w, (((1,), (1,)), ((), ())),
                             preferred_element_type=jnp.float32)


def _rope(t, cos, sin):
  # Split-half rotation, matching ai_edge_torch rotary_position_embedding.apply_rope.
  # t: (M, H*Dh); cos/sin: (M, Dh//2)
  outs = []
  for h in range(N_HEADS):
    base = h * HEAD_DIM
    t1 = t[:, base:base + HALF]
    t2 = t[:, base + HALF:base + HEAD_DIM]
    outs.append(jnp.concatenate([t1 * cos - t2 * sin, t2 * cos + t1 * sin], axis=-1))
  return jnp.concatenate(outs, axis=-1)


def _model_kernel(*refs):
  n_in = _N_MISC + _PER_LAYER * N_LAYERS
  (tok_ref, pos_col_ref, pos_row_ref, cos_ref, sin_ref,
   emb_ref, fnorm_ref) = refs[:_N_MISC]
  layer_refs = refs[_N_MISC:n_in]
  logits_ref = refs[n_in]
  cache_out_refs = refs[n_in + 1:]

  f32 = jnp.float32
  emb = emb_ref[...].astype(f32)                              # (V, D) - also tied lm_head

  # Token embedding as a one-hot matmul (keeps the whole forward in one kernel).
  vocab_ids = jax.lax.broadcasted_iota(jnp.int32, (M, VOCAB), 1)
  onehot = (vocab_ids == tok_ref[...]).astype(f32)            # (M, V)
  x = jnp.dot(onehot, emb, preferred_element_type=f32)        # (M, D)

  cos = cos_ref[...].astype(f32)                              # (M, HALF)
  sin = sin_ref[...].astype(f32)

  # Causal mask + KV scatter one-hot, built in-kernel from input_pos (cheap VPU work).
  col_ids = jax.lax.broadcasted_iota(jnp.int32, (SEQ, KV_CACHE_MAX), 1)
  mask = jnp.where(col_ids <= pos_col_ref[...], 0.0, MASK_VALUE)      # (S, Smax)
  row_ids = jax.lax.broadcasted_iota(jnp.int32, (KV_CACHE_MAX, SEQ), 0)
  scat = (row_ids == pos_row_ref[...]).astype(f32)                    # (Smax, S)
  keep = 1.0 - jnp.sum(scat, axis=-1, keepdims=True)                  # (Smax, 1)

  for l in range(N_LAYERS):
    (attn_norm_ref, w_qkv_ref, w_o_ref, ff_norm_ref,
     w1_ref, w3_ref, w2_ref, kc_ref, vc_ref) = layer_refs[_PER_LAYER * l:
                                                          _PER_LAYER * (l + 1)]
    kc_out = cache_out_refs[2 * l]
    vc_out = cache_out_refs[2 * l + 1]

    # ---------------- attention block ----------------
    h = _rms(x, attn_norm_ref[...].astype(f32))
    qkv = _matmul_nt(h, w_qkv_ref[...].astype(f32))           # (M, 3*H*Dh)
    q = _rope(qkv[:, :HD], cos, sin) * SCALE                  # softmax scale folded in
    k = _rope(qkv[:, HD:2 * HD], cos, sin)
    v = qkv[:, 2 * HD:3 * HD]

    # KV-cache update at input_pos via a one-hot scatter matmul, one matmul per batch.
    # Cache layout is lane-dense: (Smax, B*H*Dh) with lane = b*HD + h*Dh + d.
    k_scat = jnp.concatenate(
        [jnp.dot(scat, k[b * SEQ:(b + 1) * SEQ, :], preferred_element_type=f32)
         for b in range(BATCH)], axis=-1)                      # (Smax, B*HD)
    v_scat = jnp.concatenate(
        [jnp.dot(scat, v[b * SEQ:(b + 1) * SEQ, :], preferred_element_type=f32)
         for b in range(BATCH)], axis=-1)
    k_new = kc_ref[...].astype(f32) * keep + k_scat
    v_new = vc_ref[...].astype(f32) * keep + v_scat
    kc_out[...] = k_new.astype(kc_out.dtype)                   # full 128-lane store
    vc_out[...] = v_new.astype(vc_out.dtype)

    # Attention core over the full cache with causal mask.
    rows = []
    for b in range(BATCH):
      heads = []
      r0, r1 = b * SEQ, (b + 1) * SEQ
      for hh in range(N_HEADS):
        cq = hh * HEAD_DIM
        cc = b * HD + hh * HEAD_DIM
        q_bh = q[r0:r1, cq:cq + HEAD_DIM]                      # (S, Dh)
        k_bh = k_new[:, cc:cc + HEAD_DIM]                      # (Smax, Dh)
        v_bh = v_new[:, cc:cc + HEAD_DIM]
        s = jax.lax.dot_general(q_bh, k_bh, (((1,), (1,)), ((), ())),
                                preferred_element_type=f32) + mask    # (S, Smax)
        m = jnp.max(s, axis=-1, keepdims=True)
        p = jnp.exp(s - m)
        denom = jnp.sum(p, axis=-1, keepdims=True)
        o_bh = jnp.dot(p, v_bh, preferred_element_type=f32)
        heads.append(o_bh * pl.reciprocal(denom, approx=True))       # (S, Dh)
      rows.append(jnp.concatenate(heads, axis=-1))             # (S, H*Dh)
    attn = jnp.concatenate(rows, axis=0)                       # (M, H*Dh)

    x = x + _matmul_nt(attn, w_o_ref[...].astype(f32))         # o_proj + residual

    # ---------------- gated-SiLU FFN ----------------
    hf = _rms(x, ff_norm_ref[...].astype(f32))
    a1 = _matmul_nt(hf, w1_ref[...].astype(f32))
    a3 = _matmul_nt(hf, w3_ref[...].astype(f32))
    g = a1 * jax.nn.sigmoid(a1) * a3
    x = x + _matmul_nt(g, w2_ref[...].astype(f32))

  # ---------------- final norm + tied lm_head ----------------
  hN = _rms(x, fnorm_ref[...].astype(f32))
  logits_ref[...] = _matmul_nt(hN, emb).astype(logits_ref.dtype)   # (M, V) lane-dense


# ------------------------------ wrapper / glue -------------------------------
def build_rope_cache(size, dim, base):
  theta = 1.0 / (base ** (jnp.arange(0, dim, 2, dtype=jnp.float32) / dim))
  idx_theta = jnp.outer(jnp.arange(size, dtype=jnp.float32), theta)   # (size, dim//2)
  return jnp.cos(idx_theta), jnp.sin(idx_theta)


def init_params(key):
  ks = jax.random.split(key, 2 + 6 * N_LAYERS)
  std = 0.02
  emb = std * jax.random.normal(ks[0], (VOCAB, D_MODEL), jnp.float32)
  emb = emb.at[0].set(0.0)  # padding_idx=0
  layers = []
  for i in range(N_LAYERS):
    b = ks[2 + 6 * i: 2 + 6 * (i + 1)]
    layers.append(dict(
        attn_norm=jnp.ones((D_MODEL,), jnp.float32),
        w_qkv=std * jax.random.normal(b[0], (3 * HD, D_MODEL), jnp.float32),
        w_o=std * jax.random.normal(b[1], (D_MODEL, HD), jnp.float32),
        ff_norm=jnp.ones((D_MODEL,), jnp.float32),
        w1=std * jax.random.normal(b[2], (INTER, D_MODEL), jnp.float32),
        w3=std * jax.random.normal(b[3], (INTER, D_MODEL), jnp.float32),
        w2=std * jax.random.normal(b[4], (D_MODEL, INTER), jnp.float32),
    ))
  final_norm = jnp.ones((D_MODEL,), jnp.float32)
  # lm_head shares weight with tok_embedding (lm_head_share_weight_with_embedding=True)
  return dict(emb=emb, layers=layers, final_norm=final_norm)


def init_kv_cache():
  # Lane-dense TPU layout: cache[pos, b*HD + h*HEAD_DIM + d] == K[b, h, pos, d].
  return tuple(
      (jnp.zeros((KV_CACHE_MAX, CACHE_W), jnp.float32),
       jnp.zeros((KV_CACHE_MAX, CACHE_W), jnp.float32))
      for _ in range(N_LAYERS))


def forward(params, tokens, input_pos, kv_cache):
  B, S = tokens.shape
  assert (B, S) == (BATCH, SEQ)

  # RoPE table rows for these positions (tiny one-off XLA gather, done once per forward).
  rope_dim = int(ROT_PCT * HEAD_DIM)
  cos_c, sin_c = build_rope_cache(KV_CACHE_MAX, rope_dim, ROT_BASE)
  cos = jnp.tile(cos_c[input_pos], (B, 1))          # (M, HALF), row order = (b, s)
  sin = jnp.tile(sin_c[input_pos], (B, 1))

  tok2 = tokens.reshape(M, 1).astype(jnp.int32)
  pos_col = input_pos.reshape(SEQ, 1).astype(jnp.int32)
  pos_row = input_pos.reshape(1, SEQ).astype(jnp.int32)

  inputs = [tok2, pos_col, pos_row, cos, sin,
            params["emb"], params["final_norm"].reshape(1, D_MODEL)]
  out_shapes = [jax.ShapeDtypeStruct((M, VOCAB), jnp.float32)]
  aliases = {}
  for i, layer in enumerate(params["layers"]):
    k_cache, v_cache = kv_cache[i]
    base = len(inputs)
    inputs += [layer["attn_norm"].reshape(1, D_MODEL),
               layer["w_qkv"], layer["w_o"],
               layer["ff_norm"].reshape(1, D_MODEL),
               layer["w1"], layer["w3"], layer["w2"],
               k_cache, v_cache]
    # In-place cache update: input k/v cache aliases the corresponding output.
    aliases[base + 7] = 1 + 2 * i
    aliases[base + 8] = 2 + 2 * i
    out_shapes += [jax.ShapeDtypeStruct((KV_CACHE_MAX, CACHE_W), jnp.float32),
                   jax.ShapeDtypeStruct((KV_CACHE_MAX, CACHE_W), jnp.float32)]

  outs = pl.pallas_call(
      _model_kernel,
      out_shape=tuple(out_shapes),
      input_output_aliases=aliases,
      compiler_params=pltpu.CompilerParams(vmem_limit_bytes=32 * 1024 * 1024),
  )(*inputs)

  logits = outs[0].reshape(BATCH, SEQ, VOCAB)
  new_caches = tuple((outs[1 + 2 * i], outs[2 + 2 * i]) for i in range(N_LAYERS))
  return logits, new_caches


# --------------------------- pure-JAX reference ------------------------------
def _rms_ref(x, w):
  return x * jax.lax.rsqrt(jnp.mean(x * x, axis=-1, keepdims=True) + EPS) * w


def forward_reference(params, tokens, input_pos, kv_cache):
  cos_c, sin_c = build_rope_cache(KV_CACHE_MAX, int(ROT_PCT * HEAD_DIM), ROT_BASE)
  cos = cos_c[input_pos]                                   # (S, HALF)
  sin = sin_c[input_pos]
  x = params["emb"][tokens]                                # (B, S, D)
  mask = jnp.where(jnp.arange(KV_CACHE_MAX)[None, :] <= input_pos[:, None],
                   0.0, MASK_VALUE)                        # (S, Smax)

  def rope(t):  # t: (B, S, H, Dh)
    t1, t2 = t[..., :HALF], t[..., HALF:]
    c = cos[None, :, None, :]
    s = sin[None, :, None, :]
    return jnp.concatenate([t1 * c - t2 * s, t2 * c + t1 * s], axis=-1)

  new_caches = []
  for i, layer in enumerate(params["layers"]):
    kc, vc = kv_cache[i]
    kcl = kc.reshape(KV_CACHE_MAX, BATCH, N_HEADS, HEAD_DIM).transpose(1, 2, 0, 3)
    vcl = vc.reshape(KV_CACHE_MAX, BATCH, N_HEADS, HEAD_DIM).transpose(1, 2, 0, 3)

    h = _rms_ref(x, layer["attn_norm"])
    qkv = h @ layer["w_qkv"].T
    q = rope(qkv[..., :HD].reshape(BATCH, SEQ, N_HEADS, HEAD_DIM))
    k = rope(qkv[..., HD:2 * HD].reshape(BATCH, SEQ, N_HEADS, HEAD_DIM))
    v = qkv[..., 2 * HD:].reshape(BATCH, SEQ, N_HEADS, HEAD_DIM)

    kcl = kcl.at[:, :, input_pos, :].set(k.transpose(0, 2, 1, 3))
    vcl = vcl.at[:, :, input_pos, :].set(v.transpose(0, 2, 1, 3))

    s_att = jnp.einsum('bshd,bhkd->bhsk', q, kcl) * SCALE + mask[None, None]
    p = jax.nn.softmax(s_att, axis=-1)
    o = jnp.einsum('bhsk,bhkd->bshd', p, vcl).reshape(BATCH, SEQ, HD)
    x = x + o @ layer["w_o"].T

    hf = _rms_ref(x, layer["ff_norm"])
    a1 = hf @ layer["w1"].T
    a3 = hf @ layer["w3"].T
    x = x + (a1 * jax.nn.sigmoid(a1) * a3) @ layer["w2"].T

    new_caches.append(
        (kcl.transpose(2, 0, 1, 3).reshape(KV_CACHE_MAX, CACHE_W),
         vcl.transpose(2, 0, 1, 3).reshape(KV_CACHE_MAX, CACHE_W)))

  hN = _rms_ref(x, params["final_norm"])
  logits = hN @ params["emb"].T
  return logits, tuple(new_caches)


if __name__ == "__main__":
  key = jax.random.PRNGKey(0)
  k_params, k_tok = jax.random.split(key)
  params = init_params(k_params)

  tokens = jax.random.randint(k_tok, (BATCH, SEQ), 1, VOCAB, dtype=jnp.int32)
  input_pos = jnp.arange(SEQ, dtype=jnp.int32)
  kv_cache = init_kv_cache()

  logits, new_kv = jax.jit(forward)(params, tokens, input_pos, kv_cache)
  logits = jax.block_until_ready(logits)
  jax.block_until_ready(new_kv)

  assert logits.shape == (BATCH, SEQ, VOCAB)
  assert bool(jnp.isfinite(logits).all())

  ref_logits, ref_kv = forward_reference(params, tokens, input_pos, kv_cache)
  assert float(jnp.max(jnp.abs(logits - ref_logits))) < 1e-2
  for i in range(N_LAYERS):
    assert float(jnp.max(jnp.abs(new_kv[i][0] - ref_kv[i][0]))) < 1e-2
    assert float(jnp.max(jnp.abs(new_kv[i][1] - ref_kv[i][1]))) < 1e-2

  print("KERNEL_OK")
</pallas_src>

<mosaic_0001>
module attributes {stable_mosaic.version = 11 : i64} {
  func.func @_model_kernel(%arg0: memref<16x1xi32, #tpu.memory_space<vmem>>, %arg1: memref<8x1xi32, #tpu.memory_space<vmem>>, %arg2: memref<1x8xi32, #tpu.memory_space<vmem>>, %arg3: memref<16x16xf32, #tpu.memory_space<vmem>>, %arg4: memref<16x16xf32, #tpu.memory_space<vmem>>, %arg5: memref<256x64xf32, #tpu.memory_space<vmem>>, %arg6: memref<1x64xf32, #tpu.memory_space<vmem>>, %arg7: memref<1x64xf32, #tpu.memory_space<vmem>>, %arg8: memref<192x64xf32, #tpu.memory_space<vmem>>, %arg9: memref<64x64xf32, #tpu.memory_space<vmem>>, %arg10: memref<1x64xf32, #tpu.memory_space<vmem>>, %arg11: memref<128x64xf32, #tpu.memory_space<vmem>>, %arg12: memref<128x64xf32, #tpu.memory_space<vmem>>, %arg13: memref<64x128xf32, #tpu.memory_space<vmem>>, %arg14: memref<16x128xf32, #tpu.memory_space<vmem>>, %arg15: memref<16x128xf32, #tpu.memory_space<vmem>>, %arg16: memref<1x64xf32, #tpu.memory_space<vmem>>, %arg17: memref<192x64xf32, #tpu.memory_space<vmem>>, %arg18: memref<64x64xf32, #tpu.memory_space<vmem>>, %arg19: memref<1x64xf32, #tpu.memory_space<vmem>>, %arg20: memref<128x64xf32, #tpu.memory_space<vmem>>, %arg21: memref<128x64xf32, #tpu.memory_space<vmem>>, %arg22: memref<64x128xf32, #tpu.memory_space<vmem>>, %arg23: memref<16x128xf32, #tpu.memory_space<vmem>>, %arg24: memref<16x128xf32, #tpu.memory_space<vmem>>, %arg25: memref<16x256xf32, #tpu.memory_space<vmem>>, %arg26: memref<16x128xf32, #tpu.memory_space<vmem>>, %arg27: memref<16x128xf32, #tpu.memory_space<vmem>>, %arg28: memref<16x128xf32, #tpu.memory_space<vmem>>, %arg29: memref<16x128xf32, #tpu.memory_space<vmem>>) attributes {dimension_semantics = [], scalar_prefetch = 0 : i64, scratch_operands = 0 : i64, tpu.core_type = #tpu.core_type<tc>} {
    %c0 = arith.constant 0 : index
    %c0_0 = arith.constant 0 : index
    %0 = vector.load %arg5[%c0, %c0_0] : memref<256x64xf32, #tpu.memory_space<vmem>>, vector<256x64xf32>
    %1 = tpu.iota {dimensions = array<i32: 1>} : vector<16x256xi32>
    %c0_1 = arith.constant 0 : index
    %c0_2 = arith.constant 0 : index
    %2 = vector.load %arg0[%c0_1, %c0_2] : memref<16x1xi32, #tpu.memory_space<vmem>>, vector<16x1xi32>
    %3 = vector.broadcast %2 : vector<16x1xi32> to vector<16x256xi32>
    %4 = arith.cmpi eq, %1, %3 : vector<16x256xi32>
    %5 = arith.extui %4 : vector<16x256xi1> to vector<16x256xi32>
    %6 = arith.sitofp %5 : vector<16x256xi32> to vector<16x256xf32>
    %cst = arith.constant dense<0.000000e+00> : vector<16x64xf32>
    %7 = tpu.matmul %6, %0, %cst {dimension_numbers = #tpu.dot_dimension_numbers<[1], [0], [0], [1], [0, 0, 1, 1], [], []>} : vector<16x256xf32>, vector<256x64xf32>, vector<16x64xf32> -> vector<16x64xf32>
    %c0_3 = arith.constant 0 : index
    %c0_4 = arith.constant 0 : index
    %8 = vector.load %arg3[%c0_3, %c0_4] : memref<16x16xf32, #tpu.memory_space<vmem>>, vector<16x16xf32>
    %c0_5 = arith.constant 0 : index
    %c0_6 = arith.constant 0 : index
    %9 = vector.load %arg4[%c0_5, %c0_6] : memref<16x16xf32, #tpu.memory_space<vmem>>, vector<16x16xf32>
    %10 = tpu.iota {dimensions = array<i32: 1>} : vector<8x16xi32>
    %c0_7 = arith.constant 0 : index
    %c0_8 = arith.constant 0 : index
    %11 = vector.load %arg1[%c0_7, %c0_8] : memref<8x1xi32, #tpu.memory_space<vmem>>, vector<8x1xi32>
    %12 = vector.broadcast %11 : vector<8x1xi32> to vector<8x16xi32>
    %13 = arith.cmpi sle, %10, %12 : vector<8x16xi32>
    %cst_9 = arith.constant 0.000000e+00 : f32
    %cst_10 = arith.constant -1.000000e+30 : f32
    %14 = vector.broadcast %cst_9 : f32 to vector<8x16xf32>
    %15 = vector.broadcast %cst_10 : f32 to vector<8x16xf32>
    %16 = arith.select %13, %14, %15 : vector<8x16xi1>, vector<8x16xf32>
    %17 = tpu.iota {dimensions = array<i32: 0>} : vector<16x8xi32>
    %c0_11 = arith.constant 0 : index
    %c0_12 = arith.constant 0 : index
    %18 = vector.load %arg2[%c0_11, %c0_12] : memref<1x8xi32, #tpu.memory_space<vmem>>, vector<1x8xi32>
    %19 = vector.broadcast %18 : vector<1x8xi32> to vector<16x8xi32>
    %20 = arith.cmpi eq, %17, %19 : vector<16x8xi32>
    %21 = arith.extui %20 : vector<16x8xi1> to vector<16x8xi32>
    %22 = arith.sitofp %21 : vector<16x8xi32> to vector<16x8xf32>
    %cst_13 = arith.constant dense<0.000000e+00> : vector<16xf32>
    %23 = vector.multi_reduction <add>, %22, %cst_13 [1] : vector<16x8xf32> to vector<16xf32>
    %24 = vector.shape_cast %23 : vector<16xf32> to vector<16x1xf32>
    %cst_14 = arith.constant 1.000000e+00 : f32
    %25 = vector.broadcast %cst_14 : f32 to vector<16x1xf32>
    %26 = arith.subf %25, %24 : vector<16x1xf32>
    %c0_15 = arith.constant 0 : index
    %c0_16 = arith.constant 0 : index
    %27 = vector.load %arg7[%c0_15, %c0_16] : memref<1x64xf32, #tpu.memory_space<vmem>>, vector<1x64xf32>
    %28 = arith.mulf %7, %7 : vector<16x64xf32>
    %cst_17 = arith.constant dense<0.000000e+00> : vector<16xf32>
    %29 = vector.multi_reduction <add>, %28, %cst_17 [1] : vector<16x64xf32> to vector<16xf32>
    %30 = vector.shape_cast %29 : vector<16xf32> to vector<16x1xf32>
    %cst_18 = arith.constant 6.400000e+01 : f32
    %31 = vector.broadcast %cst_18 : f32 to vector<16x1xf32>
    %32 = arith.divf %30, %31 : vector<16x1xf32>
    %cst_19 = arith.constant 9.99999997E-7 : f32
    %33 = vector.broadcast %cst_19 : f32 to vector<16x1xf32>
    %34 = arith.addf %32, %33 : vector<16x1xf32>
    %35 = math.rsqrt %34 : vector<16x1xf32>
    %36 = vector.broadcast %35 : vector<16x1xf32> to vector<16x64xf32>
    %37 = arith.mulf %7, %36 : vector<16x64xf32>
    %38 = vector.broadcast %27 : vector<1x64xf32> to vector<16x64xf32>
    %39 = arith.mulf %37, %38 : vector<16x64xf32>
    %c0_20 = arith.constant 0 : index
    %c0_21 = arith.constant 0 : index
    %40 = vector.load %arg8[%c0_20, %c0_21] : memref<192x64xf32, #tpu.memory_space<vmem>>, vector<192x64xf32>
    %cst_22 = arith.constant dense<0.000000e+00> : vector<16x192xf32>
    %41 = tpu.matmul %39, %40, %cst_22 {dimension_numbers = #tpu.dot_dimension_numbers<[1], [1], [0], [0], [0, 0, 1, 0], [], []>} : vector<16x64xf32>, vector<192x64xf32>, vector<16x192xf32> -> vector<16x192xf32>
    %42 = vector.extract_strided_slice %41 {offsets = [0, 0], sizes = [16, 64], strides = [1, 1]} : vector<16x192xf32> to vector<16x64xf32>
    %43 = vector.extract_strided_slice %42 {offsets = [0, 0], sizes = [16, 16], strides = [1, 1]} : vector<16x64xf32> to vector<16x16xf32>
    %44 = vector.extract_strided_slice %42 {offsets = [0, 16], sizes = [16, 16], strides = [1, 1]} : vector<16x64xf32> to vector<16x16xf32>
    %45 = arith.mulf %43, %8 : vector<16x16xf32>
    %46 = arith.mulf %44, %9 : vector<16x16xf32>
    %47 = arith.subf %45, %46 : vector<16x16xf32>
    %48 = arith.mulf %44, %8 : vector<16x16xf32>
    %49 = arith.mulf %43, %9 : vector<16x16xf32>
    %50 = arith.addf %48, %49 : vector<16x16xf32>
    %51 = tpu.concatenate %47, %50 in 1 : vector<16x16xf32>, vector<16x16xf32> -> vector<16x32xf32>
    %52 = vector.extract_strided_slice %42 {offsets = [0, 32], sizes = [16, 16], strides = [1, 1]} : vector<16x64xf32> to vector<16x16xf32>
    %53 = vector.extract_strided_slice %42 {offsets = [0, 48], sizes = [16, 16], strides = [1, 1]} : vector<16x64xf32> to vector<16x16xf32>
    %54 = arith.mulf %52, %8 : vector<16x16xf32>
    %55 = arith.mulf %53, %9 : vector<16x16xf32>
    %56 = arith.subf %54, %55 : vector<16x16xf32>
    %57 = arith.mulf %53, %8 : vector<16x16xf32>
    %58 = arith.mulf %52, %9 : vector<16x16xf32>
    %59 = arith.addf %57, %58 : vector<16x16xf32>
    %60 = tpu.concatenate %56, %59 in 1 : vector<16x16xf32>, vector<16x16xf32> -> vector<16x32xf32>
    %61 = tpu.concatenate %51, %60 in 1 : vector<16x32xf32>, vector<16x32xf32> -> vector<16x64xf32>
    %cst_23 = arith.constant 0.176776692 : f32
    %62 = vector.broadcast %cst_23 : f32 to vector<16x64xf32>
    %63 = arith.mulf %61, %62 : vector<16x64xf32>
    %64 = vector.extract_strided_slice %41 {offsets = [0, 64], sizes = [16, 64], strides = [1, 1]} : vector<16x192xf32> to vector<16x64xf32>
    %65 = vector.extract_strided_slice %64 {offsets = [0, 0], sizes = [16, 16], strides = [1, 1]} : vector<16x64xf32> to vector<16x16xf32>
    %66 = vector.extract_strided_slice %64 {offsets = [0, 16], sizes = [16, 16], strides = [1, 1]} : vector<16x64xf32> to vector<16x16xf32>
    %67 = arith.mulf %65, %8 : vector<16x16xf32>
    %68 = arith.mulf %66, %9 : vector<16x16xf32>
    %69 = arith.subf %67, %68 : vector<16x16xf32>
    %70 = arith.mulf %66, %8 : vector<16x16xf32>
    %71 = arith.mulf %65, %9 : vector<16x16xf32>
    %72 = arith.addf %70, %71 : vector<16x16xf32>
    %73 = tpu.concatenate %69, %72 in 1 : vector<16x16xf32>, vector<16x16xf32> -> vector<16x32xf32>
    %74 = vector.extract_strided_slice %64 {offsets = [0, 32], sizes = [16, 16], strides = [1, 1]} : vector<16x64xf32> to vector<16x16xf32>
    %75 = vector.extract_strided_slice %64 {offsets = [0, 48], sizes = [16, 16], strides = [1, 1]} : vector<16x64xf32> to vector<16x16xf32>
    %76 = arith.mulf %74, %8 : vector<16x16xf32>
    %77 = arith.mulf %75, %9 : vector<16x16xf32>
    %78 = arith.subf %76, %77 : vector<16x16xf32>
    %79 = arith.mulf %75, %8 : vector<16x16xf32>
    %80 = arith.mulf %74, %9 : vector<16x16xf32>
    %81 = arith.addf %79, %80 : vector<16x16xf32>
    %82 = tpu.concatenate %78, %81 in 1 : vector<16x16xf32>, vector<16x16xf32> -> vector<16x32xf32>
    %83 = tpu.concatenate %73, %82 in 1 : vector<16x32xf32>, vector<16x32xf32> -> vector<16x64xf32>
    %84 = vector.extract_strided_slice %41 {offsets = [0, 128], sizes = [16, 64], strides = [1, 1]} : vector<16x192xf32> to vector<16x64xf32>
    %85 = vector.extract_strided_slice %83 {offsets = [0, 0], sizes = [8, 64], strides = [1, 1]} : vector<16x64xf32> to vector<8x64xf32>
    %cst_24 = arith.constant dense<0.000000e+00> : vector<16x64xf32>
    %86 = tpu.matmul %22, %85, %cst_24 {dimension_numbers = #tpu.dot_dimension_numbers<[1], [0], [0], [1], [0, 0, 1, 1], [], []>} : vector<16x8xf32>, vector<8x64xf32>, vector<16x64xf32> -> vector<16x64xf32>
    %87 = vector.extract_strided_slice %83 {offsets = [8, 0], sizes = [8, 64], strides = [1, 1]} : vector<16x64xf32> to vector<8x64xf32>
    %cst_25 = arith.constant dense<0.000000e+00> : vector<16x64xf32>
    %88 = tpu.matmul %22, %87, %cst_25 {dimension_numbers = #tpu.dot_dimension_numbers<[1], [0], [0], [1], [0, 0, 1, 1], [], []>} : vector<16x8xf32>, vector<8x64xf32>, vector<16x64xf32> -> vector<16x64xf32>
    %89 = tpu.concatenate %86, %88 in 1 : vector<16x64xf32>, vector<16x64xf32> -> vector<16x128xf32>
    %90 = vector.extract_strided_slice %84 {offsets = [0, 0], sizes = [8, 64], strides = [1, 1]} : vector<16x64xf32> to vector<8x64xf32>
    %cst_26 = arith.constant dense<0.000000e+00> : vector<16x64xf32>
    %91 = tpu.matmul %22, %90, %cst_26 {dimension_numbers = #tpu.dot_dimension_numbers<[1], [0], [0], [1], [0, 0, 1, 1], [], []>} : vector<16x8xf32>, vector<8x64xf32>, vector<16x64xf32> -> vector<16x64xf32>
    %92 = vector.extract_strided_slice %84 {offsets = [8, 0], sizes = [8, 64], strides = [1, 1]} : vector<16x64xf32> to vector<8x64xf32>
    %cst_27 = arith.constant dense<0.000000e+00> : vector<16x64xf32>
    %93 = tpu.matmul %22, %92, %cst_27 {dimension_numbers = #tpu.dot_dimension_numbers<[1], [0], [0], [1], [0, 0, 1, 1], [], []>} : vector<16x8xf32>, vector<8x64xf32>, vector<16x64xf32> -> vector<16x64xf32>
    %94 = tpu.concatenate %91, %93 in 1 : vector<16x64xf32>, vector<16x64xf32> -> vector<16x128xf32>
    %c0_28 = arith.constant 0 : index
    %c0_29 = arith.constant 0 : index
    %95 = vector.load %arg14[%c0_28, %c0_29] : memref<16x128xf32, #tpu.memory_space<vmem>>, vector<16x128xf32>
    %96 = vector.broadcast %26 : vector<16x1xf32> to vector<16x128xf32>
    %97 = arith.mulf %95, %96 : vector<16x128xf32>
    %98 = arith.addf %97, %89 : vector<16x128xf32>
    %c0_30 = arith.constant 0 : index
    %c0_31 = arith.constant 0 : index
    %99 = vector.load %arg15[%c0_30, %c0_31] : memref<16x128xf32, #tpu.memory_space<vmem>>, vector<16x128xf32>
    %100 = vector.broadcast %26 : vector<16x1xf32> to vector<16x128xf32>
    %101 = arith.mulf %99, %100 : vector<16x128xf32>
    %102 = arith.addf %101, %94 : vector<16x128xf32>
    %c0_32 = arith.constant 0 : index
    %c0_33 = arith.constant 0 : index
    %103 = vector.load %arg26[%c0_32, %c0_33] : memref<16x128xf32, #tpu.memory_space<vmem>>, vector<16x128xf32>
    tpu.vector_store %arg26[%c0_32, %c0_33], %98 {strides = array<i32>} : memref<16x128xf32, #tpu.memory_space<vmem>>, vector<16x128xf32>,
    %c0_34 = arith.constant 0 : index
    %c0_35 = arith.constant 0 : index
    %104 = vector.load %arg27[%c0_34, %c0_35] : memref<16x128xf32, #tpu.memory_space<vmem>>, vector<16x128xf32>
    tpu.vector_store %arg27[%c0_34, %c0_35], %102 {strides = array<i32>} : memref<16x128xf32, #tpu.memory_space<vmem>>, vector<16x128xf32>,
    %105 = vector.extract_strided_slice %63 {offsets = [0, 0], sizes = [8, 32], strides = [1, 1]} : vector<16x64xf32> to vector<8x32xf32>
    %106 = vector.extract_strided_slice %98 {offsets = [0, 0], sizes = [16, 32], strides = [1, 1]} : vector<16x128xf32> to vector<16x32xf32>
    %107 = vector.extract_strided_slice %102 {offsets = [0, 0], sizes = [16, 32], strides = [1, 1]} : vector<16x128xf32> to vector<16x32xf32>
    %cst_36 = arith.constant dense<0.000000e+00> : vector<8x16xf32>
    %108 = tpu.matmul %105, %106, %cst_36 {dimension_numbers = #tpu.dot_dimension_numbers<[1], [1], [0], [0], [0, 0, 1, 0], [], []>} : vector<8x32xf32>, vector<16x32xf32>, vector<8x16xf32> -> vector<8x16xf32>
    %109 = arith.addf %108, %16 : vector<8x16xf32>
    %cst_37 = arith.constant dense<0xFF800000> : vector<8xf32>
    %110 = vector.multi_reduction <maximumf>, %109, %cst_37 [1] : vector<8x16xf32> to vector<8xf32>
    %111 = vector.shape_cast %110 : vector<8xf32> to vector<8x1xf32>
    %112 = vector.broadcast %111 : vector<8x1xf32> to vector<8x16xf32>
    %113 = arith.subf %109, %112 : vector<8x16xf32>
    %114 = math.exp %113 : vector<8x16xf32>
    %cst_38 = arith.constant dense<0.000000e+00> : vector<8xf32>
    %115 = vector.multi_reduction <add>, %114, %cst_38 [1] : vector<8x16xf32> to vector<8xf32>
    %116 = vector.shape_cast %115 : vector<8xf32> to vector<8x1xf32>
    %cst_39 = arith.constant dense<0.000000e+00> : vector<8x32xf32>
    %117 = tpu.matmul %114, %107, %cst_39 {dimension_numbers = #tpu.dot_dimension_numbers<[1], [0], [0], [1], [0, 0, 1, 1], [], []>} : vector<8x16xf32>, vector<16x32xf32>, vector<8x32xf32> -> vector<8x32xf32>
    %118 = tpu.reciprocal %116 {approx = true} : vector<8x1xf32> -> vector<8x1xf32>
    %119 = vector.broadcast %118 : vector<8x1xf32> to vector<8x32xf32>
    %120 = arith.mulf %117, %119 : vector<8x32xf32>
    %121 = vector.extract_strided_slice %63 {offsets = [0, 32], sizes = [8, 32], strides = [1, 1]} : vector<16x64xf32> to vector<8x32xf32>
    %122 = vector.extract_strided_slice %98 {offsets = [0, 32], sizes = [16, 32], strides = [1, 1]} : vector<16x128xf32> to vector<16x32xf32>
    %123 = vector.extract_strided_slice %102 {offsets = [0, 32], sizes = [16, 32], strides = [1, 1]} : vector<16x128xf32> to vector<16x32xf32>
    %cst_40 = arith.constant dense<0.000000e+00> : vector<8x16xf32>
    %124 = tpu.matmul %121, %122, %cst_40 {dimension_numbers = #tpu.dot_dimension_numbers<[1], [1], [0], [0], [0, 0, 1, 0], [], []>} : vector<8x32xf32>, vector<16x32xf32>, vector<8x16xf32> -> vector<8x16xf32>
    %125 = arith.addf %124, %16 : vector<8x16xf32>
    %cst_41 = arith.constant dense<0xFF800000> : vector<8xf32>
    %126 = vector.multi_reduction <maximumf>, %125, %cst_41 [1] : vector<8x16xf32> to vector<8xf32>
    %127 = vector.shape_cast %126 : vector<8xf32> to vector<8x1xf32>
    %128 = vector.broadcast %127 : vector<8x1xf32> to vector<8x16xf32>
    %129 = arith.subf %125, %128 : vector<8x16xf32>
    %130 = math.exp %129 : vector<8x16xf32>
    %cst_42 = arith.constant dense<0.000000e+00> : vector<8xf32>
    %131 = vector.multi_reduction <add>, %130, %cst_42 [1] : vector<8x16xf32> to vector<8xf32>
    %132 = vector.shape_cast %131 : vector<8xf32> to vector<8x1xf32>
    %cst_43 = arith.constant dense<0.000000e+00> : vector<8x32xf32>
    %133 = tpu.matmul %130, %123, %cst_43 {dimension_numbers = #tpu.dot_dimension_numbers<[1], [0], [0], [1], [0, 0, 1, 1], [], []>} : vector<8x16xf32>, vector<16x32xf32>, vector<8x32xf32> -> vector<8x32xf32>
    %134 = tpu.reciprocal %132 {approx = true} : vector<8x1xf32> -> vector<8x1xf32>
    %135 = vector.broadcast %134 : vector<8x1xf32> to vector<8x32xf32>
    %136 = arith.mulf %133, %135 : vector<8x32xf32>
    %137 = tpu.concatenate %120, %136 in 1 : vector<8x32xf32>, vector<8x32xf32> -> vector<8x64xf32>
    %138 = vector.extract_strided_slice %63 {offsets = [8, 0], sizes = [8, 32], strides = [1, 1]} : vector<16x64xf32> to vector<8x32xf32>
    %139 = vector.extract_strided_slice %98 {offsets = [0, 64], sizes = [16, 32], strides = [1, 1]} : vector<16x128xf32> to vector<16x32xf32>
    %140 = vector.extract_strided_slice %102 {offsets = [0, 64], sizes = [16, 32], strides = [1, 1]} : vector<16x128xf32> to vector<16x32xf32>
    %cst_44 = arith.constant dense<0.000000e+00> : vector<8x16xf32>
    %141 = tpu.matmul %138, %139, %cst_44 {dimension_numbers = #tpu.dot_dimension_numbers<[1], [1], [0], [0], [0, 0, 1, 0], [], []>} : vector<8x32xf32>, vector<16x32xf32>, vector<8x16xf32> -> vector<8x16xf32>
    %142 = arith.addf %141, %16 : vector<8x16xf32>
    %cst_45 = arith.constant dense<0xFF800000> : vector<8xf32>
    %143 = vector.multi_reduction <maximumf>, %142, %cst_45 [1] : vector<8x16xf32> to vector<8xf32>
    %144 = vector.shape_cast %143 : vector<8xf32> to vector<8x1xf32>
    %145 = vector.broadcast %144 : vector<8x1xf32> to vector<8x16xf32>
    %146 = arith.subf %142, %145 : vector<8x16xf32>
    %147 = math.exp %146 : vector<8x16xf32>
    %cst_46 = arith.constant dense<0.000000e+00> : vector<8xf32>
    %148 = vector.multi_reduction <add>, %147, %cst_46 [1] : vector<8x16xf32> to vector<8xf32>
    %149 = vector.shape_cast %148 : vector<8xf32> to vector<8x1xf32>
    %cst_47 = arith.constant dense<0.000000e+00> : vector<8x32xf32>
    %150 = tpu.matmul %147, %140, %cst_47 {dimension_numbers = #tpu.dot_dimension_numbers<[1], [0], [0], [1], [0, 0, 1, 1], [], []>} : vector<8x16xf32>, vector<16x32xf32>, vector<8x32xf32> -> vector<8x32xf32>
    %151 = tpu.reciprocal %149 {approx = true} : vector<8x1xf32> -> vector<8x1xf32>
    %152 = vector.broadcast %151 : vector<8x1xf32> to vector<8x32xf32>
    %153 = arith.mulf %150, %152 : vector<8x32xf32>
    %154 = vector.extract_strided_slice %63 {offsets = [8, 32], sizes = [8, 32], strides = [1, 1]} : vector<16x64xf32> to vector<8x32xf32>
    %155 = vector.extract_strided_slice %98 {offsets = [0, 96], sizes = [16, 32], strides = [1, 1]} : vector<16x128xf32> to vector<16x32xf32>
    %156 = vector.extract_strided_slice %102 {offsets = [0, 96], sizes = [16, 32], strides = [1, 1]} : vector<16x128xf32> to vector<16x32xf32>
    %cst_48 = arith.constant dense<0.000000e+00> : vector<8x16xf32>
    %157 = tpu.matmul %154, %155, %cst_48 {dimension_numbers = #tpu.dot_dimension_numbers<[1], [1], [0], [0], [0, 0, 1, 0], [], []>} : vector<8x32xf32>, vector<16x32xf32>, vector<8x16xf32> -> vector<8x16xf32>
    %158 = arith.addf %157, %16 : vector<8x16xf32>
    %cst_49 = arith.constant dense<0xFF800000> : vector<8xf32>
    %159 = vector.multi_reduction <maximumf>, %158, %cst_49 [1] : vector<8x16xf32> to vector<8xf32>
    %160 = vector.shape_cast %159 : vector<8xf32> to vector<8x1xf32>
    %161 = vector.broadcast %160 : vector<8x1xf32> to vector<8x16xf32>
    %162 = arith.subf %158, %161 : vector<8x16xf32>
    %163 = math.exp %162 : vector<8x16xf32>
    %cst_50 = arith.constant dense<0.000000e+00> : vector<8xf32>
    %164 = vector.multi_reduction <add>, %163, %cst_50 [1] : vector<8x16xf32> to vector<8xf32>
    %165 = vector.shape_cast %164 : vector<8xf32> to vector<8x1xf32>
    %cst_51 = arith.constant dense<0.000000e+00> : vector<8x32xf32>
    %166 = tpu.matmul %163, %156, %cst_51 {dimension_numbers = #tpu.dot_dimension_numbers<[1], [0], [0], [1], [0, 0, 1, 1], [], []>} : vector<8x16xf32>, vector<16x32xf32>, vector<8x32xf32> -> vector<8x32xf32>
    %167 = tpu.reciprocal %165 {approx = true} : vector<8x1xf32> -> vector<8x1xf32>
    %168 = vector.broadcast %167 : vector<8x1xf32> to vector<8x32xf32>
    %169 = arith.mulf %166, %168 : vector<8x32xf32>
    %170 = tpu.concatenate %153, %169 in 1 : vector<8x32xf32>, vector<8x32xf32> -> vector<8x64xf32>
    %171 = tpu.concatenate %137, %170 in 0 : vector<8x64xf32>, vector<8x64xf32> -> vector<16x64xf32>
    %c0_52 = arith.constant 0 : index
    %c0_53 = arith.constant 0 : index
    %172 = vector.load %arg9[%c0_52, %c0_53] : memref<64x64xf32, #tpu.memory_space<vmem>>, vector<64x64xf32>
    %cst_54 = arith.constant dense<0.000000e+00> : vector<16x64xf32>
    %173 = tpu.matmul %171, %172, %cst_54 {dimension_numbers = #tpu.dot_dimension_numbers<[1], [1], [0], [0], [0, 0, 1, 0], [], []>} : vector<16x64xf32>, vector<64x64xf32>, vector<16x64xf32> -> vector<16x64xf32>
    %174 = arith.addf %7, %173 : vector<16x64xf32>
    %c0_55 = arith.constant 0 : index
    %c0_56 = arith.constant 0 : index
    %175 = vector.load %arg10[%c0_55, %c0_56] : memref<1x64xf32, #tpu.memory_space<vmem>>, vector<1x64xf32>
    %176 = arith.mulf %174, %174 : vector<16x64xf32>
    %cst_57 = arith.constant dense<0.000000e+00> : vector<16xf32>
    %177 = vector.multi_reduction <add>, %176, %cst_57 [1] : vector<16x64xf32> to vector<16xf32>
    %178 = vector.shape_cast %177 : vector<16xf32> to vector<16x1xf32>
    %cst_58 = arith.constant 6.400000e+01 : f32
    %179 = vector.broadcast %cst_58 : f32 to vector<16x1xf32>
    %180 = arith.divf %178, %179 : vector<16x1xf32>
    %cst_59 = arith.constant 9.99999997E-7 : f32
    %181 = vector.broadcast %cst_59 : f32 to vector<16x1xf32>
    %182 = arith.addf %180, %181 : vector<16x1xf32>
    %183 = math.rsqrt %182 : vector<16x1xf32>
    %184 = vector.broadcast %183 : vector<16x1xf32> to vector<16x64xf32>
    %185 = arith.mulf %174, %184 : vector<16x64xf32>
    %186 = vector.broadcast %175 : vector<1x64xf32> to vector<16x64xf32>
    %187 = arith.mulf %185, %186 : vector<16x64xf32>
    %c0_60 = arith.constant 0 : index
    %c0_61 = arith.constant 0 : index
    %188 = vector.load %arg11[%c0_60, %c0_61] : memref<128x64xf32, #tpu.memory_space<vmem>>, vector<128x64xf32>
    %cst_62 = arith.constant dense<0.000000e+00> : vector<16x128xf32>
    %189 = tpu.matmul %187, %188, %cst_62 {dimension_numbers = #tpu.dot_dimension_numbers<[1], [1], [0], [0], [0, 0, 1, 0], [], []>} : vector<16x64xf32>, vector<128x64xf32>, vector<16x128xf32> -> vector<16x128xf32>
    %c0_63 = arith.constant 0 : index
    %c0_64 = arith.constant 0 : index
    %190 = vector.load %arg12[%c0_63, %c0_64] : memref<128x64xf32, #tpu.memory_space<vmem>>, vector<128x64xf32>
    %cst_65 = arith.constant dense<0.000000e+00> : vector<16x128xf32>
    %191 = tpu.matmul %187, %190, %cst_65 {dimension_numbers = #tpu.dot_dimension_numbers<[1], [1], [0], [0], [0, 0, 1, 0], [], []>} : vector<16x64xf32>, vector<128x64xf32>, vector<16x128xf32> -> vector<16x128xf32>
    %192 = arith.negf %189 : vector<16x128xf32>
    %193 = math.exp %192 : vector<16x128xf32>
    %cst_66 = arith.constant 1.000000e+00 : f32
    %194 = vector.broadcast %cst_66 : f32 to vector<16x128xf32>
    %195 = arith.addf %194, %193 : vector<16x128xf32>
    %196 = arith.divf %194, %195 : vector<16x128xf32>
    %197 = arith.mulf %189, %196 : vector<16x128xf32>
    %198 = arith.mulf %197, %191 : vector<16x128xf32>
    %c0_67 = arith.constant 0 : index
    %c0_68 = arith.constant 0 : index
    %199 = vector.load %arg13[%c0_67, %c0_68] : memref<64x128xf32, #tpu.memory_space<vmem>>, vector<64x128xf32>
    %cst_69 = arith.constant dense<0.000000e+00> : vector<16x64xf32>
    %200 = tpu.matmul %198, %199, %cst_69 {dimension_numbers = #tpu.dot_dimension_numbers<[1], [1], [0], [0], [0, 0, 1, 0], [], []>} : vector<16x128xf32>, vector<64x128xf32>, vector<16x64xf32> -> vector<16x64xf32>
    %201 = arith.addf %174, %200 : vector<16x64xf32>
    %c0_70 = arith.constant 0 : index
    %c0_71 = arith.constant 0 : index
    %202 = vector.load %arg16[%c0_70, %c0_71] : memref<1x64xf32, #tpu.memory_space<vmem>>, vector<1x64xf32>
    %203 = arith.mulf %201, %201 : vector<16x64xf32>
    %cst_72 = arith.constant dense<0.000000e+00> : vector<16xf32>
    %204 = vector.multi_reduction <add>, %203, %cst_72 [1] : vector<16x64xf32> to vector<16xf32>
    %205 = vector.shape_cast %204 : vector<16xf32> to vector<16x1xf32>
    %cst_73 = arith.constant 6.400000e+01 : f32
    %206 = vector.broadcast %cst_73 : f32 to vector<16x1xf32>
    %207 = arith.divf %205, %206 : vector<16x1xf32>
    %cst_74 = arith.constant 9.99999997E-7 : f32
    %208 = vector.broadcast %cst_74 : f32 to vector<16x1xf32>
    %209 = arith.addf %207, %208 : vector<16x1xf32>
    %210 = math.rsqrt %209 : vector<16x1xf32>
    %211 = vector.broadcast %210 : vector<16x1xf32> to vector<16x64xf32>
    %212 = arith.mulf %201, %211 : vector<16x64xf32>
    %213 = vector.broadcast %202 : vector<1x64xf32> to vector<16x64xf32>
    %214 = arith.mulf %212, %213 : vector<16x64xf32>
    %c0_75 = arith.constant 0 : index
    %c0_76 = arith.constant 0 : index
    %215 = vector.load %arg17[%c0_75, %c0_76] : memref<192x64xf32, #tpu.memory_space<vmem>>, vector<192x64xf32>
    %cst_77 = arith.constant dense<0.000000e+00> : vector<16x192xf32>
    %216 = tpu.matmul %214, %215, %cst_77 {dimension_numbers = #tpu.dot_dimension_numbers<[1], [1], [0], [0], [0, 0, 1, 0], [], []>} : vector<16x64xf32>, vector<192x64xf32>, vector<16x192xf32> -> vector<16x192xf32>
    %217 = vector.extract_strided_slice %216 {offsets = [0, 0], sizes = [16, 64], strides = [1, 1]} : vector<16x192xf32> to vector<16x64xf32>
    %218 = vector.extract_strided_slice %217 {offsets = [0, 0], sizes = [16, 16], strides = [1, 1]} : vector<16x64xf32> to vector<16x16xf32>
    %219 = vector.extract_strided_slice %217 {offsets = [0, 16], sizes = [16, 16], strides = [1, 1]} : vector<16x64xf32> to vector<16x16xf32>
    %220 = arith.mulf %218, %8 : vector<16x16xf32>
    %221 = arith.mulf %219, %9 : vector<16x16xf32>
    %222 = arith.subf %220, %221 : vector<16x16xf32>
    %223 = arith.mulf %219, %8 : vector<16x16xf32>
    %224 = arith.mulf %218, %9 : vector<16x16xf32>
    %225 = arith.addf %223, %224 : vector<16x16xf32>
    %226 = tpu.concatenate %222, %225 in 1 : vector<16x16xf32>, vector<16x16xf32> -> vector<16x32xf32>
    %227 = vector.extract_strided_slice %217 {offsets = [0, 32], sizes = [16, 16], strides = [1, 1]} : vector<16x64xf32> to vector<16x16xf32>
    %228 = vector.extract_strided_slice %217 {offsets = [0, 48], sizes = [16, 16], strides = [1, 1]} : vector<16x64xf32> to vector<16x16xf32>
    %229 = arith.mulf %227, %8 : vector<16x16xf32>
    %230 = arith.mulf %228, %9 : vector<16x16xf32>
    %231 = arith.subf %229, %230 : vector<16x16xf32>
    %232 = arith.mulf %228, %8 : vector<16x16xf32>
    %233 = arith.mulf %227, %9 : vector<16x16xf32>
    %234 = arith.addf %232, %233 : vector<16x16xf32>
    %235 = tpu.concatenate %231, %234 in 1 : vector<16x16xf32>, vector<16x16xf32> -> vector<16x32xf32>
    %236 = tpu.concatenate %226, %235 in 1 : vector<16x32xf32>, vector<16x32xf32> -> vector<16x64xf32>
    %cst_78 = arith.constant 0.176776692 : f32
    %237 = vector.broadcast %cst_78 : f32 to vector<16x64xf32>
    %238 = arith.mulf %236, %237 : vector<16x64xf32>
    %239 = vector.extract_strided_slice %216 {offsets = [0, 64], sizes = [16, 64], strides = [1, 1]} : vector<16x192xf32> to vector<16x64xf32>
    %240 = vector.extract_strided_slice %239 {offsets = [0, 0], sizes = [16, 16], strides = [1, 1]} : vector<16x64xf32> to vector<16x16xf32>
    %241 = vector.extract_strided_slice %239 {offsets = [0, 16], sizes = [16, 16], strides = [1, 1]} : vector<16x64xf32> to vector<16x16xf32>
    %242 = arith.mulf %240, %8 : vector<16x16xf32>
    %243 = arith.mulf %241, %9 : vector<16x16xf32>
    %244 = arith.subf %242, %243 : vector<16x16xf32>
    %245 = arith.mulf %241, %8 : vector<16x16xf32>
    %246 = arith.mulf %240, %9 : vector<16x16xf32>
    %247 = arith.addf %245, %246 : vector<16x16xf32>
    %248 = tpu.concatenate %244, %247 in 1 : vector<16x16xf32>, vector<16x16xf32> -> vector<16x32xf32>
    %249 = vector.extract_strided_slice %239 {offsets = [0, 32], sizes = [16, 16], strides = [1, 1]} : vector<16x64xf32> to vector<16x16xf32>
    %250 = vector.extract_strided_slice %239 {offsets = [0, 48], sizes = [16, 16], strides = [1, 1]} : vector<16x64xf32> to vector<16x16xf32>
    %251 = arith.mulf %249, %8 : vector<16x16xf32>
    %252 = arith.mulf %250, %9 : vector<16x16xf32>
    %253 = arith.subf %251, %252 : vector<16x16xf32>
    %254 = arith.mulf %250, %8 : vector<16x16xf32>
    %255 = arith.mulf %249, %9 : vector<16x16xf32>
    %256 = arith.addf %254, %255 : vector<16x16xf32>
    %257 = tpu.concatenate %253, %256 in 1 : vector<16x16xf32>, vector<16x16xf32> -> vector<16x32xf32>
    %258 = tpu.concatenate %248, %257 in 1 : vector<16x32xf32>, vector<16x32xf32> -> vector<16x64xf32>
    %259 = vector.extract_strided_slice %216 {offsets = [0, 128], sizes = [16, 64], strides = [1, 1]} : vector<16x192xf32> to vector<16x64xf32>
    %260 = vector.extract_strided_slice %258 {offsets = [0, 0], sizes = [8, 64], strides = [1, 1]} : vector<16x64xf32> to vector<8x64xf32>
    %cst_79 = arith.constant dense<0.000000e+00> : vector<16x64xf32>
    %261 = tpu.matmul %22, %260, %cst_79 {dimension_numbers = #tpu.dot_dimension_numbers<[1], [0], [0], [1], [0, 0, 1, 1], [], []>} : vector<16x8xf32>, vector<8x64xf32>, vector<16x64xf32> -> vector<16x64xf32>
    %262 = vector.extract_strided_slice %258 {offsets = [8, 0], sizes = [8, 64], strides = [1, 1]} : vector<16x64xf32> to vector<8x64xf32>
    %cst_80 = arith.constant dense<0.000000e+00> : vector<16x64xf32>
    %263 = tpu.matmul %22, %262, %cst_80 {dimension_numbers = #tpu.dot_dimension_numbers<[1], [0], [0], [1], [0, 0, 1, 1], [], []>} : vector<16x8xf32>, vector<8x64xf32>, vector<16x64xf32> -> vector<16x64xf32>
    %264 = tpu.concatenate %261, %263 in 1 : vector<16x64xf32>, vector<16x64xf32> -> vector<16x128xf32>
    %265 = vector.extract_strided_slice %259 {offsets = [0, 0], sizes = [8, 64], strides = [1, 1]} : vector<16x64xf32> to vector<8x64xf32>
    %cst_81 = arith.constant dense<0.000000e+00> : vector<16x64xf32>
    %266 = tpu.matmul %22, %265, %cst_81 {dimension_numbers = #tpu.dot_dimension_numbers<[1], [0], [0], [1], [0, 0, 1, 1], [], []>} : vector<16x8xf32>, vector<8x64xf32>, vector<16x64xf32> -> vector<16x64xf32>
    %267 = vector.extract_strided_slice %259 {offsets = [8, 0], sizes = [8, 64], strides = [1, 1]} : vector<16x64xf32> to vector<8x64xf32>
    %cst_82 = arith.constant dense<0.000000e+00> : vector<16x64xf32>
    %268 = tpu.matmul %22, %267, %cst_82 {dimension_numbers = #tpu.dot_dimension_numbers<[1], [0], [0], [1], [0, 0, 1, 1], [], []>} : vector<16x8xf32>, vector<8x64xf32>, vector<16x64xf32> -> vector<16x64xf32>
    %269 = tpu.concatenate %266, %268 in 1 : vector<16x64xf32>, vector<16x64xf32> -> vector<16x128xf32>
    %c0_83 = arith.constant 0 : index
    %c0_84 = arith.constant 0 : index
    %270 = vector.load %arg23[%c0_83, %c0_84] : memref<16x128xf32, #tpu.memory_space<vmem>>, vector<16x128xf32>
    %271 = vector.broadcast %26 : vector<16x1xf32> to vector<16x128xf32>
    %272 = arith.mulf %270, %271 : vector<16x128xf32>
    %273 = arith.addf %272, %264 : vector<16x128xf32>
    %c0_85 = arith.constant 0 : index
    %c0_86 = arith.constant 0 : index
    %274 = vector.load %arg24[%c0_85, %c0_86] : memref<16x128xf32, #tpu.memory_space<vmem>>, vector<16x128xf32>
    %275 = vector.broadcast %26 : vector<16x1xf32> to vector<16x128xf32>
    %276 = arith.mulf %274, %275 : vector<16x128xf32>
    %277 = arith.addf %276, %269 : vector<16x128xf32>
    %c0_87 = arith.constant 0 : index
    %c0_88 = arith.constant 0 : index
    %278 = vector.load %arg28[%c0_87, %c0_88] : memref<16x128xf32, #tpu.memory_space<vmem>>, vector<16x128xf32>
    tpu.vector_store %arg28[%c0_87, %c0_88], %273 {strides = array<i32>} : memref<16x128xf32, #tpu.memory_space<vmem>>, vector<16x128xf32>,
    %c0_89 = arith.constant 0 : index
    %c0_90 = arith.constant 0 : index
    %279 = vector.load %arg29[%c0_89, %c0_90] : memref<16x128xf32, #tpu.memory_space<vmem>>, vector<16x128xf32>
    tpu.vector_store %arg29[%c0_89, %c0_90], %277 {strides = array<i32>} : memref<16x128xf32, #tpu.memory_space<vmem>>, vector<16x128xf32>,
    %280 = vector.extract_strided_slice %238 {offsets = [0, 0], sizes = [8, 32], strides = [1, 1]} : vector<16x64xf32> to vector<8x32xf32>
    %281 = vector.extract_strided_slice %273 {offsets = [0, 0], sizes = [16, 32], strides = [1, 1]} : vector<16x128xf32> to vector<16x32xf32>
    %282 = vector.extract_strided_slice %277 {offsets = [0, 0], sizes = [16, 32], strides = [1, 1]} : vector<16x128xf32> to vector<16x32xf32>
    %cst_91 = arith.constant dense<0.000000e+00> : vector<8x16xf32>
    %283 = tpu.matmul %280, %281, %cst_91 {dimension_numbers = #tpu.dot_dimension_numbers<[1], [1], [0], [0], [0, 0, 1, 0], [], []>} : vector<8x32xf32>, vector<16x32xf32>, vector<8x16xf32> -> vector<8x16xf32>
    %284 = arith.addf %283, %16 : vector<8x16xf32>
    %cst_92 = arith.constant dense<0xFF800000> : vector<8xf32>
    %285 = vector.multi_reduction <maximumf>, %284, %cst_92 [1] : vector<8x16xf32> to vector<8xf32>
    %286 = vector.shape_cast %285 : vector<8xf32> to vector<8x1xf32>
    %287 = vector.broadcast %286 : vector<8x1xf32> to vector<8x16xf32>
    %288 = arith.subf %284, %287 : vector<8x16xf32>
    %289 = math.exp %288 : vector<8x16xf32>
    %cst_93 = arith.constant dense<0.000000e+00> : vector<8xf32>
    %290 = vector.multi_reduction <add>, %289, %cst_93 [1] : vector<8x16xf32> to vector<8xf32>
    %291 = vector.shape_cast %290 : vector<8xf32> to vector<8x1xf32>
    %cst_94 = arith.constant dense<0.000000e+00> : vector<8x32xf32>
    %292 = tpu.matmul %289, %282, %cst_94 {dimension_numbers = #tpu.dot_dimension_numbers<[1], [0], [0], [1], [0, 0, 1, 1], [], []>} : vector<8x16xf32>, vector<16x32xf32>, vector<8x32xf32> -> vector<8x32xf32>
    %293 = tpu.reciprocal %291 {approx = true} : vector<8x1xf32> -> vector<8x1xf32>
    %294 = vector.broadcast %293 : vector<8x1xf32> to vector<8x32xf32>
    %295 = arith.mulf %292, %294 : vector<8x32xf32>
    %296 = vector.extract_strided_slice %238 {offsets = [0, 32], sizes = [8, 32], strides = [1, 1]} : vector<16x64xf32> to vector<8x32xf32>
    %297 = vector.extract_strided_slice %273 {offsets = [0, 32], sizes = [16, 32], strides = [1, 1]} : vector<16x128xf32> to vector<16x32xf32>
    %298 = vector.extract_strided_slice %277 {offsets = [0, 32], sizes = [16, 32], strides = [1, 1]} : vector<16x128xf32> to vector<16x32xf32>
    %cst_95 = arith.constant dense<0.000000e+00> : vector<8x16xf32>
    %299 = tpu.matmul %296, %297, %cst_95 {dimension_numbers = #tpu.dot_dimension_numbers<[1], [1], [0], [0], [0, 0, 1, 0], [], []>} : vector<8x32xf32>, vector<16x32xf32>, vector<8x16xf32> -> vector<8x16xf32>
    %300 = arith.addf %299, %16 : vector<8x16xf32>
    %cst_96 = arith.constant dense<0xFF800000> : vector<8xf32>
    %301 = vector.multi_reduction <maximumf>, %300, %cst_96 [1] : vector<8x16xf32> to vector<8xf32>
    %302 = vector.shape_cast %301 : vector<8xf32> to vector<8x1xf32>
    %303 = vector.broadcast %302 : vector<8x1xf32> to vector<8x16xf32>
    %304 = arith.subf %300, %303 : vector<8x16xf32>
    %305 = math.exp %304 : vector<8x16xf32>
    %cst_97 = arith.constant dense<0.000000e+00> : vector<8xf32>
    %306 = vector.multi_reduction <add>, %305, %cst_97 [1] : vector<8x16xf32> to vector<8xf32>
    %307 = vector.shape_cast %306 : vector<8xf32> to vector<8x1xf32>
    %cst_98 = arith.constant dense<0.000000e+00> : vector<8x32xf32>
    %308 = tpu.matmul %305, %298, %cst_98 {dimension_numbers = #tpu.dot_dimension_numbers<[1], [0], [0], [1], [0, 0, 1, 1], [], []>} : vector<8x16xf32>, vector<16x32xf32>, vector<8x32xf32> -> vector<8x32xf32>
    %309 = tpu.reciprocal %307 {approx = true} : vector<8x1xf32> -> vector<8x1xf32>
    %310 = vector.broadcast %309 : vector<8x1xf32> to vector<8x32xf32>
    %311 = arith.mulf %308, %310 : vector<8x32xf32>
    %312 = tpu.concatenate %295, %311 in 1 : vector<8x32xf32>, vector<8x32xf32> -> vector<8x64xf32>
    %313 = vector.extract_strided_slice %238 {offsets = [8, 0], sizes = [8, 32], strides = [1, 1]} : vector<16x64xf32> to vector<8x32xf32>
    %314 = vector.extract_strided_slice %273 {offsets = [0, 64], sizes = [16, 32], strides = [1, 1]} : vector<16x128xf32> to vector<16x32xf32>
    %315 = vector.extract_strided_slice %277 {offsets = [0, 64], sizes = [16, 32], strides = [1, 1]} : vector<16x128xf32> to vector<16x32xf32>
    %cst_99 = arith.constant dense<0.000000e+00> : vector<8x16xf32>
    %316 = tpu.matmul %313, %314, %cst_99 {dimension_numbers = #tpu.dot_dimension_numbers<[1], [1], [0], [0], [0, 0, 1, 0], [], []>} : vector<8x32xf32>, vector<16x32xf32>, vector<8x16xf32> -> vector<8x16xf32>
    %317 = arith.addf %316, %16 : vector<8x16xf32>
    %cst_100 = arith.constant dense<0xFF800000> : vector<8xf32>
    %318 = vector.multi_reduction <maximumf>, %317, %cst_100 [1] : vector<8x16xf32> to vector<8xf32>
    %319 = vector.shape_cast %318 : vector<8xf32> to vector<8x1xf32>
    %320 = vector.broadcast %319 : vector<8x1xf32> to vector<8x16xf32>
    %321 = arith.subf %317, %320 : vector<8x16xf32>
    %322 = math.exp %321 : vector<8x16xf32>
    %cst_101 = arith.constant dense<0.000000e+00> : vector<8xf32>
    %323 = vector.multi_reduction <add>, %322, %cst_101 [1] : vector<8x16xf32> to vector<8xf32>
    %324 = vector.shape_cast %323 : vector<8xf32> to vector<8x1xf32>
    %cst_102 = arith.constant dense<0.000000e+00> : vector<8x32xf32>
    %325 = tpu.matmul %322, %315, %cst_102 {dimension_numbers = #tpu.dot_dimension_numbers<[1], [0], [0], [1], [0, 0, 1, 1], [], []>} : vector<8x16xf32>, vector<16x32xf32>, vector<8x32xf32> -> vector<8x32xf32>
    %326 = tpu.reciprocal %324 {approx = true} : vector<8x1xf32> -> vector<8x1xf32>
    %327 = vector.broadcast %326 : vector<8x1xf32> to vector<8x32xf32>
    %328 = arith.mulf %325, %327 : vector<8x32xf32>
    %329 = vector.extract_strided_slice %238 {offsets = [8, 32], sizes = [8, 32], strides = [1, 1]} : vector<16x64xf32> to vector<8x32xf32>
    %330 = vector.extract_strided_slice %273 {offsets = [0, 96], sizes = [16, 32], strides = [1, 1]} : vector<16x128xf32> to vector<16x32xf32>
    %331 = vector.extract_strided_slice %277 {offsets = [0, 96], sizes = [16, 32], strides = [1, 1]} : vector<16x128xf32> to vector<16x32xf32>
    %cst_103 = arith.constant dense<0.000000e+00> : vector<8x16xf32>
    %332 = tpu.matmul %329, %330, %cst_103 {dimension_numbers = #tpu.dot_dimension_numbers<[1], [1], [0], [0], [0, 0, 1, 0], [], []>} : vector<8x32xf32>, vector<16x32xf32>, vector<8x16xf32> -> vector<8x16xf32>
    %333 = arith.addf %332, %16 : vector<8x16xf32>
    %cst_104 = arith.constant dense<0xFF800000> : vector<8xf32>
    %334 = vector.multi_reduction <maximumf>, %333, %cst_104 [1] : vector<8x16xf32> to vector<8xf32>
    %335 = vector.shape_cast %334 : vector<8xf32> to vector<8x1xf32>
    %336 = vector.broadcast %335 : vector<8x1xf32> to vector<8x16xf32>
    %337 = arith.subf %333, %336 : vector<8x16xf32>
    %338 = math.exp %337 : vector<8x16xf32>
    %cst_105 = arith.constant dense<0.000000e+00> : vector<8xf32>
    %339 = vector.multi_reduction <add>, %338, %cst_105 [1] : vector<8x16xf32> to vector<8xf32>
    %340 = vector.shape_cast %339 : vector<8xf32> to vector<8x1xf32>
    %cst_106 = arith.constant dense<0.000000e+00> : vector<8x32xf32>
    %341 = tpu.matmul %338, %331, %cst_106 {dimension_numbers = #tpu.dot_dimension_numbers<[1], [0], [0], [1], [0, 0, 1, 1], [], []>} : vector<8x16xf32>, vector<16x32xf32>, vector<8x32xf32> -> vector<8x32xf32>
    %342 = tpu.reciprocal %340 {approx = true} : vector<8x1xf32> -> vector<8x1xf32>
    %343 = vector.broadcast %342 : vector<8x1xf32> to vector<8x32xf32>
    %344 = arith.mulf %341, %343 : vector<8x32xf32>
    %345 = tpu.concatenate %328, %344 in 1 : vector<8x32xf32>, vector<8x32xf32> -> vector<8x64xf32>
    %346 = tpu.concatenate %312, %345 in 0 : vector<8x64xf32>, vector<8x64xf32> -> vector<16x64xf32>
    %c0_107 = arith.constant 0 : index
    %c0_108 = arith.constant 0 : index
    %347 = vector.load %arg18[%c0_107, %c0_108] : memref<64x64xf32, #tpu.memory_space<vmem>>, vector<64x64xf32>
    %cst_109 = arith.constant dense<0.000000e+00> : vector<16x64xf32>
    %348 = tpu.matmul %346, %347, %cst_109 {dimension_numbers = #tpu.dot_dimension_numbers<[1], [1], [0], [0], [0, 0, 1, 0], [], []>} : vector<16x64xf32>, vector<64x64xf32>, vector<16x64xf32> -> vector<16x64xf32>
    %349 = arith.addf %201, %348 : vector<16x64xf32>
    %c0_110 = arith.constant 0 : index
    %c0_111 = arith.constant 0 : index
    %350 = vector.load %arg19[%c0_110, %c0_111] : memref<1x64xf32, #tpu.memory_space<vmem>>, vector<1x64xf32>
    %351 = arith.mulf %349, %349 : vector<16x64xf32>
    %cst_112 = arith.constant dense<0.000000e+00> : vector<16xf32>
    %352 = vector.multi_reduction <add>, %351, %cst_112 [1] : vector<16x64xf32> to vector<16xf32>
    %353 = vector.shape_cast %352 : vector<16xf32> to vector<16x1xf32>
    %cst_113 = arith.constant 6.400000e+01 : f32
    %354 = vector.broadcast %cst_113 : f32 to vector<16x1xf32>
    %355 = arith.divf %353, %354 : vector<16x1xf32>
    %cst_114 = arith.constant 9.99999997E-7 : f32
    %356 = vector.broadcast %cst_114 : f32 to vector<16x1xf32>
    %357 = arith.addf %355, %356 : vector<16x1xf32>
    %358 = math.rsqrt %357 : vector<16x1xf32>
    %359 = vector.broadcast %358 : vector<16x1xf32> to vector<16x64xf32>
    %360 = arith.mulf %349, %359 : vector<16x64xf32>
    %361 = vector.broadcast %350 : vector<1x64xf32> to vector<16x64xf32>
    %362 = arith.mulf %360, %361 : vector<16x64xf32>
    %c0_115 = arith.constant 0 : index
    %c0_116 = arith.constant 0 : index
    %363 = vector.load %arg20[%c0_115, %c0_116] : memref<128x64xf32, #tpu.memory_space<vmem>>, vector<128x64xf32>
    %cst_117 = arith.constant dense<0.000000e+00> : vector<16x128xf32>
    %364 = tpu.matmul %362, %363, %cst_117 {dimension_numbers = #tpu.dot_dimension_numbers<[1], [1], [0], [0], [0, 0, 1, 0], [], []>} : vector<16x64xf32>, vector<128x64xf32>, vector<16x128xf32> -> vector<16x128xf32>
    %c0_118 = arith.constant 0 : index
    %c0_119 = arith.constant 0 : index
    %365 = vector.load %arg21[%c0_118, %c0_119] : memref<128x64xf32, #tpu.memory_space<vmem>>, vector<128x64xf32>
    %cst_120 = arith.constant dense<0.000000e+00> : vector<16x128xf32>
    %366 = tpu.matmul %362, %365, %cst_120 {dimension_numbers = #tpu.dot_dimension_numbers<[1], [1], [0], [0], [0, 0, 1, 0], [], []>} : vector<16x64xf32>, vector<128x64xf32>, vector<16x128xf32> -> vector<16x128xf32>
    %367 = arith.negf %364 : vector<16x128xf32>
    %368 = math.exp %367 : vector<16x128xf32>
    %cst_121 = arith.constant 1.000000e+00 : f32
    %369 = vector.broadcast %cst_121 : f32 to vector<16x128xf32>
    %370 = arith.addf %369, %368 : vector<16x128xf32>
    %371 = arith.divf %369, %370 : vector<16x128xf32>
    %372 = arith.mulf %364, %371 : vector<16x128xf32>
    %373 = arith.mulf %372, %366 : vector<16x128xf32>
    %c0_122 = arith.constant 0 : index
    %c0_123 = arith.constant 0 : index
    %374 = vector.load %arg22[%c0_122, %c0_123] : memref<64x128xf32, #tpu.memory_space<vmem>>, vector<64x128xf32>
    %cst_124 = arith.constant dense<0.000000e+00> : vector<16x64xf32>
    %375 = tpu.matmul %373, %374, %cst_124 {dimension_numbers = #tpu.dot_dimension_numbers<[1], [1], [0], [0], [0, 0, 1, 0], [], []>} : vector<16x128xf32>, vector<64x128xf32>, vector<16x64xf32> -> vector<16x64xf32>
    %376 = arith.addf %349, %375 : vector<16x64xf32>
    %c0_125 = arith.constant 0 : index
    %c0_126 = arith.constant 0 : index
    %377 = vector.load %arg6[%c0_125, %c0_126] : memref<1x64xf32, #tpu.memory_space<vmem>>, vector<1x64xf32>
    %378 = arith.mulf %376, %376 : vector<16x64xf32>
    %cst_127 = arith.constant dense<0.000000e+00> : vector<16xf32>
    %379 = vector.multi_reduction <add>, %378, %cst_127 [1] : vector<16x64xf32> to vector<16xf32>
    %380 = vector.shape_cast %379 : vector<16xf32> to vector<16x1xf32>
    %cst_128 = arith.constant 6.400000e+01 : f32
    %381 = vector.broadcast %cst_128 : f32 to vector<16x1xf32>
    %382 = arith.divf %380, %381 : vector<16x1xf32>
    %cst_129 = arith.constant 9.99999997E-7 : f32
    %383 = vector.broadcast %cst_129 : f32 to vector<16x1xf32>
    %384 = arith.addf %382, %383 : vector<16x1xf32>
    %385 = math.rsqrt %384 : vector<16x1xf32>
    %386 = vector.broadcast %385 : vector<16x1xf32> to vector<16x64xf32>
    %387 = arith.mulf %376, %386 : vector<16x64xf32>
    %388 = vector.broadcast %377 : vector<1x64xf32> to vector<16x64xf32>
    %389 = arith.mulf %387, %388 : vector<16x64xf32>
    %cst_130 = arith.constant dense<0.000000e+00> : vector<16x256xf32>
    %390 = tpu.matmul %389, %0, %cst_130 {dimension_numbers = #tpu.dot_dimension_numbers<[1], [1], [0], [0], [0, 0, 1, 0], [], []>} : vector<16x64xf32>, vector<256x64xf32>, vector<16x256xf32> -> vector<16x256xf32>
    %c0_131 = arith.constant 0 : index
    %c0_132 = arith.constant 0 : index
    %391 = vector.load %arg25[%c0_131, %c0_132] : memref<16x256xf32, #tpu.memory_space<vmem>>, vector<16x256xf32>
    tpu.vector_store %arg25[%c0_131, %c0_132], %390 {strides = array<i32>} : memref<16x256xf32, #tpu.memory_space<vmem>>, vector<16x256xf32>,
    return
  }
}

</mosaic_0001>

<llo_original>
// kernel: forward.1
$region0: #{forward.1}
  #allocation0 [shape = 'u32[]', space=smem, size = 0x4, offset = 0x4, fixed_abs, tag = 'smem constant byte address 0x4 - core index']
  #allocation1 [shape = 'u32[72,128]{1,0:T(1,128)}', space=vmem, size = 0x9000, scoped, tag = 'internal scratch']
  %s0 = inlined_call_operand.smem [shape: u32[30], index: -1, kind: input, shape index: {}]
  %s1 = sld [smem:[%s0]]
  %s2 = scalar_lea.smem %s0, 1
  %s3 = sld [smem:[%s2]]
  %s4 = scalar_lea.smem %s0, 2
  %s5 = sld [smem:[%s4]]
  %s6 = scalar_lea.smem %s0, 3
  %s7 = sld [smem:[%s6]]
  %s8 = scalar_lea.smem %s0, 4
  %s9 = sld [smem:[%s8]]
  %s10 = scalar_lea.smem %s0, 5
  %s11 = sld [smem:[%s10]]
  %s12 = scalar_lea.smem %s0, 6
  %s13 = sld [smem:[%s12]]
  %s14 = scalar_lea.smem %s0, 7
  %s15 = sld [smem:[%s14]]
  %s16 = scalar_lea.smem %s0, 8
  %s17 = sld [smem:[%s16]]
  %s18 = scalar_lea.smem %s0, 9
  %s19 = sld [smem:[%s18]]
  %s20 = scalar_lea.smem %s0, 10
  %s21 = sld [smem:[%s20]]
  %s22 = scalar_lea.smem %s0, 11
  %s23 = sld [smem:[%s22]]
  %s24 = scalar_lea.smem %s0, 12
  %s25 = sld [smem:[%s24]]
  %s26 = scalar_lea.smem %s0, 13
  %s27 = sld [smem:[%s26]]
  %s28 = scalar_lea.smem %s0, 14
  %s29 = sld [smem:[%s28]]
  %s30 = scalar_lea.smem %s0, 15
  %s31 = sld [smem:[%s30]]
  %s32 = scalar_lea.smem %s0, 16
  %s33 = sld [smem:[%s32]]
  %s34 = scalar_lea.smem %s0, 17
  %s35 = sld [smem:[%s34]]
  %s36 = scalar_lea.smem %s0, 18
  %s37 = sld [smem:[%s36]]
  %s38 = scalar_lea.smem %s0, 19
  %s39 = sld [smem:[%s38]]
  %s40 = scalar_lea.smem %s0, 20
  %s41 = sld [smem:[%s40]]
  %s42 = scalar_lea.smem %s0, 21
  %s43 = sld [smem:[%s42]]
  %s44 = scalar_lea.smem %s0, 22
  %s45 = sld [smem:[%s44]]
  %s46 = scalar_lea.smem %s0, 23
  %s47 = sld [smem:[%s46]]
  %s48 = scalar_lea.smem %s0, 24
  %s49 = sld [smem:[%s48]]
  %s50 = scalar_lea.smem %s0, 25
  %s51 = sld [smem:[%s50]]
  %s52 = scalar_lea.smem %s0, 26
  %s53 = sld [smem:[%s52]]
  %s54 = scalar_lea.smem %s0, 27
  %s55 = sld [smem:[%s54]]
  %s56 = scalar_lea.smem %s0, 28
  %s57 = sld [smem:[%s56]]
  %s58 = scalar_lea.smem %s0, 29
  %s59 = sld [smem:[%s58]]
  %60 = xla_tuple %s51, %s53, %s55, %s57, %s59
  %s61 = sld [smem:[#allocation0]]
  $region142: #{forward.1} parent=0
    _
  %s63 = ssub.s32 1, %s61
  %s64 = scalar_select 0, %s63, %s61
  $region1: #{forward.1} parent=0
    #allocation2 [shape = 'u8[16384]{0}', space=vmem, size = 0x4000, scoped, tag = 'output window, operand 0, single buffered']
    #allocation3 [shape = 's32[1]{0}', space=sflag, size = 0x4, scoped, tag = 'scoped memory for forward.1']
    %65 = vsyncpa [#allocation3], 0
    // Predicated region
    $region2: #{forward.1} parent=1 // pred_check
      _
    $region3: #{forward.1} parent=1 // pred_check_branch
      %67 = sbr.rel (0) target = $region5
    $region4: #{forward.1} parent=1 // pred_region
      _
    $region5: #{forward.1} parent=1 // pred_fallthru
      _
    // Predicated region
    $region6: #{forward.1} parent=1 // pred_check
      _
    $region7: #{forward.1} parent=1 // pred_check_branch
      %69 = sbr.rel (0) target = $region9
    $region8: #{forward.1} parent=1 // pred_region
      _
    $region9: #{forward.1} parent=1 // pred_fallthru
      _
    // Predicated region
    $region10: #{forward.1} parent=1 // pred_check
      _
    $region11: #{forward.1} parent=1 // pred_check_branch
      %71 = sbr.rel (0) target = $region13
    $region12: #{forward.1} parent=1 // pred_region
      _
    $region13: #{forward.1} parent=1 // pred_fallthru
      _
    // Predicated region
    $region14: #{forward.1} parent=1 // pred_check
      _
    $region15: #{forward.1} parent=1 // pred_check_branch
      %73 = sbr.rel (0) target = $region17
    $region16: #{forward.1} parent=1 // pred_region
      _
    $region17: #{forward.1} parent=1 // pred_fallthru
      _
    // Predicated region
    $region18: #{forward.1} parent=1 // pred_check
      _
    $region19: #{forward.1} parent=1 // pred_check_branch
      %75 = sbr.rel (0) target = $region21
    $region20: #{forward.1} parent=1 // pred_region
      _
    $region21: #{forward.1} parent=1 // pred_fallthru
      _
    // Predicated region
    $region22: #{forward.1} parent=1 // pred_check
      _
    $region23: #{forward.1} parent=1 // pred_check_branch
      %77 = sbr.rel (0) target = $region25
    $region24: #{forward.1} parent=1 // pred_region
      _
    $region25: #{forward.1} parent=1 // pred_fallthru
      _
    // Predicated region
    $region26: #{forward.1} parent=1 // pred_check
      _
    $region27: #{forward.1} parent=1 // pred_check_branch
      %79 = sbr.rel (0) target = $region29
    $region28: #{forward.1} parent=1 // pred_region
      _
    $region29: #{forward.1} parent=1 // pred_fallthru
      _
    // Predicated region
    $region30: #{forward.1} parent=1 // pred_check
      _
    $region31: #{forward.1} parent=1 // pred_check_branch
      %81 = sbr.rel (0) target = $region33
    $region32: #{forward.1} parent=1 // pred_region
      _
    $region33: #{forward.1} parent=1 // pred_fallthru
      _
    // Predicated region
    $region34: #{forward.1} parent=1 // pred_check
      _
    $region35: #{forward.1} parent=1 // pred_check_branch
      %83 = sbr.rel (0) target = $region37
    $region36: #{forward.1} parent=1 // pred_region
      _
    $region37: #{forward.1} parent=1 // pred_fallthru
      _
    // Predicated region
    $region38: #{forward.1} parent=1 // pred_check
      _
    $region39: #{forward.1} parent=1 // pred_check_branch
      %85 = sbr.rel (0) target = $region41
    $region40: #{forward.1} parent=1 // pred_region
      _
    $region41: #{forward.1} parent=1 // pred_fallthru
      _
    // Predicated region
    $region42: #{forward.1} parent=1 // pred_check
      _
    $region43: #{forward.1} parent=1 // pred_check_branch
      %87 = sbr.rel (0) target = $region45
    $region44: #{forward.1} parent=1 // pred_region
      _
    $region45: #{forward.1} parent=1 // pred_fallthru
      _
    // Predicated region
    $region46: #{forward.1} parent=1 // pred_check
      _
    $region47: #{forward.1} parent=1 // pred_check_branch
      %89 = sbr.rel (0) target = $region49
    $region48: #{forward.1} parent=1 // pred_region
      _
    $region49: #{forward.1} parent=1 // pred_fallthru
      _
    // Predicated region
    $region50: #{forward.1} parent=1 // pred_check
      _
    $region51: #{forward.1} parent=1 // pred_check_branch
      %91 = sbr.rel (0) target = $region53
    $region52: #{forward.1} parent=1 // pred_region
      _
    $region53: #{forward.1} parent=1 // pred_fallthru
      _
    // Predicated region
    $region54: #{forward.1} parent=1 // pred_check
      _
    $region55: #{forward.1} parent=1 // pred_check_branch
      %93 = sbr.rel (0) target = $region57
    $region56: #{forward.1} parent=1 // pred_region
      _
    $region57: #{forward.1} parent=1 // pred_fallthru
      _
    // Predicated region
    $region58: #{forward.1} parent=1 // pred_check
      _
    $region59: #{forward.1} parent=1 // pred_check_branch
      %95 = sbr.rel (0) target = $region61
    $region60: #{forward.1} parent=1 // pred_region
      _
    $region61: #{forward.1} parent=1 // pred_fallthru
      _
    // Predicated region
    $region62: #{forward.1} parent=1 // pred_check
      _
    $region63: #{forward.1} parent=1 // pred_check_branch
      %97 = sbr.rel (0) target = $region65
    $region64: #{forward.1} parent=1 // pred_region
      _
    $region65: #{forward.1} parent=1 // pred_fallthru
      _
    // Predicated region
    $region66: #{forward.1} parent=1 // pred_check
      _
    $region67: #{forward.1} parent=1 // pred_check_branch
      %99 = sbr.rel (0) target = $region69
    $region68: #{forward.1} parent=1 // pred_region
      _
    $region69: #{forward.1} parent=1 // pred_fallthru
      _
    // Predicated region
    $region70: #{forward.1} parent=1 // pred_check
      _
    $region71: #{forward.1} parent=1 // pred_check_branch
      %101 = sbr.rel (0) target = $region73
    $region72: #{forward.1} parent=1 // pred_region
      _
    $region73: #{forward.1} parent=1 // pred_fallthru
      _
    // Predicated region
    $region74: #{forward.1} parent=1 // pred_check
      _
    $region75: #{forward.1} parent=1 // pred_check_branch
      %103 = sbr.rel (0) target = $region77
    $region76: #{forward.1} parent=1 // pred_region
      _
    $region77: #{forward.1} parent=1 // pred_fallthru
      _
    // Predicated region
    $region78: #{forward.1} parent=1 // pred_check
      _
    $region79: #{forward.1} parent=1 // pred_check_branch
      %105 = sbr.rel (0) target = $region81
    $region80: #{forward.1} parent=1 // pred_region
      _
    $region81: #{forward.1} parent=1 // pred_fallthru
      _
    // Predicated region
    $region82: #{forward.1} parent=1 // pred_check
      _
    $region83: #{forward.1} parent=1 // pred_check_branch
      %107 = sbr.rel (0) target = $region85
    $region84: #{forward.1} parent=1 // pred_region
      _
    $region85: #{forward.1} parent=1 // pred_fallthru
      _
    // Predicated region
    $region86: #{forward.1} parent=1 // pred_check
      _
    $region87: #{forward.1} parent=1 // pred_check_branch
      %109 = sbr.rel (0) target = $region89
    $region88: #{forward.1} parent=1 // pred_region
      _
    $region89: #{forward.1} parent=1 // pred_fallthru
      _
    // Predicated region
    $region90: #{forward.1} parent=1 // pred_check
      _
    $region91: #{forward.1} parent=1 // pred_check_branch
      %111 = sbr.rel (0) target = $region93
    $region92: #{forward.1} parent=1 // pred_region
      _
    $region93: #{forward.1} parent=1 // pred_fallthru
      _
    // Predicated region
    $region94: #{forward.1} parent=1 // pred_check
      _
    $region95: #{forward.1} parent=1 // pred_check_branch
      %113 = sbr.rel (0) target = $region97
    $region96: #{forward.1} parent=1 // pred_region
      _
    $region97: #{forward.1} parent=1 // pred_fallthru
      _
    // Predicated region
    $region98: #{forward.1} parent=1 // pred_check
      _
    $region99: #{forward.1} parent=1 // pred_check_branch
      %115 = sbr.rel (0) target = $region101
    $region100: #{forward.1} parent=1 // pred_region
      _
    $region101: #{forward.1} parent=1 // pred_fallthru
      _
    %v116 = vld [vmem:[%s11] sm:$0xff]
    %v117 = vld [vmem:[%s11 + $0x8] sm:$0xff]
    %v118 = vld [vmem:[%s11 + $0x10] sm:$0xff]
    %v119 = vld [vmem:[%s11 + $0x18] sm:$0xff]
    %v120 = vld [vmem:[%s11 + $0x20] sm:$0xff]
    %v121 = vld [vmem:[%s11 + $0x28] sm:$0xff]
    %v122 = vld [vmem:[%s11 + $0x30] sm:$0xff]
    %v123 = vld [vmem:[%s11 + $0x38] sm:$0xff]
    %v124 = vld [vmem:[%s11 + $0x40] sm:$0xff]
    %v125 = vld [vmem:[%s11 + $0x48] sm:$0xff]
    %v126 = vld [vmem:[%s11 + $0x50] sm:$0xff]
    %v127 = vld [vmem:[%s11 + $0x58] sm:$0xff]
    %v128 = vld [vmem:[%s11 + $0x60] sm:$0xff]
    %v129 = vld [vmem:[%s11 + $0x68] sm:$0xff]
    %v130 = vld [vmem:[%s11 + $0x70] sm:$0xff]
    %v131 = vld [vmem:[%s11 + $0x78] sm:$0xff]
    %v132 = vld [vmem:[%s11 + $0x80] sm:$0xff]
    %v133 = vld [vmem:[%s11 + $0x88] sm:$0xff]
    %v134 = vld [vmem:[%s11 + $0x90] sm:$0xff]
    %v135 = vld [vmem:[%s11 + $0x98] sm:$0xff]
    %v136 = vld [vmem:[%s11 + $0xa0] sm:$0xff]
    %v137 = vld [vmem:[%s11 + $0xa8] sm:$0xff]
    %v138 = vld [vmem:[%s11 + $0xb0] sm:$0xff]
    %v139 = vld [vmem:[%s11 + $0xb8] sm:$0xff]
    %v140 = vld [vmem:[%s11 + $0xc0] sm:$0xff]
    %v141 = vld [vmem:[%s11 + $0xc8] sm:$0xff]
    %v142 = vld [vmem:[%s11 + $0xd0] sm:$0xff]
    %v143 = vld [vmem:[%s11 + $0xd8] sm:$0xff]
    %v144 = vld [vmem:[%s11 + $0xe0] sm:$0xff]
    %v145 = vld [vmem:[%s11 + $0xe8] sm:$0xff]
    %v146 = vld [vmem:[%s11 + $0xf0] sm:$0xff]
    %v147 = vld [vmem:[%s11 + $0xf8] sm:$0xff]
    %v148 = vlaneseq
    %v149 = vand.u32 %v148, 127
    %v150 = vadd.s32 %v149, 128
    %v151 = vld [vmem:[%s1] sm:$0xff]
    %v152 = vld [vmem:[%s1 + $0x8] sm:$0xff]
    %153 = vset.pattern.permute.xlu0 0
    %154 = vperm.xlu0 %153, %v151
    %v155 = vpop.permute.xlu0 %154
    %156 = vset.pattern.permute.xlu0 0
    %157 = vperm.xlu0 %156, %v152
    %v158 = vpop.permute.xlu0 %157
    %vm159 = vcmp.eq.s32.totalorder %v149, %v155
    %vm160 = vcmp.eq.s32.totalorder %v150, %v155
    %vm161 = vcmp.eq.s32.totalorder %v149, %v158
    %vm162 = vcmp.eq.s32.totalorder %v150, %v158
    %v163 = vsel %vm159, 1, 0
    %v164 = vsel %vm160, 1, 0
    %v165 = vsel %vm161, 1, 0
    %v166 = vsel %vm162, 1, 0
    %v167 = vcvt.s32.f32 %v163
    %v168 = vcvt.s32.f32 %v164
    %v169 = vcvt.s32.f32 %v165
    %v170 = vcvt.s32.f32 %v166
    %171 = vmatpush.msra.mxu0 %v131
    %172 = vmatpush.msra.mxu0 %v130
    %173 = vmatpush.msra.mxu0 %v129
    %174 = vmatpush.msra.mxu0 %v128
    %175 = vmatpush.msra.mxu0 %v127
    %176 = vmatpush.msra.mxu0 %v126
    %177 = vmatpush.msra.mxu0 %v125
    %178 = vmatpush.msra.mxu0 %v124
    %179 = vmatpush.msra.mxu0 %v123
    %180 = vmatpush.msra.mxu0 %v122
    %181 = vmatpush.msra.mxu0 %v121
    %182 = vmatpush.msra.mxu0 %v120
    %183 = vmatpush.msra.mxu0 %v119
    %184 = vmatpush.msra.mxu0 %v118
    %185 = vmatpush.msra.mxu0 %v117
    %186 = vmatpush.msra.mxu0 %v116
    %187 = vmatmul.f32.gmra.mxu0 %v167
    %v188 = vpop.f32.mrf.mxu0
    %v189 = vadd.f32 0.0, %v188
    %190 = vmatmul.f32.gmra.mxu0 %v169
    %v191 = vpop.f32.mrf.mxu0
    %v192 = vadd.f32 0.0, %v191
    %193 = vdwg.mxu0
    %194 = vmatpush.msra.mxu0 %v147
    %195 = vmatpush.msra.mxu0 %v146
    %196 = vmatpush.msra.mxu0 %v145
    %197 = vmatpush.msra.mxu0 %v144
    %198 = vmatpush.msra.mxu0 %v143
    %199 = vmatpush.msra.mxu0 %v142
    %200 = vmatpush.msra.mxu0 %v141
    %201 = vmatpush.msra.mxu0 %v140
    %202 = vmatpush.msra.mxu0 %v139
    %203 = vmatpush.msra.mxu0 %v138
    %204 = vmatpush.msra.mxu0 %v137
    %205 = vmatpush.msra.mxu0 %v136
    %206 = vmatpush.msra.mxu0 %v135
    %207 = vmatpush.msra.mxu0 %v134
    %208 = vmatpush.msra.mxu0 %v133
    %209 = vmatpush.msra.mxu0 %v132
    %210 = vmatmul.f32.gmra.mxu0 %v168
    %v211 = vpop.f32.mrf.mxu0
    %v212 = vadd.f32 %v189, %v211
    %213 = vmatmul.f32.gmra.mxu0 %v170
    %v214 = vpop.f32.mrf.mxu0
    %v215 = vadd.f32 %v192, %v214
    %216 = vdwg.mxu0
    %v217 = vld [vmem:[%s7] sm:$0xff]
    %v218 = vld [vmem:[%s7 + $0x8] sm:$0xff]
    %v219 = vld [vmem:[%s9] sm:$0xff]
    %v220 = vld [vmem:[%s9 + $0x8] sm:$0xff]
    %v221 = vld [vmem:[%s3] sm:$0xff]
    %222 = vset.pattern.permute.xlu0 0
    %223 = vperm.xlu0 %222, %v221
    %v224 = vpop.permute.xlu0 %223
    %vm225 = vcmp.le.s32.totalorder %v149, %v224
    %v226 = vsel %vm225, 0.0, -1e+30
    %v227 = vlaneseq
    %v228 = vshrl.u32 %v227, 7
    %v229 = vadd.s32 %v228, 8
    %v230 = vld [vmem:[%s5] sm:$0x1]
    %v231 = vperm.slane %v230, 0
    %vm232 = vcmp.eq.s32.totalorder %v228, %v231
    %vm233 = vcmp.eq.s32.totalorder %v229, %v231
    %v234 = vsel %vm232, 1, 0
    %v235 = vsel %vm233, 1, 0
    %v236 = vcvt.s32.f32 %v234
    %v237 = vcvt.s32.f32 %v235
    %vm238 = vcmask 64512
    %v239 = vsel %vm238, %v236, 0.0
    %240 = vadd.xlane.f32.xlu0 %v239
    %v241 = vpop.xlane.xlu0 %240
    %v242 = vsel %vm238, %v237, 0.0
    %243 = vadd.xlane.f32.xlu0 %v242
    %v244 = vpop.xlane.xlu0 %243
    %v245 = vsub.f32 1.0, %v241
    %v246 = vsub.f32 1.0, %v244
    %v247 = vld [vmem:[%s15] sm:$0x1]
    %v248 = vmul.f32 %v212, %v212
    %v249 = vmul.f32 %v215, %v215
    %vm250 = vcmask 523264
    %v251 = vsel %vm250, %v248, 0.0
    %252 = vadd.xlane.f32.xlu0 %v251
    %v253 = vpop.xlane.xlu0 %252
    %v254 = vsel %vm250, %v249, 0.0
    %255 = vadd.xlane.f32.xlu0 %v254
    %v256 = vpop.xlane.xlu0 %255
    %v257 = vrcp.pop 64.0
    %v258 = vmul.f32 64.0, %v257
    %v259 = vsub.f32 1.0, %v258
    %v260 = vmul.f32 %v257, %v259
    %v261 = vadd.f32 %v257, %v260
    %vm262 = vweird.f32 %v257
    %v263 = vsel %vm262, %v257, %v261
    %v264 = vmul.f32 %v253, %v263
    %v265 = vmul.f32 %v256, %v263
    %v266 = vadd.f32 %v264, 1e-06
    %v267 = vadd.f32 %v265, 1e-06
    %v268 = vrsqrt.pop %v266
    %v269 = vmul.f32 %v268, %v266
    %v270 = vmul.f32 %v269, %v268
    %v271 = vmul.f32 0.5, %v270
    %v272 = vsub.f32 1.5, %v271
    %v273 = vmul.f32 %v268, %v272
    %vm274 = vweird.f32 %v266
    %vm275 = vweird.f32 %v268
    %vm276 = vmor %vm274, %vm275
    %v277 = vsel %vm276, %v268, %v273
    %v278 = vrsqrt.pop %v267
    %v279 = vmul.f32 %v278, %v267
    %v280 = vmul.f32 %v279, %v278
    %v281 = vmul.f32 0.5, %v280
    %v282 = vsub.f32 1.5, %v281
    %v283 = vmul.f32 %v278, %v282
    %vm284 = vweird.f32 %v267
    %vm285 = vweird.f32 %v278
    %vm286 = vmor %vm284, %vm285
    %v287 = vsel %vm286, %v278, %v283
    %v288 = vmul.f32 %v212, %v277
    %v289 = vmul.f32 %v215, %v287
    %v291 = vperm.slane %v247, 0
    %v293 = vmul.f32 %v288, %v291
    %v294 = vmul.f32 %v289, %v291
    %v295 = vld [vmem:[%s17] sm:$0xff]
    %v296 = vld [vmem:[%s17 + $0x8] sm:$0xff]
    %v297 = vld [vmem:[%s17 + $0x10] sm:$0xff]
    %v298 = vld [vmem:[%s17 + $0x18] sm:$0xff]
    %v299 = vld [vmem:[%s17 + $0x20] sm:$0xff]
    %v300 = vld [vmem:[%s17 + $0x28] sm:$0xff]
    %v301 = vld [vmem:[%s17 + $0x30] sm:$0xff]
    %v302 = vld [vmem:[%s17 + $0x38] sm:$0xff]
    %v303 = vld [vmem:[%s17 + $0x40] sm:$0xff]
    %v304 = vld [vmem:[%s17 + $0x48] sm:$0xff]
    %v305 = vld [vmem:[%s17 + $0x50] sm:$0xff]
    %v306 = vld [vmem:[%s17 + $0x58] sm:$0xff]
    %v307 = vld [vmem:[%s17 + $0x60] sm:$0xff]
    %v308 = vld [vmem:[%s17 + $0x68] sm:$0xff]
    %v309 = vld [vmem:[%s17 + $0x70] sm:$0xff]
    %v310 = vld [vmem:[%s17 + $0x78] sm:$0xff]
    %v311 = vld [vmem:[%s17 + $0x80] sm:$0xff]
    %v312 = vld [vmem:[%s17 + $0x88] sm:$0xff]
    %v313 = vld [vmem:[%s17 + $0x90] sm:$0xff]
    %v314 = vld [vmem:[%s17 + $0x98] sm:$0xff]
    %v315 = vld [vmem:[%s17 + $0xa0] sm:$0xff]
    %v316 = vld [vmem:[%s17 + $0xa8] sm:$0xff]
    %v317 = vld [vmem:[%s17 + $0xb0] sm:$0xff]
    %v318 = vld [vmem:[%s17 + $0xb8] sm:$0xff]
    %v320 = vsel %vm250, %v293, 0
    %v323 = vsel %vm250, %v294, 0
    %v326 = vsel %vm250, %v295, 0
    %v329 = vsel %vm250, %v296, 0
    %v332 = vsel %vm250, %v297, 0
    %v335 = vsel %vm250, %v298, 0
    %v338 = vsel %vm250, %v299, 0
    %v341 = vsel %vm250, %v300, 0
    %v344 = vsel %vm250, %v301, 0
    %v347 = vsel %vm250, %v302, 0
    %v350 = vsel %vm250, %v303, 0
    %v353 = vsel %vm250, %v304, 0
    %v356 = vsel %vm250, %v305, 0
    %v359 = vsel %vm250, %v306, 0
    %v362 = vsel %vm250, %v307, 0
    %v365 = vsel %vm250, %v308, 0
    %v368 = vsel %vm250, %v309, 0
    %v371 = vsel %vm250, %v310, 0
    %v374 = vsel %vm250, %v311, 0
    %v377 = vsel %vm250, %v312, 0
    %v380 = vsel %vm250, %v313, 0
    %v383 = vsel %vm250, %v314, 0
    %v386 = vsel %vm250, %v315, 0
    %v389 = vsel %vm250, %v316, 0
    %v392 = vsel %vm250, %v317, 0
    %v395 = vsel %vm250, %v318, 0
    %397 = vmatpush.xpose.msra.mxu0 %v371
    %398 = vmatpush.xpose.msra.mxu0 %v368
    %399 = vmatpush.xpose.msra.mxu0 %v365
    %400 = vmatpush.xpose.msra.mxu0 %v362
    %401 = vmatpush.xpose.msra.mxu0 %v359
    %402 = vmatpush.xpose.msra.mxu0 %v356
    %403 = vmatpush.xpose.msra.mxu0 %v353
    %404 = vmatpush.xpose.msra.mxu0 %v350
    %405 = vmatpush.xpose.msra.mxu0 %v347
    %406 = vmatpush.xpose.msra.mxu0 %v344
    %407 = vmatpush.xpose.msra.mxu0 %v341
    %408 = vmatpush.xpose.msra.mxu0 %v338
    %409 = vmatpush.xpose.msra.mxu0 %v335
    %410 = vmatpush.xpose.msra.mxu0 %v332
    %411 = vmatpush.xpose.msra.mxu0 %v329
    %412 = vmatpush.xpose.msra.mxu0 %v326
    %413 = vmatmul.f32.gmra.mxu0 %v320
    %v414 = vpop.f32.mrf.mxu0
    %v415 = vadd.f32 0.0, %v414
    %416 = vmatmul.f32.gmra.mxu0 %v323
    %v417 = vpop.f32.mrf.mxu0
    %v418 = vadd.f32 0.0, %v417
    %419 = vdwg.mxu0
    %420 = vmatpush.xpose.msra.mxu0 0.0
    %421 = vmatpush.xpose.msra.mxu0 0.0
    %422 = vmatpush.xpose.msra.mxu0 0.0
    %423 = vmatpush.xpose.msra.mxu0 0.0
    %424 = vmatpush.xpose.msra.mxu0 0.0
    %425 = vmatpush.xpose.msra.mxu0 0.0
    %426 = vmatpush.xpose.msra.mxu0 0.0
    %427 = vmatpush.xpose.msra.mxu0 0.0
    %428 = vmatpush.xpose.msra.mxu0 %v395
    %429 = vmatpush.xpose.msra.mxu0 %v392
    %430 = vmatpush.xpose.msra.mxu0 %v389
    %431 = vmatpush.xpose.msra.mxu0 %v386
    %432 = vmatpush.xpose.msra.mxu0 %v383
    %433 = vmatpush.xpose.msra.mxu0 %v380
    %434 = vmatpush.xpose.msra.mxu0 %v377
    %435 = vmatpush.xpose.msra.mxu0 %v374
    %436 = vmatmul.f32.gmra.mxu0 %v320
    %v437 = vpop.f32.mrf.mxu0
    %v438 = vadd.f32 0.0, %v437
    %439 = vmatmul.f32.gmra.mxu0 %v323
    %v440 = vpop.f32.mrf.mxu0
    %v441 = vadd.f32 0.0, %v440
    %442 = vdwg.mxu0
    %v443 = vmul.f32 %v415, %v217
    %v444 = vmul.f32 %v418, %v218
    %447 = vrot.lane.b32.xlu0 %v219, 16
    %v448 = vpop.permute.xlu0 %447
    %449 = vrot.lane.b32.xlu0 %v220, 16
    %v450 = vpop.permute.xlu0 %449
    %v453 = vmul.f32 %v415, %v448
    %v454 = vmul.f32 %v418, %v450
    %457 = vrot.lane.b32.xlu0 %v453, 112
    %v458 = vpop.permute.xlu0 %457
    %459 = vrot.lane.b32.xlu0 %v454, 112
    %v460 = vpop.permute.xlu0 %459
    %v463 = vsub.f32 %v443, %v458
    %v464 = vsub.f32 %v444, %v460
    %467 = vrot.lane.b32.xlu0 %v217, 16
    %v468 = vpop.permute.xlu0 %467
    %469 = vrot.lane.b32.xlu0 %v218, 16
    %v470 = vpop.permute.xlu0 %469
    %v473 = vmul.f32 %v415, %v468
    %v474 = vmul.f32 %v418, %v470
    %v475 = vmul.f32 %v415, %v219
    %v476 = vmul.f32 %v418, %v220
    %479 = vrot.lane.b32.xlu0 %v475, 16
    %v480 = vpop.permute.xlu0 %479
    %481 = vrot.lane.b32.xlu0 %v476, 16
    %v482 = vpop.permute.xlu0 %481
    %v485 = vadd.f32 %v473, %v480
    %v486 = vadd.f32 %v474, %v482
    %vm487 = vcmask 130048
    %v488 = vsel %vm487, %v463, %v485
    %v489 = vsel %vm487, %v464, %v486
    %490 = vrot.lane.b32.xlu0 %v217, 32
    %v491 = vpop.permute.xlu0 %490
    %492 = vrot.lane.b32.xlu0 %v218, 32
    %v493 = vpop.permute.xlu0 %492
    %v496 = vmul.f32 %v415, %v491
    %v497 = vmul.f32 %v418, %v493
    %498 = vrot.lane.b32.xlu0 %v219, 48
    %v499 = vpop.permute.xlu0 %498
    %500 = vrot.lane.b32.xlu0 %v220, 48
    %v501 = vpop.permute.xlu0 %500
    %v504 = vmul.f32 %v415, %v499
    %v505 = vmul.f32 %v418, %v501
    %508 = vrot.lane.b32.xlu0 %v504, 112
    %v509 = vpop.permute.xlu0 %508
    %510 = vrot.lane.b32.xlu0 %v505, 112
    %v511 = vpop.permute.xlu0 %510
    %v514 = vsub.f32 %v496, %v509
    %v515 = vsub.f32 %v497, %v511
    %516 = vrot.lane.b32.xlu0 %v217, 48
    %v517 = vpop.permute.xlu0 %516
    %518 = vrot.lane.b32.xlu0 %v218, 48
    %v519 = vpop.permute.xlu0 %518
    %v522 = vmul.f32 %v415, %v517
    %v523 = vmul.f32 %v418, %v519
    %524 = vrot.lane.b32.xlu0 %v219, 32
    %v525 = vpop.permute.xlu0 %524
    %526 = vrot.lane.b32.xlu0 %v220, 32
    %v527 = vpop.permute.xlu0 %526
    %v530 = vmul.f32 %v415, %v525
    %v531 = vmul.f32 %v418, %v527
    %534 = vrot.lane.b32.xlu0 %v530, 16
    %v535 = vpop.permute.xlu0 %534
    %536 = vrot.lane.b32.xlu0 %v531, 16
    %v537 = vpop.permute.xlu0 %536
    %v540 = vadd.f32 %v522, %v535
    %v541 = vadd.f32 %v523, %v537
    %544 = vrot.lane.b32.xlu0 %v514, 96
    %v545 = vpop.permute.xlu0 %544
    %546 = vrot.lane.b32.xlu0 %v515, 96
    %v547 = vpop.permute.xlu0 %546
    %552 = vrot.lane.b32.xlu0 %v540, 96
    %v553 = vpop.permute.xlu0 %552
    %554 = vrot.lane.b32.xlu0 %v541, 96
    %v555 = vpop.permute.xlu0 %554
    %v558 = vsel %vm487, %v545, %v553
    %v559 = vsel %vm487, %v547, %v555
    %562 = vrot.lane.b32.xlu0 %v558, 32
    %v563 = vpop.permute.xlu0 %562
    %564 = vrot.lane.b32.xlu0 %v559, 32
    %v565 = vpop.permute.xlu0 %564
    %vm568 = vcmask 261120
    %v569 = vsel %vm568, %v488, %v563
    %v570 = vsel %vm568, %v489, %v565
    %v571 = vmul.f32 %v569, 0.17677669
    %v572 = vmul.f32 %v570, 0.17677669
    %573 = vrot.lane.b32.xlu0 %v217, 64
    %v574 = vpop.permute.xlu0 %573
    %575 = vrot.lane.b32.xlu0 %v218, 64
    %v576 = vpop.permute.xlu0 %575
    %v579 = vmul.f32 %v415, %v574
    %v580 = vmul.f32 %v418, %v576
    %581 = vrot.lane.b32.xlu0 %v219, 80
    %v582 = vpop.permute.xlu0 %581
    %583 = vrot.lane.b32.xlu0 %v220, 80
    %v584 = vpop.permute.xlu0 %583
    %v587 = vmul.f32 %v415, %v582
    %v588 = vmul.f32 %v418, %v584
    %591 = vrot.lane.b32.xlu0 %v587, 112
    %v592 = vpop.permute.xlu0 %591
    %593 = vrot.lane.b32.xlu0 %v588, 112
    %v594 = vpop.permute.xlu0 %593
    %v597 = vsub.f32 %v579, %v592
    %v598 = vsub.f32 %v580, %v594
    %599 = vrot.lane.b32.xlu0 %v217, 80
    %v600 = vpop.permute.xlu0 %599
    %601 = vrot.lane.b32.xlu0 %v218, 80
    %v602 = vpop.permute.xlu0 %601
    %v605 = vmul.f32 %v415, %v600
    %v606 = vmul.f32 %v418, %v602
    %607 = vrot.lane.b32.xlu0 %v219, 64
    %v608 = vpop.permute.xlu0 %607
    %609 = vrot.lane.b32.xlu0 %v220, 64
    %v610 = vpop.permute.xlu0 %609
    %v613 = vmul.f32 %v415, %v608
    %v614 = vmul.f32 %v418, %v610
    %617 = vrot.lane.b32.xlu0 %v613, 16
    %v618 = vpop.permute.xlu0 %617
    %619 = vrot.lane.b32.xlu0 %v614, 16
    %v620 = vpop.permute.xlu0 %619
    %v623 = vadd.f32 %v605, %v618
    %v624 = vadd.f32 %v606, %v620
    %627 = vrot.lane.b32.xlu0 %v597, 64
    %v628 = vpop.permute.xlu0 %627
    %629 = vrot.lane.b32.xlu0 %v598, 64
    %v630 = vpop.permute.xlu0 %629
    %635 = vrot.lane.b32.xlu0 %v623, 64
    %v636 = vpop.permute.xlu0 %635
    %637 = vrot.lane.b32.xlu0 %v624, 64
    %v638 = vpop.permute.xlu0 %637
    %v641 = vsel %vm487, %v628, %v636
    %v642 = vsel %vm487, %v630, %v638
    %643 = vrot.lane.b32.xlu0 %v217, 96
    %v644 = vpop.permute.xlu0 %643
    %645 = vrot.lane.b32.xlu0 %v218, 96
    %v646 = vpop.permute.xlu0 %645
    %v649 = vmul.f32 %v415, %v644
    %v650 = vmul.f32 %v418, %v646
    %651 = vrot.lane.b32.xlu0 %v219, 112
    %v652 = vpop.permute.xlu0 %651
    %653 = vrot.lane.b32.xlu0 %v220, 112
    %v654 = vpop.permute.xlu0 %653
    %v657 = vmul.f32 %v415, %v652
    %v658 = vmul.f32 %v418, %v654
    %661 = vrot.lane.b32.xlu0 %v657, 112
    %v662 = vpop.permute.xlu0 %661
    %663 = vrot.lane.b32.xlu0 %v658, 112
    %v664 = vpop.permute.xlu0 %663
    %v667 = vsub.f32 %v649, %v662
    %v668 = vsub.f32 %v650, %v664
    %669 = vrot.lane.b32.xlu0 %v217, 112
    %v670 = vpop.permute.xlu0 %669
    %671 = vrot.lane.b32.xlu0 %v218, 112
    %v672 = vpop.permute.xlu0 %671
    %v675 = vmul.f32 %v415, %v670
    %v676 = vmul.f32 %v418, %v672
    %677 = vrot.lane.b32.xlu0 %v219, 96
    %v678 = vpop.permute.xlu0 %677
    %679 = vrot.lane.b32.xlu0 %v220, 96
    %v680 = vpop.permute.xlu0 %679
    %v683 = vmul.f32 %v415, %v678
    %v684 = vmul.f32 %v418, %v680
    %687 = vrot.lane.b32.xlu0 %v683, 16
    %v688 = vpop.permute.xlu0 %687
    %689 = vrot.lane.b32.xlu0 %v684, 16
    %v690 = vpop.permute.xlu0 %689
    %v693 = vadd.f32 %v675, %v688
    %v694 = vadd.f32 %v676, %v690
    %697 = vrot.lane.b32.xlu0 %v667, 32
    %v698 = vpop.permute.xlu0 %697
    %699 = vrot.lane.b32.xlu0 %v668, 32
    %v700 = vpop.permute.xlu0 %699
    %705 = vrot.lane.b32.xlu0 %v693, 32
    %v706 = vpop.permute.xlu0 %705
    %707 = vrot.lane.b32.xlu0 %v694, 32
    %v708 = vpop.permute.xlu0 %707
    %v711 = vsel %vm487, %v698, %v706
    %v712 = vsel %vm487, %v700, %v708
    %715 = vrot.lane.b32.xlu0 %v711, 32
    %v716 = vpop.permute.xlu0 %715
    %717 = vrot.lane.b32.xlu0 %v712, 32
    %v718 = vpop.permute.xlu0 %717
    %v721 = vsel %vm568, %v641, %v716
    %v722 = vsel %vm568, %v642, %v718
    %v724 = vsel %vm238, %v236, 0
    %v727 = vsel %vm238, %v237, 0
    %729 = vmatpush.msra.mxu0 0.0
    %730 = vmatpush.msra.mxu0 0.0
    %731 = vmatpush.msra.mxu0 0.0
    %732 = vmatpush.msra.mxu0 0.0
    %733 = vmatpush.msra.mxu0 0.0
    %734 = vmatpush.msra.mxu0 0.0
    %735 = vmatpush.msra.mxu0 0.0
    %736 = vmatpush.msra.mxu0 0.0
    %737 = vmatpush.msra.mxu0 0.0
    %738 = vmatpush.msra.mxu0 0.0
    %739 = vmatpush.msra.mxu0 0.0
    %740 = vmatpush.msra.mxu0 0.0
    %741 = vmatpush.msra.mxu0 0.0
    %742 = vmatpush.msra.mxu0 0.0
    %743 = vmatpush.msra.mxu0 0.0
    %744 = vmatpush.msra.mxu0 %v721
    %745 = vmatmul.f32.gmra.mxu0 %v724
    %v746 = vpop.f32.mrf.mxu0
    %v747 = vadd.f32 0.0, %v746
    %748 = vmatmul.f32.gmra.mxu0 %v727
    %v749 = vpop.f32.mrf.mxu0
    %v750 = vadd.f32 0.0, %v749
    %751 = vdwg.mxu0
    %752 = vmatpush.msra.mxu0 0.0
    %753 = vmatpush.msra.mxu0 0.0
    %754 = vmatpush.msra.mxu0 0.0
    %755 = vmatpush.msra.mxu0 0.0
    %756 = vmatpush.msra.mxu0 0.0
    %757 = vmatpush.msra.mxu0 0.0
    %758 = vmatpush.msra.mxu0 0.0
    %759 = vmatpush.msra.mxu0 0.0
    %760 = vmatpush.msra.mxu0 0.0
    %761 = vmatpush.msra.mxu0 0.0
    %762 = vmatpush.msra.mxu0 0.0
    %763 = vmatpush.msra.mxu0 0.0
    %764 = vmatpush.msra.mxu0 0.0
    %765 = vmatpush.msra.mxu0 0.0
    %766 = vmatpush.msra.mxu0 0.0
    %767 = vmatpush.msra.mxu0 %v722
    %768 = vmatmul.f32.gmra.mxu0 %v724
    %v769 = vpop.f32.mrf.mxu0
    %v770 = vadd.f32 0.0, %v769
    %771 = vmatmul.f32.gmra.mxu0 %v727
    %v772 = vpop.f32.mrf.mxu0
    %v773 = vadd.f32 0.0, %v772
    %774 = vdwg.mxu0
    %777 = vrot.lane.b32.xlu0 %v770, 64
    %v778 = vpop.permute.xlu0 %777
    %779 = vrot.lane.b32.xlu0 %v773, 64
    %v780 = vpop.permute.xlu0 %779
    %v783 = vsel %vm250, %v747, %v778
    %v784 = vsel %vm250, %v750, %v780
    %785 = vmatpush.msra.mxu0 0.0
    %786 = vmatpush.msra.mxu0 0.0
    %787 = vmatpush.msra.mxu0 0.0
    %788 = vmatpush.msra.mxu0 0.0
    %789 = vmatpush.msra.mxu0 0.0
    %790 = vmatpush.msra.mxu0 0.0
    %791 = vmatpush.msra.mxu0 0.0
    %792 = vmatpush.msra.mxu0 0.0
    %793 = vmatpush.msra.mxu0 0.0
    %794 = vmatpush.msra.mxu0 0.0
    %795 = vmatpush.msra.mxu0 0.0
    %796 = vmatpush.msra.mxu0 0.0
    %797 = vmatpush.msra.mxu0 0.0
    %798 = vmatpush.msra.mxu0 0.0
    %799 = vmatpush.msra.mxu0 0.0
    %800 = vmatpush.msra.mxu0 %v438
    %801 = vmatmul.f32.gmra.mxu0 %v724
    %v802 = vpop.f32.mrf.mxu0
    %v803 = vadd.f32 0.0, %v802
    %804 = vmatmul.f32.gmra.mxu0 %v727
    %v805 = vpop.f32.mrf.mxu0
    %v806 = vadd.f32 0.0, %v805
    %807 = vdwg.mxu0
    %808 = vmatpush.msra.mxu0 0.0
    %809 = vmatpush.msra.mxu0 0.0
    %810 = vmatpush.msra.mxu0 0.0
    %811 = vmatpush.msra.mxu0 0.0
    %812 = vmatpush.msra.mxu0 0.0
    %813 = vmatpush.msra.mxu0 0.0
    %814 = vmatpush.msra.mxu0 0.0
    %815 = vmatpush.msra.mxu0 0.0
    %816 = vmatpush.msra.mxu0 0.0
    %817 = vmatpush.msra.mxu0 0.0
    %818 = vmatpush.msra.mxu0 0.0
    %819 = vmatpush.msra.mxu0 0.0
    %820 = vmatpush.msra.mxu0 0.0
    %821 = vmatpush.msra.mxu0 0.0
    %822 = vmatpush.msra.mxu0 0.0
    %823 = vmatpush.msra.mxu0 %v441
    %824 = vmatmul.f32.gmra.mxu0 %v724
    %v825 = vpop.f32.mrf.mxu0
    %v826 = vadd.f32 0.0, %v825
    %827 = vmatmul.f32.gmra.mxu0 %v727
    %v828 = vpop.f32.mrf.mxu0
    %v829 = vadd.f32 0.0, %v828
    %830 = vdwg.mxu0
    %833 = vrot.lane.b32.xlu0 %v826, 64
    %v834 = vpop.permute.xlu0 %833
    %835 = vrot.lane.b32.xlu0 %v829, 64
    %v836 = vpop.permute.xlu0 %835
    %v839 = vsel %vm250, %v803, %v834
    %v840 = vsel %vm250, %v806, %v836
    %v841 = vld [vmem:[%s29] sm:$0xff]
    %v842 = vld [vmem:[%s29 + $0x8] sm:$0xff]
    %v843 = vmul.f32 %v841, %v245
    %v844 = vmul.f32 %v842, %v246
    %v845 = vadd.f32 %v843, %v783
    %v846 = vadd.f32 %v844, %v784
    %v847 = vld [vmem:[%s31] sm:$0xff]
    %v848 = vld [vmem:[%s31 + $0x8] sm:$0xff]
    %v849 = vmul.f32 %v847, %v245
    %v850 = vmul.f32 %v848, %v246
    %v851 = vadd.f32 %v849, %v839
    %v852 = vadd.f32 %v850, %v840
    %853 = vst [vmem:[%s53] sm:$0xff] %v845
    %854 = vst [vmem:[%s53 + $0x8] sm:$0xff] %v846
    %855 = vst [vmem:[%s55] sm:$0xff] %v851
    %856 = vst [vmem:[%s55 + $0x8] sm:$0xff] %v852
    %v858 = vsel %vm568, %v571, 0
    %v861 = vsel %vm568, %v845, 0
    %v864 = vsel %vm568, %v846, 0
    %866 = vmatpush.xpose.msra.mxu0 0.0
    %867 = vmatpush.xpose.msra.mxu0 0.0
    %868 = vmatpush.xpose.msra.mxu0 0.0
    %869 = vmatpush.xpose.msra.mxu0 0.0
    %870 = vmatpush.xpose.msra.mxu0 0.0
    %871 = vmatpush.xpose.msra.mxu0 0.0
    %872 = vmatpush.xpose.msra.mxu0 0.0
    %873 = vmatpush.xpose.msra.mxu0 0.0
    %874 = vmatpush.xpose.msra.mxu0 0.0
    %875 = vmatpush.xpose.msra.mxu0 0.0
    %876 = vmatpush.xpose.msra.mxu0 0.0
    %877 = vmatpush.xpose.msra.mxu0 0.0
    %878 = vmatpush.xpose.msra.mxu0 0.0
    %879 = vmatpush.xpose.msra.mxu0 0.0
    %880 = vmatpush.xpose.msra.mxu0 %v864
    %881 = vmatpush.xpose.msra.mxu0 %v861
    %882 = vmatmul.f32.gmra.mxu0 %v858
    %v883 = vpop.f32.mrf.mxu0
    %v884 = vadd.f32 %v226, %v883
    %885 = vdwg.mxu0
    %v886 = vsel %vm487, %v884, -inf
    %887 = vmax.xlane.f32.xlu0 %v886
    %v888 = vpop.xlane.xlu0 %887
    %v889 = vsub.f32 %v884, %v888
    %v890 = vmul.f32 %v889, 1.442695
    %v891 = vpow.pop %v890
    %v892 = vsel %vm487, %v891, 0.0
    %893 = vadd.xlane.f32.xlu0 %v892
    %v894 = vpop.xlane.xlu0 %893
    %v896 = vsel %vm487, %v891, 0
    %898 = vmatpush.msra.mxu0 0.0
    %899 = vmatpush.msra.mxu0 0.0
    %900 = vmatpush.msra.mxu0 0.0
    %901 = vmatpush.msra.mxu0 0.0
    %902 = vmatpush.msra.mxu0 0.0
    %903 = vmatpush.msra.mxu0 0.0
    %904 = vmatpush.msra.mxu0 0.0
    %905 = vmatpush.msra.mxu0 0.0
    %906 = vmatpush.msra.mxu0 0.0
    %907 = vmatpush.msra.mxu0 0.0
    %908 = vmatpush.msra.mxu0 0.0
    %909 = vmatpush.msra.mxu0 0.0
    %910 = vmatpush.msra.mxu0 0.0
    %911 = vmatpush.msra.mxu0 0.0
    %912 = vmatpush.msra.mxu0 %v852
    %913 = vmatpush.msra.mxu0 %v851
    %914 = vmatmul.f32.gmra.mxu0 %v896
    %v915 = vpop.f32.mrf.mxu0
    %v916 = vadd.f32 0.0, %v915
    %917 = vdwg.mxu0
    %v918 = vrcp.pop %v894
    %v919 = vmul.f32 %v916, %v918
    %920 = vrot.lane.b32.xlu0 %v571, 96
    %v921 = vpop.permute.xlu0 %920
    %922 = vrot.lane.b32.xlu0 %v845, 96
    %v923 = vpop.permute.xlu0 %922
    %924 = vrot.lane.b32.xlu0 %v846, 96
    %v925 = vpop.permute.xlu0 %924
    %v926 = vsel %vm568, %v921, 0
    %v928 = vsel %vm568, %v923, 0
    %v930 = vsel %vm568, %v925, 0
    %932 = vmatpush.xpose.msra.mxu0 0.0
    %933 = vmatpush.xpose.msra.mxu0 0.0
    %934 = vmatpush.xpose.msra.mxu0 0.0
    %935 = vmatpush.xpose.msra.mxu0 0.0
    %936 = vmatpush.xpose.msra.mxu0 0.0
    %937 = vmatpush.xpose.msra.mxu0 0.0
    %938 = vmatpush.xpose.msra.mxu0 0.0
    %939 = vmatpush.xpose.msra.mxu0 0.0
    %940 = vmatpush.xpose.msra.mxu0 0.0
    %941 = vmatpush.xpose.msra.mxu0 0.0
    %942 = vmatpush.xpose.msra.mxu0 0.0
    %943 = vmatpush.xpose.msra.mxu0 0.0
    %944 = vmatpush.xpose.msra.mxu0 0.0
    %945 = vmatpush.xpose.msra.mxu0 0.0
    %946 = vmatpush.xpose.msra.mxu0 %v930
    %947 = vmatpush.xpose.msra.mxu0 %v928
    %948 = vmatmul.f32.gmra.mxu0 %v926
    %v949 = vpop.f32.mrf.mxu0
    %v950 = vadd.f32 %v226, %v949
    %951 = vdwg.mxu0
    %v952 = vsel %vm487, %v950, -inf
    %953 = vmax.xlane.f32.xlu0 %v952
    %v954 = vpop.xlane.xlu0 %953
    %v955 = vsub.f32 %v950, %v954
    %v956 = vmul.f32 %v955, 1.442695
    %v957 = vpow.pop %v956
    %v958 = vsel %vm487, %v957, 0.0
    %959 = vadd.xlane.f32.xlu0 %v958
    %v960 = vpop.xlane.xlu0 %959
    %963 = vrot.lane.b32.xlu0 %v851, 96
    %v964 = vpop.permute.xlu0 %963
    %965 = vrot.lane.b32.xlu0 %v852, 96
    %v966 = vpop.permute.xlu0 %965
    %v970 = vsel %vm487, %v957, 0
    %972 = vmatpush.msra.mxu0 0.0
    %973 = vmatpush.msra.mxu0 0.0
    %974 = vmatpush.msra.mxu0 0.0
    %975 = vmatpush.msra.mxu0 0.0
    %976 = vmatpush.msra.mxu0 0.0
    %977 = vmatpush.msra.mxu0 0.0
    %978 = vmatpush.msra.mxu0 0.0
    %979 = vmatpush.msra.mxu0 0.0
    %980 = vmatpush.msra.mxu0 0.0
    %981 = vmatpush.msra.mxu0 0.0
    %982 = vmatpush.msra.mxu0 0.0
    %983 = vmatpush.msra.mxu0 0.0
    %984 = vmatpush.msra.mxu0 0.0
    %985 = vmatpush.msra.mxu0 0.0
    %986 = vmatpush.msra.mxu0 %v966
    %987 = vmatpush.msra.mxu0 %v964
    %988 = vmatmul.f32.gmra.mxu0 %v970
    %v989 = vpop.f32.mrf.mxu0
    %v990 = vadd.f32 0.0, %v989
    %991 = vdwg.mxu0
    %v992 = vrcp.pop %v960
    %v993 = vmul.f32 %v990, %v992
    %995 = vrot.lane.b32.xlu0 %v993, 32
    %v996 = vpop.permute.xlu0 %995
    %v998 = vsel %vm568, %v919, %v996
    %999 = vrot.lane.b32.xlu0 %v845, 64
    %v1000 = vpop.permute.xlu0 %999
    %1001 = vrot.lane.b32.xlu0 %v846, 64
    %v1002 = vpop.permute.xlu0 %1001
    %v1004 = vsel %vm568, %v572, 0
    %v1006 = vsel %vm568, %v1000, 0
    %v1008 = vsel %vm568, %v1002, 0
    %1010 = vmatpush.xpose.msra.mxu0 0.0
    %1011 = vmatpush.xpose.msra.mxu0 0.0
    %1012 = vmatpush.xpose.msra.mxu0 0.0
    %1013 = vmatpush.xpose.msra.mxu0 0.0
    %1014 = vmatpush.xpose.msra.mxu0 0.0
    %1015 = vmatpush.xpose.msra.mxu0 0.0
    %1016 = vmatpush.xpose.msra.mxu0 0.0
    %1017 = vmatpush.xpose.msra.mxu0 0.0
    %1018 = vmatpush.xpose.msra.mxu0 0.0
    %1019 = vmatpush.xpose.msra.mxu0 0.0
    %1020 = vmatpush.xpose.msra.mxu0 0.0
    %1021 = vmatpush.xpose.msra.mxu0 0.0
    %1022 = vmatpush.xpose.msra.mxu0 0.0
    %1023 = vmatpush.xpose.msra.mxu0 0.0
    %1024 = vmatpush.xpose.msra.mxu0 %v1008
    %1025 = vmatpush.xpose.msra.mxu0 %v1006
    %1026 = vmatmul.f32.gmra.mxu0 %v1004
    %v1027 = vpop.f32.mrf.mxu0
    %v1028 = vadd.f32 %v226, %v1027
    %1029 = vdwg.mxu0
    %v1030 = vsel %vm487, %v1028, -inf
    %1031 = vmax.xlane.f32.xlu0 %v1030
    %v1032 = vpop.xlane.xlu0 %1031
    %v1033 = vsub.f32 %v1028, %v1032
    %v1034 = vmul.f32 %v1033, 1.442695
    %v1035 = vpow.pop %v1034
    %v1036 = vsel %vm487, %v1035, 0.0
    %1037 = vadd.xlane.f32.xlu0 %v1036
    %v1038 = vpop.xlane.xlu0 %1037
    %1039 = vrot.lane.b32.xlu0 %v851, 64
    %v1040 = vpop.permute.xlu0 %1039
    %1041 = vrot.lane.b32.xlu0 %v852, 64
    %v1042 = vpop.permute.xlu0 %1041
    %v1046 = vsel %vm487, %v1035, 0
    %1048 = vmatpush.msra.mxu0 0.0
    %1049 = vmatpush.msra.mxu0 0.0
    %1050 = vmatpush.msra.mxu0 0.0
    %1051 = vmatpush.msra.mxu0 0.0
    %1052 = vmatpush.msra.mxu0 0.0
    %1053 = vmatpush.msra.mxu0 0.0
    %1054 = vmatpush.msra.mxu0 0.0
    %1055 = vmatpush.msra.mxu0 0.0
    %1056 = vmatpush.msra.mxu0 0.0
    %1057 = vmatpush.msra.mxu0 0.0
    %1058 = vmatpush.msra.mxu0 0.0
    %1059 = vmatpush.msra.mxu0 0.0
    %1060 = vmatpush.msra.mxu0 0.0
    %1061 = vmatpush.msra.mxu0 0.0
    %1062 = vmatpush.msra.mxu0 %v1042
    %1063 = vmatpush.msra.mxu0 %v1040
    %1064 = vmatmul.f32.gmra.mxu0 %v1046
    %v1065 = vpop.f32.mrf.mxu0
    %v1066 = vadd.f32 0.0, %v1065
    %1067 = vdwg.mxu0
    %v1068 = vrcp.pop %v1038
    %v1069 = vmul.f32 %v1066, %v1068
    %1070 = vrot.lane.b32.xlu0 %v572, 96
    %v1071 = vpop.permute.xlu0 %1070
    %1072 = vrot.lane.b32.xlu0 %v845, 32
    %v1073 = vpop.permute.xlu0 %1072
    %1074 = vrot.lane.b32.xlu0 %v846, 32
    %v1075 = vpop.permute.xlu0 %1074
    %v1076 = vsel %vm568, %v1071, 0
    %v1078 = vsel %vm568, %v1073, 0
    %v1080 = vsel %vm568, %v1075, 0
    %1082 = vmatpush.xpose.msra.mxu0 0.0
    %1083 = vmatpush.xpose.msra.mxu0 0.0
    %1084 = vmatpush.xpose.msra.mxu0 0.0
    %1085 = vmatpush.xpose.msra.mxu0 0.0
    %1086 = vmatpush.xpose.msra.mxu0 0.0
    %1087 = vmatpush.xpose.msra.mxu0 0.0
    %1088 = vmatpush.xpose.msra.mxu0 0.0
    %1089 = vmatpush.xpose.msra.mxu0 0.0
    %1090 = vmatpush.xpose.msra.mxu0 0.0
    %1091 = vmatpush.xpose.msra.mxu0 0.0
    %1092 = vmatpush.xpose.msra.mxu0 0.0
    %1093 = vmatpush.xpose.msra.mxu0 0.0
    %1094 = vmatpush.xpose.msra.mxu0 0.0
    %1095 = vmatpush.xpose.msra.mxu0 0.0
    %1096 = vmatpush.xpose.msra.mxu0 %v1080
    %1097 = vmatpush.xpose.msra.mxu0 %v1078
    %1098 = vmatmul.f32.gmra.mxu0 %v1076
    %v1099 = vpop.f32.mrf.mxu0
    %v1100 = vadd.f32 %v226, %v1099
    %1101 = vdwg.mxu0
    %v1102 = vsel %vm487, %v1100, -inf
    %1103 = vmax.xlane.f32.xlu0 %v1102
    %v1104 = vpop.xlane.xlu0 %1103
    %v1105 = vsub.f32 %v1100, %v1104
    %v1106 = vmul.f32 %v1105, 1.442695
    %v1107 = vpow.pop %v1106
    %v1108 = vsel %vm487, %v1107, 0.0
    %1109 = vadd.xlane.f32.xlu0 %v1108
    %v1110 = vpop.xlane.xlu0 %1109
    %1111 = vrot.lane.b32.xlu0 %v851, 32
    %v1112 = vpop.permute.xlu0 %1111
    %1113 = vrot.lane.b32.xlu0 %v852, 32
    %v1114 = vpop.permute.xlu0 %1113
    %v1118 = vsel %vm487, %v1107, 0
    %1120 = vmatpush.msra.mxu0 0.0
    %1121 = vmatpush.msra.mxu0 0.0
    %1122 = vmatpush.msra.mxu0 0.0
    %1123 = vmatpush.msra.mxu0 0.0
    %1124 = vmatpush.msra.mxu0 0.0
    %1125 = vmatpush.msra.mxu0 0.0
    %1126 = vmatpush.msra.mxu0 0.0
    %1127 = vmatpush.msra.mxu0 0.0
    %1128 = vmatpush.msra.mxu0 0.0
    %1129 = vmatpush.msra.mxu0 0.0
    %1130 = vmatpush.msra.mxu0 0.0
    %1131 = vmatpush.msra.mxu0 0.0
    %1132 = vmatpush.msra.mxu0 0.0
    %1133 = vmatpush.msra.mxu0 0.0
    %1134 = vmatpush.msra.mxu0 %v1114
    %1135 = vmatpush.msra.mxu0 %v1112
    %1136 = vmatmul.f32.gmra.mxu0 %v1118
    %v1137 = vpop.f32.mrf.mxu0
    %v1138 = vadd.f32 0.0, %v1137
    %1139 = vdwg.mxu0
    %v1140 = vrcp.pop %v1110
    %v1141 = vmul.f32 %v1138, %v1140
    %1143 = vrot.lane.b32.xlu0 %v1141, 32
    %v1144 = vpop.permute.xlu0 %1143
    %v1146 = vsel %vm568, %v1069, %v1144
    %v1147 = vld [vmem:[%s19] sm:$0xff]
    %v1148 = vld [vmem:[%s19 + $0x8] sm:$0xff]
    %v1149 = vld [vmem:[%s19 + $0x10] sm:$0xff]
    %v1150 = vld [vmem:[%s19 + $0x18] sm:$0xff]
    %v1151 = vld [vmem:[%s19 + $0x20] sm:$0xff]
    %v1152 = vld [vmem:[%s19 + $0x28] sm:$0xff]
    %v1153 = vld [vmem:[%s19 + $0x30] sm:$0xff]
    %v1154 = vld [vmem:[%s19 + $0x38] sm:$0xff]
    %v1156 = vsel %vm250, %v998, 0
    %v1159 = vsel %vm250, %v1146, 0
    %v1162 = vsel %vm250, %v1147, 0
    %v1165 = vsel %vm250, %v1148, 0
    %v1168 = vsel %vm250, %v1149, 0
    %v1171 = vsel %vm250, %v1150, 0
    %v1174 = vsel %vm250, %v1151, 0
    %v1177 = vsel %vm250, %v1152, 0
    %v1180 = vsel %vm250, %v1153, 0
    %v1183 = vsel %vm250, %v1154, 0
    %1185 = vmatpush.xpose.msra.mxu0 0.0
    %1186 = vmatpush.xpose.msra.mxu0 0.0
    %1187 = vmatpush.xpose.msra.mxu0 0.0
    %1188 = vmatpush.xpose.msra.mxu0 0.0
    %1189 = vmatpush.xpose.msra.mxu0 0.0
    %1190 = vmatpush.xpose.msra.mxu0 0.0
    %1191 = vmatpush.xpose.msra.mxu0 0.0
    %1192 = vmatpush.xpose.msra.mxu0 0.0
    %1193 = vmatpush.xpose.msra.mxu0 %v1183
    %1194 = vmatpush.xpose.msra.mxu0 %v1180
    %1195 = vmatpush.xpose.msra.mxu0 %v1177
    %1196 = vmatpush.xpose.msra.mxu0 %v1174
    %1197 = vmatpush.xpose.msra.mxu0 %v1171
    %1198 = vmatpush.xpose.msra.mxu0 %v1168
    %1199 = vmatpush.xpose.msra.mxu0 %v1165
    %1200 = vmatpush.xpose.msra.mxu0 %v1162
    %1201 = vmatmul.f32.gmra.mxu0 %v1156
    %v1202 = vpop.f32.mrf.mxu0
    %v1203 = vadd.f32 0.0, %v1202
    %1204 = vmatmul.f32.gmra.mxu0 %v1159
    %v1205 = vpop.f32.mrf.mxu0
    %v1206 = vadd.f32 0.0, %v1205
    %1207 = vdwg.mxu0
    %v1208 = vadd.f32 %v212, %v1203
    %v1209 = vadd.f32 %v215, %v1206
    %v1210 = vld [vmem:[%s21] sm:$0x1]
    %v1211 = vmul.f32 %v1208, %v1208
    %v1212 = vmul.f32 %v1209, %v1209
    %v1213 = vsel %vm250, %v1211, 0.0
    %1214 = vadd.xlane.f32.xlu0 %v1213
    %v1215 = vpop.xlane.xlu0 %1214
    %v1216 = vsel %vm250, %v1212, 0.0
    %1217 = vadd.xlane.f32.xlu0 %v1216
    %v1218 = vpop.xlane.xlu0 %1217
    %v1219 = vmul.f32 %v1215, %v263
    %v1220 = vmul.f32 %v1218, %v263
    %v1221 = vadd.f32 %v1219, 1e-06
    %v1222 = vadd.f32 %v1220, 1e-06
    %v1223 = vrsqrt.pop %v1221
    %v1224 = vmul.f32 %v1223, %v1221
    %v1225 = vmul.f32 %v1224, %v1223
    %v1226 = vmul.f32 0.5, %v1225
    %v1227 = vsub.f32 1.5, %v1226
    %v1228 = vmul.f32 %v1223, %v1227
    %vm1229 = vweird.f32 %v1221
    %vm1230 = vweird.f32 %v1223
    %vm1231 = vmor %vm1229, %vm1230
    %v1232 = vsel %vm1231, %v1223, %v1228
    %v1233 = vrsqrt.pop %v1222
    %v1234 = vmul.f32 %v1233, %v1222
    %v1235 = vmul.f32 %v1234, %v1233
    %v1236 = vmul.f32 0.5, %v1235
    %v1237 = vsub.f32 1.5, %v1236
    %v1238 = vmul.f32 %v1233, %v1237
    %vm1239 = vweird.f32 %v1222
    %vm1240 = vweird.f32 %v1233
    %vm1241 = vmor %vm1239, %vm1240
    %v1242 = vsel %vm1241, %v1233, %v1238
    %v1243 = vmul.f32 %v1208, %v1232
    %v1244 = vmul.f32 %v1209, %v1242
    %v1246 = vperm.slane %v1210, 0
    %v1248 = vmul.f32 %v1243, %v1246
    %v1249 = vmul.f32 %v1244, %v1246
    %v1250 = vld [vmem:[%s23] sm:$0xff]
    %v1251 = vld [vmem:[%s23 + $0x8] sm:$0xff]
    %v1252 = vld [vmem:[%s23 + $0x10] sm:$0xff]
    %v1253 = vld [vmem:[%s23 + $0x18] sm:$0xff]
    %v1254 = vld [vmem:[%s23 + $0x20] sm:$0xff]
    %v1255 = vld [vmem:[%s23 + $0x28] sm:$0xff]
    %v1256 = vld [vmem:[%s23 + $0x30] sm:$0xff]
    %v1257 = vld [vmem:[%s23 + $0x38] sm:$0xff]
    %v1258 = vld [vmem:[%s23 + $0x40] sm:$0xff]
    %v1259 = vld [vmem:[%s23 + $0x48] sm:$0xff]
    %v1260 = vld [vmem:[%s23 + $0x50] sm:$0xff]
    %v1261 = vld [vmem:[%s23 + $0x58] sm:$0xff]
    %v1262 = vld [vmem:[%s23 + $0x60] sm:$0xff]
    %v1263 = vld [vmem:[%s23 + $0x68] sm:$0xff]
    %v1264 = vld [vmem:[%s23 + $0x70] sm:$0xff]
    %v1265 = vld [vmem:[%s23 + $0x78] sm:$0xff]
    %v1267 = vsel %vm250, %v1248, 0
    %v1270 = vsel %vm250, %v1249, 0
    %v1273 = vsel %vm250, %v1250, 0
    %v1276 = vsel %vm250, %v1251, 0
    %v1279 = vsel %vm250, %v1252, 0
    %v1282 = vsel %vm250, %v1253, 0
    %v1285 = vsel %vm250, %v1254, 0
    %v1288 = vsel %vm250, %v1255, 0
    %v1291 = vsel %vm250, %v1256, 0
    %v1294 = vsel %vm250, %v1257, 0
    %v1297 = vsel %vm250, %v1258, 0
    %v1300 = vsel %vm250, %v1259, 0
    %v1303 = vsel %vm250, %v1260, 0
    %v1306 = vsel %vm250, %v1261, 0
    %v1309 = vsel %vm250, %v1262, 0
    %v1312 = vsel %vm250, %v1263, 0
    %v1315 = vsel %vm250, %v1264, 0
    %v1318 = vsel %vm250, %v1265, 0
    %1320 = vmatpush.xpose.msra.mxu0 %v1318
    %1321 = vmatpush.xpose.msra.mxu0 %v1315
    %1322 = vmatpush.xpose.msra.mxu0 %v1312
    %1323 = vmatpush.xpose.msra.mxu0 %v1309
    %1324 = vmatpush.xpose.msra.mxu0 %v1306
    %1325 = vmatpush.xpose.msra.mxu0 %v1303
    %1326 = vmatpush.xpose.msra.mxu0 %v1300
    %1327 = vmatpush.xpose.msra.mxu0 %v1297
    %1328 = vmatpush.xpose.msra.mxu0 %v1294
    %1329 = vmatpush.xpose.msra.mxu0 %v1291
    %1330 = vmatpush.xpose.msra.mxu0 %v1288
    %1331 = vmatpush.xpose.msra.mxu0 %v1285
    %1332 = vmatpush.xpose.msra.mxu0 %v1282
    %1333 = vmatpush.xpose.msra.mxu0 %v1279
    %1334 = vmatpush.xpose.msra.mxu0 %v1276
    %1335 = vmatpush.xpose.msra.mxu0 %v1273
    %1336 = vmatmul.f32.gmra.mxu0 %v1267
    %v1337 = vpop.f32.mrf.mxu0
    %v1338 = vadd.f32 0.0, %v1337
    %1339 = vmatmul.f32.gmra.mxu0 %v1270
    %v1340 = vpop.f32.mrf.mxu0
    %v1341 = vadd.f32 0.0, %v1340
    %1342 = vdwg.mxu0
    %v1343 = vld [vmem:[%s25] sm:$0xff]
    %v1344 = vld [vmem:[%s25 + $0x8] sm:$0xff]
    %v1345 = vld [vmem:[%s25 + $0x10] sm:$0xff]
    %v1346 = vld [vmem:[%s25 + $0x18] sm:$0xff]
    %v1347 = vld [vmem:[%s25 + $0x20] sm:$0xff]
    %v1348 = vld [vmem:[%s25 + $0x28] sm:$0xff]
    %v1349 = vld [vmem:[%s25 + $0x30] sm:$0xff]
    %v1350 = vld [vmem:[%s25 + $0x38] sm:$0xff]
    %v1351 = vld [vmem:[%s25 + $0x40] sm:$0xff]
    %v1352 = vld [vmem:[%s25 + $0x48] sm:$0xff]
    %v1353 = vld [vmem:[%s25 + $0x50] sm:$0xff]
    %v1354 = vld [vmem:[%s25 + $0x58] sm:$0xff]
    %v1355 = vld [vmem:[%s25 + $0x60] sm:$0xff]
    %v1356 = vld [vmem:[%s25 + $0x68] sm:$0xff]
    %v1357 = vld [vmem:[%s25 + $0x70] sm:$0xff]
    %v1358 = vld [vmem:[%s25 + $0x78] sm:$0xff]
    %v1360 = vsel %vm250, %v1343, 0
    %v1363 = vsel %vm250, %v1344, 0
    %v1366 = vsel %vm250, %v1345, 0
    %v1369 = vsel %vm250, %v1346, 0
    %v1372 = vsel %vm250, %v1347, 0
    %v1375 = vsel %vm250, %v1348, 0
    %v1378 = vsel %vm250, %v1349, 0
    %v1381 = vsel %vm250, %v1350, 0
    %v1384 = vsel %vm250, %v1351, 0
    %v1387 = vsel %vm250, %v1352, 0
    %v1390 = vsel %vm250, %v1353, 0
    %v1393 = vsel %vm250, %v1354, 0
    %v1396 = vsel %vm250, %v1355, 0
    %v1399 = vsel %vm250, %v1356, 0
    %v1402 = vsel %vm250, %v1357, 0
    %v1405 = vsel %vm250, %v1358, 0
    %1407 = vmatpush.xpose.msra.mxu0 %v1405
    %1408 = vmatpush.xpose.msra.mxu0 %v1402
    %1409 = vmatpush.xpose.msra.mxu0 %v1399
    %1410 = vmatpush.xpose.msra.mxu0 %v1396
    %1411 = vmatpush.xpose.msra.mxu0 %v1393
    %1412 = vmatpush.xpose.msra.mxu0 %v1390
    %1413 = vmatpush.xpose.msra.mxu0 %v1387
    %1414 = vmatpush.xpose.msra.mxu0 %v1384
    %1415 = vmatpush.xpose.msra.mxu0 %v1381
    %1416 = vmatpush.xpose.msra.mxu0 %v1378
    %1417 = vmatpush.xpose.msra.mxu0 %v1375
    %1418 = vmatpush.xpose.msra.mxu0 %v1372
    %1419 = vmatpush.xpose.msra.mxu0 %v1369
    %1420 = vmatpush.xpose.msra.mxu0 %v1366
    %1421 = vmatpush.xpose.msra.mxu0 %v1363
    %1422 = vmatpush.xpose.msra.mxu0 %v1360
    %1423 = vmatmul.f32.gmra.mxu0 %v1267
    %v1424 = vpop.f32.mrf.mxu0
    %v1425 = vadd.f32 0.0, %v1424
    %1426 = vmatmul.f32.gmra.mxu0 %v1270
    %v1427 = vpop.f32.mrf.mxu0
    %v1428 = vadd.f32 0.0, %v1427
    %1429 = vdwg.mxu0
    %v1430 = vxor.u32 %v1338, 2147483648
    %v1431 = vxor.u32 %v1341, 2147483648
    %v1432 = vmul.f32 %v1430, 1.442695
    %v1433 = vpow.pop %v1432
    %v1434 = vmul.f32 %v1431, 1.442695
    %v1435 = vpow.pop %v1434
    %v1436 = vadd.f32 %v1433, 1.0
    %v1437 = vadd.f32 %v1435, 1.0
    %v1438 = vrcp.pop %v1436
    %v1439 = vmul.f32 %v1436, %v1438
    %v1440 = vsub.f32 1.0, %v1439
    %v1441 = vmul.f32 %v1438, %v1440
    %v1442 = vadd.f32 %v1438, %v1441
    %vm1443 = vweird.f32 %v1436
    %vm1444 = vweird.f32 %v1438
    %vm1445 = vmor %vm1443, %vm1444
    %v1446 = vsel %vm1445, %v1438, %v1442
    %v1447 = vand.u32 2147483647, %v1436
    %vm1448 = vcmp.eq.f32.partialorder %v1447, 8.507059e+37
    %v1449 = vand.u32 %v1436, 2147483648
    %v1450 = vor.u32 1.1754944e-38, %v1449
    %v1451 = vsel %vm1448, %v1450, %v1446
    %v1452 = vmul.f32 1.0, %v1451
    %v1453 = vrcp.pop %v1437
    %v1454 = vmul.f32 %v1437, %v1453
    %v1455 = vsub.f32 1.0, %v1454
    %v1456 = vmul.f32 %v1453, %v1455
    %v1457 = vadd.f32 %v1453, %v1456
    %vm1458 = vweird.f32 %v1437
    %vm1459 = vweird.f32 %v1453
    %vm1460 = vmor %vm1458, %vm1459
    %v1461 = vsel %vm1460, %v1453, %v1457
    %v1462 = vand.u32 2147483647, %v1437
    %vm1463 = vcmp.eq.f32.partialorder %v1462, 8.507059e+37
    %v1464 = vand.u32 %v1437, 2147483648
    %v1465 = vor.u32 1.1754944e-38, %v1464
    %v1466 = vsel %vm1463, %v1465, %v1461
    %v1467 = vmul.f32 1.0, %v1466
    %v1468 = vmul.f32 %v1338, %v1452
    %v1469 = vmul.f32 %v1341, %v1467
    %v1470 = vmul.f32 %v1468, %v1425
    %v1471 = vmul.f32 %v1469, %v1428
    %v1472 = vld [vmem:[%s27] sm:$0xff]
    %v1473 = vld [vmem:[%s27 + $0x8] sm:$0xff]
    %v1474 = vld [vmem:[%s27 + $0x10] sm:$0xff]
    %v1475 = vld [vmem:[%s27 + $0x18] sm:$0xff]
    %v1476 = vld [vmem:[%s27 + $0x20] sm:$0xff]
    %v1477 = vld [vmem:[%s27 + $0x28] sm:$0xff]
    %v1478 = vld [vmem:[%s27 + $0x30] sm:$0xff]
    %v1479 = vld [vmem:[%s27 + $0x38] sm:$0xff]
    %1480 = vmatpush.xpose.msra.mxu0 0.0
    %1481 = vmatpush.xpose.msra.mxu0 0.0
    %1482 = vmatpush.xpose.msra.mxu0 0.0
    %1483 = vmatpush.xpose.msra.mxu0 0.0
    %1484 = vmatpush.xpose.msra.mxu0 0.0
    %1485 = vmatpush.xpose.msra.mxu0 0.0
    %1486 = vmatpush.xpose.msra.mxu0 0.0
    %1487 = vmatpush.xpose.msra.mxu0 0.0
    %1488 = vmatpush.xpose.msra.mxu0 %v1479
    %1489 = vmatpush.xpose.msra.mxu0 %v1478
    %1490 = vmatpush.xpose.msra.mxu0 %v1477
    %1491 = vmatpush.xpose.msra.mxu0 %v1476
    %1492 = vmatpush.xpose.msra.mxu0 %v1475
    %1493 = vmatpush.xpose.msra.mxu0 %v1474
    %1494 = vmatpush.xpose.msra.mxu0 %v1473
    %1495 = vmatpush.xpose.msra.mxu0 %v1472
    %1496 = vmatmul.f32.gmra.mxu0 %v1470
    %v1497 = vpop.f32.mrf.mxu0
    %v1498 = vadd.f32 0.0, %v1497
    %1499 = vmatmul.f32.gmra.mxu0 %v1471
    %v1500 = vpop.f32.mrf.mxu0
    %v1501 = vadd.f32 0.0, %v1500
    %1502 = vdwg.mxu0
    %v1503 = vadd.f32 %v1208, %v1498
    %v1504 = vadd.f32 %v1209, %v1501
    %v1505 = vld [vmem:[%s33] sm:$0x1]
    %v1506 = vmul.f32 %v1503, %v1503
    %v1507 = vmul.f32 %v1504, %v1504
    %v1508 = vsel %vm250, %v1506, 0.0
    %1509 = vadd.xlane.f32.xlu0 %v1508
    %v1510 = vpop.xlane.xlu0 %1509
    %v1511 = vsel %vm250, %v1507, 0.0
    %1512 = vadd.xlane.f32.xlu0 %v1511
    %v1513 = vpop.xlane.xlu0 %1512
    %v1514 = vmul.f32 %v1510, %v263
    %v1515 = vmul.f32 %v1513, %v263
    %v1516 = vadd.f32 %v1514, 1e-06
    %v1517 = vadd.f32 %v1515, 1e-06
    %v1518 = vrsqrt.pop %v1516
    %v1519 = vmul.f32 %v1518, %v1516
    %v1520 = vmul.f32 %v1519, %v1518
    %v1521 = vmul.f32 0.5, %v1520
    %v1522 = vsub.f32 1.5, %v1521
    %v1523 = vmul.f32 %v1518, %v1522
    %vm1524 = vweird.f32 %v1516
    %vm1525 = vweird.f32 %v1518
    %vm1526 = vmor %vm1524, %vm1525
    %v1527 = vsel %vm1526, %v1518, %v1523
    %v1528 = vrsqrt.pop %v1517
    %v1529 = vmul.f32 %v1528, %v1517
    %v1530 = vmul.f32 %v1529, %v1528
    %v1531 = vmul.f32 0.5, %v1530
    %v1532 = vsub.f32 1.5, %v1531
    %v1533 = vmul.f32 %v1528, %v1532
    %vm1534 = vweird.f32 %v1517
    %vm1535 = vweird.f32 %v1528
    %vm1536 = vmor %vm1534, %vm1535
    %v1537 = vsel %vm1536, %v1528, %v1533
    %v1538 = vmul.f32 %v1503, %v1527
    %v1539 = vmul.f32 %v1504, %v1537
    %v1541 = vperm.slane %v1505, 0
    %v1543 = vmul.f32 %v1538, %v1541
    %v1544 = vmul.f32 %v1539, %v1541
    %v1545 = vld [vmem:[%s35] sm:$0xff]
    %v1546 = vld [vmem:[%s35 + $0x8] sm:$0xff]
    %v1547 = vld [vmem:[%s35 + $0x10] sm:$0xff]
    %v1548 = vld [vmem:[%s35 + $0x18] sm:$0xff]
    %v1549 = vld [vmem:[%s35 + $0x20] sm:$0xff]
    %v1550 = vld [vmem:[%s35 + $0x28] sm:$0xff]
    %v1551 = vld [vmem:[%s35 + $0x30] sm:$0xff]
    %v1552 = vld [vmem:[%s35 + $0x38] sm:$0xff]
    %v1553 = vld [vmem:[%s35 + $0x40] sm:$0xff]
    %v1554 = vld [vmem:[%s35 + $0x48] sm:$0xff]
    %v1555 = vld [vmem:[%s35 + $0x50] sm:$0xff]
    %v1556 = vld [vmem:[%s35 + $0x58] sm:$0xff]
    %v1557 = vld [vmem:[%s35 + $0x60] sm:$0xff]
    %v1558 = vld [vmem:[%s35 + $0x68] sm:$0xff]
    %v1559 = vld [vmem:[%s35 + $0x70] sm:$0xff]
    %v1560 = vld [vmem:[%s35 + $0x78] sm:$0xff]
    %v1561 = vld [vmem:[%s35 + $0x80] sm:$0xff]
    %v1562 = vld [vmem:[%s35 + $0x88] sm:$0xff]
    %v1563 = vld [vmem:[%s35 + $0x90] sm:$0xff]
    %v1564 = vld [vmem:[%s35 + $0x98] sm:$0xff]
    %v1565 = vld [vmem:[%s35 + $0xa0] sm:$0xff]
    %v1566 = vld [vmem:[%s35 + $0xa8] sm:$0xff]
    %v1567 = vld [vmem:[%s35 + $0xb0] sm:$0xff]
    %v1568 = vld [vmem:[%s35 + $0xb8] sm:$0xff]
    %v1570 = vsel %vm250, %v1543, 0
    %v1573 = vsel %vm250, %v1544, 0
    %v1576 = vsel %vm250, %v1545, 0
    %v1579 = vsel %vm250, %v1546, 0
    %v1582 = vsel %vm250, %v1547, 0
    %v1585 = vsel %vm250, %v1548, 0
    %v1588 = vsel %vm250, %v1549, 0
    %v1591 = vsel %vm250, %v1550, 0
    %v1594 = vsel %vm250, %v1551, 0
    %v1597 = vsel %vm250, %v1552, 0
    %v1600 = vsel %vm250, %v1553, 0
    %v1603 = vsel %vm250, %v1554, 0
    %v1606 = vsel %vm250, %v1555, 0
    %v1609 = vsel %vm250, %v1556, 0
    %v1612 = vsel %vm250, %v1557, 0
    %v1615 = vsel %vm250, %v1558, 0
    %v1618 = vsel %vm250, %v1559, 0
    %v1621 = vsel %vm250, %v1560, 0
    %v1624 = vsel %vm250, %v1561, 0
    %v1627 = vsel %vm250, %v1562, 0
    %v1630 = vsel %vm250, %v1563, 0
    %v1633 = vsel %vm250, %v1564, 0
    %v1636 = vsel %vm250, %v1565, 0
    %v1639 = vsel %vm250, %v1566, 0
    %v1642 = vsel %vm250, %v1567, 0
    %v1645 = vsel %vm250, %v1568, 0
    %1647 = vmatpush.xpose.msra.mxu0 %v1621
    %1648 = vmatpush.xpose.msra.mxu0 %v1618
    %1649 = vmatpush.xpose.msra.mxu0 %v1615
    %1650 = vmatpush.xpose.msra.mxu0 %v1612
    %1651 = vmatpush.xpose.msra.mxu0 %v1609
    %1652 = vmatpush.xpose.msra.mxu0 %v1606
    %1653 = vmatpush.xpose.msra.mxu0 %v1603
    %1654 = vmatpush.xpose.msra.mxu0 %v1600
    %1655 = vmatpush.xpose.msra.mxu0 %v1597
    %1656 = vmatpush.xpose.msra.mxu0 %v1594
    %1657 = vmatpush.xpose.msra.mxu0 %v1591
    %1658 = vmatpush.xpose.msra.mxu0 %v1588
    %1659 = vmatpush.xpose.msra.mxu0 %v1585
    %1660 = vmatpush.xpose.msra.mxu0 %v1582
    %1661 = vmatpush.xpose.msra.mxu0 %v1579
    %1662 = vmatpush.xpose.msra.mxu0 %v1576
    %1663 = vmatmul.f32.gmra.mxu0 %v1570
    %v1664 = vpop.f32.mrf.mxu0
    %v1665 = vadd.f32 0.0, %v1664
    %1666 = vmatmul.f32.gmra.mxu0 %v1573
    %v1667 = vpop.f32.mrf.mxu0
    %v1668 = vadd.f32 0.0, %v1667
    %1669 = vdwg.mxu0
    %1670 = vmatpush.xpose.msra.mxu0 0.0
    %1671 = vmatpush.xpose.msra.mxu0 0.0
    %1672 = vmatpush.xpose.msra.mxu0 0.0
    %1673 = vmatpush.xpose.msra.mxu0 0.0
    %1674 = vmatpush.xpose.msra.mxu0 0.0
    %1675 = vmatpush.xpose.msra.mxu0 0.0
    %1676 = vmatpush.xpose.msra.mxu0 0.0
    %1677 = vmatpush.xpose.msra.mxu0 0.0
    %1678 = vmatpush.xpose.msra.mxu0 %v1645
    %1679 = vmatpush.xpose.msra.mxu0 %v1642
    %1680 = vmatpush.xpose.msra.mxu0 %v1639
    %1681 = vmatpush.xpose.msra.mxu0 %v1636
    %1682 = vmatpush.xpose.msra.mxu0 %v1633
    %1683 = vmatpush.xpose.msra.mxu0 %v1630
    %1684 = vmatpush.xpose.msra.mxu0 %v1627
    %1685 = vmatpush.xpose.msra.mxu0 %v1624
    %1686 = vmatmul.f32.gmra.mxu0 %v1570
    %v1687 = vpop.f32.mrf.mxu0
    %v1688 = vadd.f32 0.0, %v1687
    %1689 = vmatmul.f32.gmra.mxu0 %v1573
    %v1690 = vpop.f32.mrf.mxu0
    %v1691 = vadd.f32 0.0, %v1690
    %1692 = vdwg.mxu0
    %v1693 = vmul.f32 %v1665, %v217
    %v1694 = vmul.f32 %v1668, %v218
    %v1695 = vmul.f32 %v1665, %v448
    %v1696 = vmul.f32 %v1668, %v450
    %1699 = vrot.lane.b32.xlu0 %v1695, 112
    %v1700 = vpop.permute.xlu0 %1699
    %1701 = vrot.lane.b32.xlu0 %v1696, 112
    %v1702 = vpop.permute.xlu0 %1701
    %v1705 = vsub.f32 %v1693, %v1700
    %v1706 = vsub.f32 %v1694, %v1702
    %v1707 = vmul.f32 %v1665, %v468
    %v1708 = vmul.f32 %v1668, %v470
    %v1709 = vmul.f32 %v1665, %v219
    %v1710 = vmul.f32 %v1668, %v220
    %1713 = vrot.lane.b32.xlu0 %v1709, 16
    %v1714 = vpop.permute.xlu0 %1713
    %1715 = vrot.lane.b32.xlu0 %v1710, 16
    %v1716 = vpop.permute.xlu0 %1715
    %v1719 = vadd.f32 %v1707, %v1714
    %v1720 = vadd.f32 %v1708, %v1716
    %v1721 = vsel %vm487, %v1705, %v1719
    %v1722 = vsel %vm487, %v1706, %v1720
    %v1723 = vmul.f32 %v1665, %v491
    %v1724 = vmul.f32 %v1668, %v493
    %v1725 = vmul.f32 %v1665, %v499
    %v1726 = vmul.f32 %v1668, %v501
    %1729 = vrot.lane.b32.xlu0 %v1725, 112
    %v1730 = vpop.permute.xlu0 %1729
    %1731 = vrot.lane.b32.xlu0 %v1726, 112
    %v1732 = vpop.permute.xlu0 %1731
    %v1735 = vsub.f32 %v1723, %v1730
    %v1736 = vsub.f32 %v1724, %v1732
    %v1737 = vmul.f32 %v1665, %v517
    %v1738 = vmul.f32 %v1668, %v519
    %v1739 = vmul.f32 %v1665, %v525
    %v1740 = vmul.f32 %v1668, %v527
    %1743 = vrot.lane.b32.xlu0 %v1739, 16
    %v1744 = vpop.permute.xlu0 %1743
    %1745 = vrot.lane.b32.xlu0 %v1740, 16
    %v1746 = vpop.permute.xlu0 %1745
    %v1749 = vadd.f32 %v1737, %v1744
    %v1750 = vadd.f32 %v1738, %v1746
    %1753 = vrot.lane.b32.xlu0 %v1735, 96
    %v1754 = vpop.permute.xlu0 %1753
    %1755 = vrot.lane.b32.xlu0 %v1736, 96
    %v1756 = vpop.permute.xlu0 %1755
    %1761 = vrot.lane.b32.xlu0 %v1749, 96
    %v1762 = vpop.permute.xlu0 %1761
    %1763 = vrot.lane.b32.xlu0 %v1750, 96
    %v1764 = vpop.permute.xlu0 %1763
    %v1767 = vsel %vm487, %v1754, %v1762
    %v1768 = vsel %vm487, %v1756, %v1764
    %1771 = vrot.lane.b32.xlu0 %v1767, 32
    %v1772 = vpop.permute.xlu0 %1771
    %1773 = vrot.lane.b32.xlu0 %v1768, 32
    %v1774 = vpop.permute.xlu0 %1773
    %v1777 = vsel %vm568, %v1721, %v1772
    %v1778 = vsel %vm568, %v1722, %v1774
    %v1779 = vmul.f32 %v1777, 0.17677669
    %v1780 = vmul.f32 %v1778, 0.17677669
    %v1781 = vmul.f32 %v1665, %v574
    %v1782 = vmul.f32 %v1668, %v576
    %v1783 = vmul.f32 %v1665, %v582
    %v1784 = vmul.f32 %v1668, %v584
    %1787 = vrot.lane.b32.xlu0 %v1783, 112
    %v1788 = vpop.permute.xlu0 %1787
    %1789 = vrot.lane.b32.xlu0 %v1784, 112
    %v1790 = vpop.permute.xlu0 %1789
    %v1793 = vsub.f32 %v1781, %v1788
    %v1794 = vsub.f32 %v1782, %v1790
    %v1795 = vmul.f32 %v1665, %v600
    %v1796 = vmul.f32 %v1668, %v602
    %v1797 = vmul.f32 %v1665, %v608
    %v1798 = vmul.f32 %v1668, %v610
    %1801 = vrot.lane.b32.xlu0 %v1797, 16
    %v1802 = vpop.permute.xlu0 %1801
    %1803 = vrot.lane.b32.xlu0 %v1798, 16
    %v1804 = vpop.permute.xlu0 %1803
    %v1807 = vadd.f32 %v1795, %v1802
    %v1808 = vadd.f32 %v1796, %v1804
    %1811 = vrot.lane.b32.xlu0 %v1793, 64
    %v1812 = vpop.permute.xlu0 %1811
    %1813 = vrot.lane.b32.xlu0 %v1794, 64
    %v1814 = vpop.permute.xlu0 %1813
    %1819 = vrot.lane.b32.xlu0 %v1807, 64
    %v1820 = vpop.permute.xlu0 %1819
    %1821 = vrot.lane.b32.xlu0 %v1808, 64
    %v1822 = vpop.permute.xlu0 %1821
    %v1825 = vsel %vm487, %v1812, %v1820
    %v1826 = vsel %vm487, %v1814, %v1822
    %v1827 = vmul.f32 %v1665, %v644
    %v1828 = vmul.f32 %v1668, %v646
    %v1829 = vmul.f32 %v1665, %v652
    %v1830 = vmul.f32 %v1668, %v654
    %1833 = vrot.lane.b32.xlu0 %v1829, 112
    %v1834 = vpop.permute.xlu0 %1833
    %1835 = vrot.lane.b32.xlu0 %v1830, 112
    %v1836 = vpop.permute.xlu0 %1835
    %v1839 = vsub.f32 %v1827, %v1834
    %v1840 = vsub.f32 %v1828, %v1836
    %v1841 = vmul.f32 %v1665, %v670
    %v1842 = vmul.f32 %v1668, %v672
    %v1843 = vmul.f32 %v1665, %v678
    %v1844 = vmul.f32 %v1668, %v680
    %1847 = vrot.lane.b32.xlu0 %v1843, 16
    %v1848 = vpop.permute.xlu0 %1847
    %1849 = vrot.lane.b32.xlu0 %v1844, 16
    %v1850 = vpop.permute.xlu0 %1849
    %v1853 = vadd.f32 %v1841, %v1848
    %v1854 = vadd.f32 %v1842, %v1850
    %1857 = vrot.lane.b32.xlu0 %v1839, 32
    %v1858 = vpop.permute.xlu0 %1857
    %1859 = vrot.lane.b32.xlu0 %v1840, 32
    %v1860 = vpop.permute.xlu0 %1859
    %1865 = vrot.lane.b32.xlu0 %v1853, 32
    %v1866 = vpop.permute.xlu0 %1865
    %1867 = vrot.lane.b32.xlu0 %v1854, 32
    %v1868 = vpop.permute.xlu0 %1867
    %v1871 = vsel %vm487, %v1858, %v1866
    %v1872 = vsel %vm487, %v1860, %v1868
    %1875 = vrot.lane.b32.xlu0 %v1871, 32
    %v1876 = vpop.permute.xlu0 %1875
    %1877 = vrot.lane.b32.xlu0 %v1872, 32
    %v1878 = vpop.permute.xlu0 %1877
    %v1881 = vsel %vm568, %v1825, %v1876
    %v1882 = vsel %vm568, %v1826, %v1878
    %1883 = vmatpush.msra.mxu0 0.0
    %1884 = vmatpush.msra.mxu0 0.0
    %1885 = vmatpush.msra.mxu0 0.0
    %1886 = vmatpush.msra.mxu0 0.0
    %1887 = vmatpush.msra.mxu0 0.0
    %1888 = vmatpush.msra.mxu0 0.0
    %1889 = vmatpush.msra.mxu0 0.0
    %1890 = vmatpush.msra.mxu0 0.0
    %1891 = vmatpush.msra.mxu0 0.0
    %1892 = vmatpush.msra.mxu0 0.0
    %1893 = vmatpush.msra.mxu0 0.0
    %1894 = vmatpush.msra.mxu0 0.0
    %1895 = vmatpush.msra.mxu0 0.0
    %1896 = vmatpush.msra.mxu0 0.0
    %1897 = vmatpush.msra.mxu0 0.0
    %1898 = vmatpush.msra.mxu0 %v1881
    %1899 = vmatmul.f32.gmra.mxu0 %v724
    %v1900 = vpop.f32.mrf.mxu0
    %v1901 = vadd.f32 0.0, %v1900
    %1902 = vmatmul.f32.gmra.mxu0 %v727
    %v1903 = vpop.f32.mrf.mxu0
    %v1904 = vadd.f32 0.0, %v1903
    %1905 = vdwg.mxu0
    %1906 = vmatpush.msra.mxu0 0.0
    %1907 = vmatpush.msra.mxu0 0.0
    %1908 = vmatpush.msra.mxu0 0.0
    %1909 = vmatpush.msra.mxu0 0.0
    %1910 = vmatpush.msra.mxu0 0.0
    %1911 = vmatpush.msra.mxu0 0.0
    %1912 = vmatpush.msra.mxu0 0.0
    %1913 = vmatpush.msra.mxu0 0.0
    %1914 = vmatpush.msra.mxu0 0.0
    %1915 = vmatpush.msra.mxu0 0.0
    %1916 = vmatpush.msra.mxu0 0.0
    %1917 = vmatpush.msra.mxu0 0.0
    %1918 = vmatpush.msra.mxu0 0.0
    %1919 = vmatpush.msra.mxu0 0.0
    %1920 = vmatpush.msra.mxu0 0.0
    %1921 = vmatpush.msra.mxu0 %v1882
    %1922 = vmatmul.f32.gmra.mxu0 %v724
    %v1923 = vpop.f32.mrf.mxu0
    %v1924 = vadd.f32 0.0, %v1923
    %1925 = vmatmul.f32.gmra.mxu0 %v727
    %v1926 = vpop.f32.mrf.mxu0
    %v1927 = vadd.f32 0.0, %v1926
    %1928 = vdwg.mxu0
    %1931 = vrot.lane.b32.xlu0 %v1924, 64
    %v1932 = vpop.permute.xlu0 %1931
    %1933 = vrot.lane.b32.xlu0 %v1927, 64
    %v1934 = vpop.permute.xlu0 %1933
    %v1937 = vsel %vm250, %v1901, %v1932
    %v1938 = vsel %vm250, %v1904, %v1934
    %1939 = vmatpush.msra.mxu0 0.0
    %1940 = vmatpush.msra.mxu0 0.0
    %1941 = vmatpush.msra.mxu0 0.0
    %1942 = vmatpush.msra.mxu0 0.0
    %1943 = vmatpush.msra.mxu0 0.0
    %1944 = vmatpush.msra.mxu0 0.0
    %1945 = vmatpush.msra.mxu0 0.0
    %1946 = vmatpush.msra.mxu0 0.0
    %1947 = vmatpush.msra.mxu0 0.0
    %1948 = vmatpush.msra.mxu0 0.0
    %1949 = vmatpush.msra.mxu0 0.0
    %1950 = vmatpush.msra.mxu0 0.0
    %1951 = vmatpush.msra.mxu0 0.0
    %1952 = vmatpush.msra.mxu0 0.0
    %1953 = vmatpush.msra.mxu0 0.0
    %1954 = vmatpush.msra.mxu0 %v1688
    %1955 = vmatmul.f32.gmra.mxu0 %v724
    %v1956 = vpop.f32.mrf.mxu0
    %v1957 = vadd.f32 0.0, %v1956
    %1958 = vmatmul.f32.gmra.mxu0 %v727
    %v1959 = vpop.f32.mrf.mxu0
    %v1960 = vadd.f32 0.0, %v1959
    %1961 = vdwg.mxu0
    %1962 = vmatpush.msra.mxu0 0.0
    %1963 = vmatpush.msra.mxu0 0.0
    %1964 = vmatpush.msra.mxu0 0.0
    %1965 = vmatpush.msra.mxu0 0.0
    %1966 = vmatpush.msra.mxu0 0.0
    %1967 = vmatpush.msra.mxu0 0.0
    %1968 = vmatpush.msra.mxu0 0.0
    %1969 = vmatpush.msra.mxu0 0.0
    %1970 = vmatpush.msra.mxu0 0.0
    %1971 = vmatpush.msra.mxu0 0.0
    %1972 = vmatpush.msra.mxu0 0.0
    %1973 = vmatpush.msra.mxu0 0.0
    %1974 = vmatpush.msra.mxu0 0.0
    %1975 = vmatpush.msra.mxu0 0.0
    %1976 = vmatpush.msra.mxu0 0.0
    %1977 = vmatpush.msra.mxu0 %v1691
    %1978 = vmatmul.f32.gmra.mxu0 %v724
    %v1979 = vpop.f32.mrf.mxu0
    %v1980 = vadd.f32 0.0, %v1979
    %1981 = vmatmul.f32.gmra.mxu0 %v727
    %v1982 = vpop.f32.mrf.mxu0
    %v1983 = vadd.f32 0.0, %v1982
    %1984 = vdwg.mxu0
    %1987 = vrot.lane.b32.xlu0 %v1980, 64
    %v1988 = vpop.permute.xlu0 %1987
    %1989 = vrot.lane.b32.xlu0 %v1983, 64
    %v1990 = vpop.permute.xlu0 %1989
    %v1993 = vsel %vm250, %v1957, %v1988
    %v1994 = vsel %vm250, %v1960, %v1990
    %v1995 = vld [vmem:[%s47] sm:$0xff]
    %v1996 = vld [vmem:[%s47 + $0x8] sm:$0xff]
    %v1997 = vmul.f32 %v1995, %v245
    %v1998 = vmul.f32 %v1996, %v246
    %v1999 = vadd.f32 %v1997, %v1937
    %v2000 = vadd.f32 %v1998, %v1938
    %v2001 = vld [vmem:[%s49] sm:$0xff]
    %v2002 = vld [vmem:[%s49 + $0x8] sm:$0xff]
    %v2003 = vmul.f32 %v2001, %v245
    %v2004 = vmul.f32 %v2002, %v246
    %v2005 = vadd.f32 %v2003, %v1993
    %v2006 = vadd.f32 %v2004, %v1994
    %2007 = vst [vmem:[%s57] sm:$0xff] %v1999
    %2008 = vst [vmem:[%s57 + $0x8] sm:$0xff] %v2000
    %2009 = vst [vmem:[%s59] sm:$0xff] %v2005
    %2010 = vst [vmem:[%s59 + $0x8] sm:$0xff] %v2006
    %v2012 = vsel %vm568, %v1779, 0
    %v2015 = vsel %vm568, %v1999, 0
    %v2018 = vsel %vm568, %v2000, 0
    %2020 = vmatpush.xpose.msra.mxu0 0.0
    %2021 = vmatpush.xpose.msra.mxu0 0.0
    %2022 = vmatpush.xpose.msra.mxu0 0.0
    %2023 = vmatpush.xpose.msra.mxu0 0.0
    %2024 = vmatpush.xpose.msra.mxu0 0.0
    %2025 = vmatpush.xpose.msra.mxu0 0.0
    %2026 = vmatpush.xpose.msra.mxu0 0.0
    %2027 = vmatpush.xpose.msra.mxu0 0.0
    %2028 = vmatpush.xpose.msra.mxu0 0.0
    %2029 = vmatpush.xpose.msra.mxu0 0.0
    %2030 = vmatpush.xpose.msra.mxu0 0.0
    %2031 = vmatpush.xpose.msra.mxu0 0.0
    %2032 = vmatpush.xpose.msra.mxu0 0.0
    %2033 = vmatpush.xpose.msra.mxu0 0.0
    %2034 = vmatpush.xpose.msra.mxu0 %v2018
    %2035 = vmatpush.xpose.msra.mxu0 %v2015
    %2036 = vmatmul.f32.gmra.mxu0 %v2012
    %v2037 = vpop.f32.mrf.mxu0
    %v2038 = vadd.f32 %v226, %v2037
    %2039 = vdwg.mxu0
    %v2040 = vsel %vm487, %v2038, -inf
    %2041 = vmax.xlane.f32.xlu0 %v2040
    %v2042 = vpop.xlane.xlu0 %2041
    %v2043 = vsub.f32 %v2038, %v2042
    %v2044 = vmul.f32 %v2043, 1.442695
    %v2045 = vpow.pop %v2044
    %v2046 = vsel %vm487, %v2045, 0.0
    %2047 = vadd.xlane.f32.xlu0 %v2046
    %v2048 = vpop.xlane.xlu0 %2047
    %v2050 = vsel %vm487, %v2045, 0
    %2052 = vmatpush.msra.mxu0 0.0
    %2053 = vmatpush.msra.mxu0 0.0
    %2054 = vmatpush.msra.mxu0 0.0
    %2055 = vmatpush.msra.mxu0 0.0
    %2056 = vmatpush.msra.mxu0 0.0
    %2057 = vmatpush.msra.mxu0 0.0
    %2058 = vmatpush.msra.mxu0 0.0
    %2059 = vmatpush.msra.mxu0 0.0
    %2060 = vmatpush.msra.mxu0 0.0
    %2061 = vmatpush.msra.mxu0 0.0
    %2062 = vmatpush.msra.mxu0 0.0
    %2063 = vmatpush.msra.mxu0 0.0
    %2064 = vmatpush.msra.mxu0 0.0
    %2065 = vmatpush.msra.mxu0 0.0
    %2066 = vmatpush.msra.mxu0 %v2006
    %2067 = vmatpush.msra.mxu0 %v2005
    %2068 = vmatmul.f32.gmra.mxu0 %v2050
    %v2069 = vpop.f32.mrf.mxu0
    %v2070 = vadd.f32 0.0, %v2069
    %2071 = vdwg.mxu0
    %v2072 = vrcp.pop %v2048
    %v2073 = vmul.f32 %v2070, %v2072
    %2074 = vrot.lane.b32.xlu0 %v1779, 96
    %v2075 = vpop.permute.xlu0 %2074
    %2076 = vrot.lane.b32.xlu0 %v1999, 96
    %v2077 = vpop.permute.xlu0 %2076
    %2078 = vrot.lane.b32.xlu0 %v2000, 96
    %v2079 = vpop.permute.xlu0 %2078
    %v2080 = vsel %vm568, %v2075, 0
    %v2082 = vsel %vm568, %v2077, 0
    %v2084 = vsel %vm568, %v2079, 0
    %2086 = vmatpush.xpose.msra.mxu0 0.0
    %2087 = vmatpush.xpose.msra.mxu0 0.0
    %2088 = vmatpush.xpose.msra.mxu0 0.0
    %2089 = vmatpush.xpose.msra.mxu0 0.0
    %2090 = vmatpush.xpose.msra.mxu0 0.0
    %2091 = vmatpush.xpose.msra.mxu0 0.0
    %2092 = vmatpush.xpose.msra.mxu0 0.0
    %2093 = vmatpush.xpose.msra.mxu0 0.0
    %2094 = vmatpush.xpose.msra.mxu0 0.0
    %2095 = vmatpush.xpose.msra.mxu0 0.0
    %2096 = vmatpush.xpose.msra.mxu0 0.0
    %2097 = vmatpush.xpose.msra.mxu0 0.0
    %2098 = vmatpush.xpose.msra.mxu0 0.0
    %2099 = vmatpush.xpose.msra.mxu0 0.0
    %2100 = vmatpush.xpose.msra.mxu0 %v2084
    %2101 = vmatpush.xpose.msra.mxu0 %v2082
    %2102 = vmatmul.f32.gmra.mxu0 %v2080
    %v2103 = vpop.f32.mrf.mxu0
    %v2104 = vadd.f32 %v226, %v2103
    %2105 = vdwg.mxu0
    %v2106 = vsel %vm487, %v2104, -inf
    %2107 = vmax.xlane.f32.xlu0 %v2106
    %v2108 = vpop.xlane.xlu0 %2107
    %v2109 = vsub.f32 %v2104, %v2108
    %v2110 = vmul.f32 %v2109, 1.442695
    %v2111 = vpow.pop %v2110
    %v2112 = vsel %vm487, %v2111, 0.0
    %2113 = vadd.xlane.f32.xlu0 %v2112
    %v2114 = vpop.xlane.xlu0 %2113
    %2117 = vrot.lane.b32.xlu0 %v2005, 96
    %v2118 = vpop.permute.xlu0 %2117
    %2119 = vrot.lane.b32.xlu0 %v2006, 96
    %v2120 = vpop.permute.xlu0 %2119
    %v2124 = vsel %vm487, %v2111, 0
    %2126 = vmatpush.msra.mxu0 0.0
    %2127 = vmatpush.msra.mxu0 0.0
    %2128 = vmatpush.msra.mxu0 0.0
    %2129 = vmatpush.msra.mxu0 0.0
    %2130 = vmatpush.msra.mxu0 0.0
    %2131 = vmatpush.msra.mxu0 0.0
    %2132 = vmatpush.msra.mxu0 0.0
    %2133 = vmatpush.msra.mxu0 0.0
    %2134 = vmatpush.msra.mxu0 0.0
    %2135 = vmatpush.msra.mxu0 0.0
    %2136 = vmatpush.msra.mxu0 0.0
    %2137 = vmatpush.msra.mxu0 0.0
    %2138 = vmatpush.msra.mxu0 0.0
    %2139 = vmatpush.msra.mxu0 0.0
    %2140 = vmatpush.msra.mxu0 %v2120
    %2141 = vmatpush.msra.mxu0 %v2118
    %2142 = vmatmul.f32.gmra.mxu0 %v2124
    %v2143 = vpop.f32.mrf.mxu0
    %v2144 = vadd.f32 0.0, %v2143
    %2145 = vdwg.mxu0
    %v2146 = vrcp.pop %v2114
    %v2147 = vmul.f32 %v2144, %v2146
    %2149 = vrot.lane.b32.xlu0 %v2147, 32
    %v2150 = vpop.permute.xlu0 %2149
    %v2152 = vsel %vm568, %v2073, %v2150
    %2153 = vrot.lane.b32.xlu0 %v1999, 64
    %v2154 = vpop.permute.xlu0 %2153
    %2155 = vrot.lane.b32.xlu0 %v2000, 64
    %v2156 = vpop.permute.xlu0 %2155
    %v2158 = vsel %vm568, %v1780, 0
    %v2160 = vsel %vm568, %v2154, 0
    %v2162 = vsel %vm568, %v2156, 0
    %2164 = vmatpush.xpose.msra.mxu0 0.0
    %2165 = vmatpush.xpose.msra.mxu0 0.0
    %2166 = vmatpush.xpose.msra.mxu0 0.0
    %2167 = vmatpush.xpose.msra.mxu0 0.0
    %2168 = vmatpush.xpose.msra.mxu0 0.0
    %2169 = vmatpush.xpose.msra.mxu0 0.0
    %2170 = vmatpush.xpose.msra.mxu0 0.0
    %2171 = vmatpush.xpose.msra.mxu0 0.0
    %2172 = vmatpush.xpose.msra.mxu0 0.0
    %2173 = vmatpush.xpose.msra.mxu0 0.0
    %2174 = vmatpush.xpose.msra.mxu0 0.0
    %2175 = vmatpush.xpose.msra.mxu0 0.0
    %2176 = vmatpush.xpose.msra.mxu0 0.0
    %2177 = vmatpush.xpose.msra.mxu0 0.0
    %2178 = vmatpush.xpose.msra.mxu0 %v2162
    %2179 = vmatpush.xpose.msra.mxu0 %v2160
    %2180 = vmatmul.f32.gmra.mxu0 %v2158
    %v2181 = vpop.f32.mrf.mxu0
    %v2182 = vadd.f32 %v226, %v2181
    %2183 = vdwg.mxu0
    %v2184 = vsel %vm487, %v2182, -inf
    %2185 = vmax.xlane.f32.xlu0 %v2184
    %v2186 = vpop.xlane.xlu0 %2185
    %v2187 = vsub.f32 %v2182, %v2186
    %v2188 = vmul.f32 %v2187, 1.442695
    %v2189 = vpow.pop %v2188
    %v2190 = vsel %vm487, %v2189, 0.0
    %2191 = vadd.xlane.f32.xlu0 %v2190
    %v2192 = vpop.xlane.xlu0 %2191
    %2193 = vrot.lane.b32.xlu0 %v2005, 64
    %v2194 = vpop.permute.xlu0 %2193
    %2195 = vrot.lane.b32.xlu0 %v2006, 64
    %v2196 = vpop.permute.xlu0 %2195
    %v2200 = vsel %vm487, %v2189, 0
    %2202 = vmatpush.msra.mxu0 0.0
    %2203 = vmatpush.msra.mxu0 0.0
    %2204 = vmatpush.msra.mxu0 0.0
    %2205 = vmatpush.msra.mxu0 0.0
    %2206 = vmatpush.msra.mxu0 0.0
    %2207 = vmatpush.msra.mxu0 0.0
    %2208 = vmatpush.msra.mxu0 0.0
    %2209 = vmatpush.msra.mxu0 0.0
    %2210 = vmatpush.msra.mxu0 0.0
    %2211 = vmatpush.msra.mxu0 0.0
    %2212 = vmatpush.msra.mxu0 0.0
    %2213 = vmatpush.msra.mxu0 0.0
    %2214 = vmatpush.msra.mxu0 0.0
    %2215 = vmatpush.msra.mxu0 0.0
    %2216 = vmatpush.msra.mxu0 %v2196
    %2217 = vmatpush.msra.mxu0 %v2194
    %2218 = vmatmul.f32.gmra.mxu0 %v2200
    %v2219 = vpop.f32.mrf.mxu0
    %v2220 = vadd.f32 0.0, %v2219
    %2221 = vdwg.mxu0
    %v2222 = vrcp.pop %v2192
    %v2223 = vmul.f32 %v2220, %v2222
    %2224 = vrot.lane.b32.xlu0 %v1780, 96
    %v2225 = vpop.permute.xlu0 %2224
    %2226 = vrot.lane.b32.xlu0 %v1999, 32
    %v2227 = vpop.permute.xlu0 %2226
    %2228 = vrot.lane.b32.xlu0 %v2000, 32
    %v2229 = vpop.permute.xlu0 %2228
    %v2230 = vsel %vm568, %v2225, 0
    %v2232 = vsel %vm568, %v2227, 0
    %v2234 = vsel %vm568, %v2229, 0
    %2236 = vmatpush.xpose.msra.mxu0 0.0
    %2237 = vmatpush.xpose.msra.mxu0 0.0
    %2238 = vmatpush.xpose.msra.mxu0 0.0
    %2239 = vmatpush.xpose.msra.mxu0 0.0
    %2240 = vmatpush.xpose.msra.mxu0 0.0
    %2241 = vmatpush.xpose.msra.mxu0 0.0
    %2242 = vmatpush.xpose.msra.mxu0 0.0
    %2243 = vmatpush.xpose.msra.mxu0 0.0
    %2244 = vmatpush.xpose.msra.mxu0 0.0
    %2245 = vmatpush.xpose.msra.mxu0 0.0
    %2246 = vmatpush.xpose.msra.mxu0 0.0
    %2247 = vmatpush.xpose.msra.mxu0 0.0
    %2248 = vmatpush.xpose.msra.mxu0 0.0
    %2249 = vmatpush.xpose.msra.mxu0 0.0
    %2250 = vmatpush.xpose.msra.mxu0 %v2234
    %2251 = vmatpush.xpose.msra.mxu0 %v2232
    %2252 = vmatmul.f32.gmra.mxu0 %v2230
    %v2253 = vpop.f32.mrf.mxu0
    %v2254 = vadd.f32 %v226, %v2253
    %2255 = vdwg.mxu0
    %v2256 = vsel %vm487, %v2254, -inf
    %2257 = vmax.xlane.f32.xlu0 %v2256
    %v2258 = vpop.xlane.xlu0 %2257
    %v2259 = vsub.f32 %v2254, %v2258
    %v2260 = vmul.f32 %v2259, 1.442695
    %v2261 = vpow.pop %v2260
    %v2262 = vsel %vm487, %v2261, 0.0
    %2263 = vadd.xlane.f32.xlu0 %v2262
    %v2264 = vpop.xlane.xlu0 %2263
    %2265 = vrot.lane.b32.xlu0 %v2005, 32
    %v2266 = vpop.permute.xlu0 %2265
    %2267 = vrot.lane.b32.xlu0 %v2006, 32
    %v2268 = vpop.permute.xlu0 %2267
    %v2272 = vsel %vm487, %v2261, 0
    %2274 = vmatpush.msra.mxu0 0.0
    %2275 = vmatpush.msra.mxu0 0.0
    %2276 = vmatpush.msra.mxu0 0.0
    %2277 = vmatpush.msra.mxu0 0.0
    %2278 = vmatpush.msra.mxu0 0.0
    %2279 = vmatpush.msra.mxu0 0.0
    %2280 = vmatpush.msra.mxu0 0.0
    %2281 = vmatpush.msra.mxu0 0.0
    %2282 = vmatpush.msra.mxu0 0.0
    %2283 = vmatpush.msra.mxu0 0.0
    %2284 = vmatpush.msra.mxu0 0.0
    %2285 = vmatpush.msra.mxu0 0.0
    %2286 = vmatpush.msra.mxu0 0.0
    %2287 = vmatpush.msra.mxu0 0.0
    %2288 = vmatpush.msra.mxu0 %v2268
    %2289 = vmatpush.msra.mxu0 %v2266
    %2290 = vmatmul.f32.gmra.mxu0 %v2272
    %v2291 = vpop.f32.mrf.mxu0
    %v2292 = vadd.f32 0.0, %v2291
    %2293 = vdwg.mxu0
    %v2294 = vrcp.pop %v2264
    %v2295 = vmul.f32 %v2292, %v2294
    %2297 = vrot.lane.b32.xlu0 %v2295, 32
    %v2298 = vpop.permute.xlu0 %2297
    %v2300 = vsel %vm568, %v2223, %v2298
    %v2301 = vld [vmem:[%s37] sm:$0xff]
    %v2302 = vld [vmem:[%s37 + $0x8] sm:$0xff]
    %v2303 = vld [vmem:[%s37 + $0x10] sm:$0xff]
    %v2304 = vld [vmem:[%s37 + $0x18] sm:$0xff]
    %v2305 = vld [vmem:[%s37 + $0x20] sm:$0xff]
    %v2306 = vld [vmem:[%s37 + $0x28] sm:$0xff]
    %v2307 = vld [vmem:[%s37 + $0x30] sm:$0xff]
    %v2308 = vld [vmem:[%s37 + $0x38] sm:$0xff]
    %v2310 = vsel %vm250, %v2152, 0
    %v2313 = vsel %vm250, %v2300, 0
    %v2316 = vsel %vm250, %v2301, 0
    %v2319 = vsel %vm250, %v2302, 0
    %v2322 = vsel %vm250, %v2303, 0
    %v2325 = vsel %vm250, %v2304, 0
    %v2328 = vsel %vm250, %v2305, 0
    %v2331 = vsel %vm250, %v2306, 0
    %v2334 = vsel %vm250, %v2307, 0
    %v2337 = vsel %vm250, %v2308, 0
    %2339 = vmatpush.xpose.msra.mxu0 0.0
    %2340 = vmatpush.xpose.msra.mxu0 0.0
    %2341 = vmatpush.xpose.msra.mxu0 0.0
    %2342 = vmatpush.xpose.msra.mxu0 0.0
    %2343 = vmatpush.xpose.msra.mxu0 0.0
    %2344 = vmatpush.xpose.msra.mxu0 0.0
    %2345 = vmatpush.xpose.msra.mxu0 0.0
    %2346 = vmatpush.xpose.msra.mxu0 0.0
    %2347 = vmatpush.xpose.msra.mxu0 %v2337
    %2348 = vmatpush.xpose.msra.mxu0 %v2334
    %2349 = vmatpush.xpose.msra.mxu0 %v2331
    %2350 = vmatpush.xpose.msra.mxu0 %v2328
    %2351 = vmatpush.xpose.msra.mxu0 %v2325
    %2352 = vmatpush.xpose.msra.mxu0 %v2322
    %2353 = vmatpush.xpose.msra.mxu0 %v2319
    %2354 = vmatpush.xpose.msra.mxu0 %v2316
    %2355 = vmatmul.f32.gmra.mxu0 %v2310
    %v2356 = vpop.f32.mrf.mxu0
    %v2357 = vadd.f32 0.0, %v2356
    %2358 = vmatmul.f32.gmra.mxu0 %v2313
    %v2359 = vpop.f32.mrf.mxu0
    %v2360 = vadd.f32 0.0, %v2359
    %2361 = vdwg.mxu0
    %v2362 = vadd.f32 %v1503, %v2357
    %v2363 = vadd.f32 %v1504, %v2360
    %v2364 = vld [vmem:[%s39] sm:$0x1]
    %v2365 = vmul.f32 %v2362, %v2362
    %v2366 = vmul.f32 %v2363, %v2363
    %v2367 = vsel %vm250, %v2365, 0.0
    %2368 = vadd.xlane.f32.xlu0 %v2367
    %v2369 = vpop.xlane.xlu0 %2368
    %v2370 = vsel %vm250, %v2366, 0.0
    %2371 = vadd.xlane.f32.xlu0 %v2370
    %v2372 = vpop.xlane.xlu0 %2371
    %v2373 = vmul.f32 %v2369, %v263
    %v2374 = vmul.f32 %v2372, %v263
    %v2375 = vadd.f32 %v2373, 1e-06
    %v2376 = vadd.f32 %v2374, 1e-06
    %v2377 = vrsqrt.pop %v2375
    %v2378 = vmul.f32 %v2377, %v2375
    %v2379 = vmul.f32 %v2378, %v2377
    %v2380 = vmul.f32 0.5, %v2379
    %v2381 = vsub.f32 1.5, %v2380
    %v2382 = vmul.f32 %v2377, %v2381
    %vm2383 = vweird.f32 %v2375
    %vm2384 = vweird.f32 %v2377
    %vm2385 = vmor %vm2383, %vm2384
    %v2386 = vsel %vm2385, %v2377, %v2382
    %v2387 = vrsqrt.pop %v2376
    %v2388 = vmul.f32 %v2387, %v2376
    %v2389 = vmul.f32 %v2388, %v2387
    %v2390 = vmul.f32 0.5, %v2389
    %v2391 = vsub.f32 1.5, %v2390
    %v2392 = vmul.f32 %v2387, %v2391
    %vm2393 = vweird.f32 %v2376
    %vm2394 = vweird.f32 %v2387
    %vm2395 = vmor %vm2393, %vm2394
    %v2396 = vsel %vm2395, %v2387, %v2392
    %v2397 = vmul.f32 %v2362, %v2386
    %v2398 = vmul.f32 %v2363, %v2396
    %v2400 = vperm.slane %v2364, 0
    %v2402 = vmul.f32 %v2397, %v2400
    %v2403 = vmul.f32 %v2398, %v2400
    %v2404 = vld [vmem:[%s41] sm:$0xff]
    %v2405 = vld [vmem:[%s41 + $0x8] sm:$0xff]
    %v2406 = vld [vmem:[%s41 + $0x10] sm:$0xff]
    %v2407 = vld [vmem:[%s41 + $0x18] sm:$0xff]
    %v2408 = vld [vmem:[%s41 + $0x20] sm:$0xff]
    %v2409 = vld [vmem:[%s41 + $0x28] sm:$0xff]
    %v2410 = vld [vmem:[%s41 + $0x30] sm:$0xff]
    %v2411 = vld [vmem:[%s41 + $0x38] sm:$0xff]
    %v2412 = vld [vmem:[%s41 + $0x40] sm:$0xff]
    %v2413 = vld [vmem:[%s41 + $0x48] sm:$0xff]
    %v2414 = vld [vmem:[%s41 + $0x50] sm:$0xff]
    %v2415 = vld [vmem:[%s41 + $0x58] sm:$0xff]
    %v2416 = vld [vmem:[%s41 + $0x60] sm:$0xff]
    %v2417 = vld [vmem:[%s41 + $0x68] sm:$0xff]
    %v2418 = vld [vmem:[%s41 + $0x70] sm:$0xff]
    %v2419 = vld [vmem:[%s41 + $0x78] sm:$0xff]
    %v2421 = vsel %vm250, %v2402, 0
    %v2424 = vsel %vm250, %v2403, 0
    %v2427 = vsel %vm250, %v2404, 0
    %v2430 = vsel %vm250, %v2405, 0
    %v2433 = vsel %vm250, %v2406, 0
    %v2436 = vsel %vm250, %v2407, 0
    %v2439 = vsel %vm250, %v2408, 0
    %v2442 = vsel %vm250, %v2409, 0
    %v2445 = vsel %vm250, %v2410, 0
    %v2448 = vsel %vm250, %v2411, 0
    %v2451 = vsel %vm250, %v2412, 0
    %v2454 = vsel %vm250, %v2413, 0
    %v2457 = vsel %vm250, %v2414, 0
    %v2460 = vsel %vm250, %v2415, 0
    %v2463 = vsel %vm250, %v2416, 0
    %v2466 = vsel %vm250, %v2417, 0
    %v2469 = vsel %vm250, %v2418, 0
    %v2472 = vsel %vm250, %v2419, 0
    %2474 = vmatpush.xpose.msra.mxu0 %v2472
    %2475 = vmatpush.xpose.msra.mxu0 %v2469
    %2476 = vmatpush.xpose.msra.mxu0 %v2466
    %2477 = vmatpush.xpose.msra.mxu0 %v2463
    %2478 = vmatpush.xpose.msra.mxu0 %v2460
    %2479 = vmatpush.xpose.msra.mxu0 %v2457
    %2480 = vmatpush.xpose.msra.mxu0 %v2454
    %2481 = vmatpush.xpose.msra.mxu0 %v2451
    %2482 = vmatpush.xpose.msra.mxu0 %v2448
    %2483 = vmatpush.xpose.msra.mxu0 %v2445
    %2484 = vmatpush.xpose.msra.mxu0 %v2442
    %2485 = vmatpush.xpose.msra.mxu0 %v2439
    %2486 = vmatpush.xpose.msra.mxu0 %v2436
    %2487 = vmatpush.xpose.msra.mxu0 %v2433
    %2488 = vmatpush.xpose.msra.mxu0 %v2430
    %2489 = vmatpush.xpose.msra.mxu0 %v2427
    %2490 = vmatmul.f32.gmra.mxu0 %v2421
    %v2491 = vpop.f32.mrf.mxu0
    %v2492 = vadd.f32 0.0, %v2491
    %2493 = vmatmul.f32.gmra.mxu0 %v2424
    %v2494 = vpop.f32.mrf.mxu0
    %v2495 = vadd.f32 0.0, %v2494
    %2496 = vdwg.mxu0
    %v2497 = vld [vmem:[%s43] sm:$0xff]
    %v2498 = vld [vmem:[%s43 + $0x8] sm:$0xff]
    %v2499 = vld [vmem:[%s43 + $0x10] sm:$0xff]
    %v2500 = vld [vmem:[%s43 + $0x18] sm:$0xff]
    %v2501 = vld [vmem:[%s43 + $0x20] sm:$0xff]
    %v2502 = vld [vmem:[%s43 + $0x28] sm:$0xff]
    %v2503 = vld [vmem:[%s43 + $0x30] sm:$0xff]
    %v2504 = vld [vmem:[%s43 + $0x38] sm:$0xff]
    %v2505 = vld [vmem:[%s43 + $0x40] sm:$0xff]
    %v2506 = vld [vmem:[%s43 + $0x48] sm:$0xff]
    %v2507 = vld [vmem:[%s43 + $0x50] sm:$0xff]
    %v2508 = vld [vmem:[%s43 + $0x58] sm:$0xff]
    %v2509 = vld [vmem:[%s43 + $0x60] sm:$0xff]
    %v2510 = vld [vmem:[%s43 + $0x68] sm:$0xff]
    %v2511 = vld [vmem:[%s43 + $0x70] sm:$0xff]
    %v2512 = vld [vmem:[%s43 + $0x78] sm:$0xff]
    %v2514 = vsel %vm250, %v2497, 0
    %v2517 = vsel %vm250, %v2498, 0
    %v2520 = vsel %vm250, %v2499, 0
    %v2523 = vsel %vm250, %v2500, 0
    %v2526 = vsel %vm250, %v2501, 0
    %v2529 = vsel %vm250, %v2502, 0
    %v2532 = vsel %vm250, %v2503, 0
    %v2535 = vsel %vm250, %v2504, 0
    %v2538 = vsel %vm250, %v2505, 0
    %v2541 = vsel %vm250, %v2506, 0
    %v2544 = vsel %vm250, %v2507, 0
    %v2547 = vsel %vm250, %v2508, 0
    %v2550 = vsel %vm250, %v2509, 0
    %v2553 = vsel %vm250, %v2510, 0
    %v2556 = vsel %vm250, %v2511, 0
    %v2559 = vsel %vm250, %v2512, 0
    %2561 = vmatpush.xpose.msra.mxu0 %v2559
    %2562 = vmatpush.xpose.msra.mxu0 %v2556
    %2563 = vmatpush.xpose.msra.mxu0 %v2553
    %2564 = vmatpush.xpose.msra.mxu0 %v2550
    %2565 = vmatpush.xpose.msra.mxu0 %v2547
    %2566 = vmatpush.xpose.msra.mxu0 %v2544
    %2567 = vmatpush.xpose.msra.mxu0 %v2541
    %2568 = vmatpush.xpose.msra.mxu0 %v2538
    %2569 = vmatpush.xpose.msra.mxu0 %v2535
    %2570 = vmatpush.xpose.msra.mxu0 %v2532
    %2571 = vmatpush.xpose.msra.mxu0 %v2529
    %2572 = vmatpush.xpose.msra.mxu0 %v2526
    %2573 = vmatpush.xpose.msra.mxu0 %v2523
    %2574 = vmatpush.xpose.msra.mxu0 %v2520
    %2575 = vmatpush.xpose.msra.mxu0 %v2517
    %2576 = vmatpush.xpose.msra.mxu0 %v2514
    %2577 = vmatmul.f32.gmra.mxu0 %v2421
    %v2578 = vpop.f32.mrf.mxu0
    %v2579 = vadd.f32 0.0, %v2578
    %2580 = vmatmul.f32.gmra.mxu0 %v2424
    %v2581 = vpop.f32.mrf.mxu0
    %v2582 = vadd.f32 0.0, %v2581
    %2583 = vdwg.mxu0
    %v2584 = vxor.u32 %v2492, 2147483648
    %v2585 = vxor.u32 %v2495, 2147483648
    %v2586 = vmul.f32 %v2584, 1.442695
    %v2587 = vpow.pop %v2586
    %v2588 = vmul.f32 %v2585, 1.442695
    %v2589 = vpow.pop %v2588
    %v2590 = vadd.f32 %v2587, 1.0
    %v2591 = vadd.f32 %v2589, 1.0
    %v2592 = vrcp.pop %v2590
    %v2593 = vmul.f32 %v2590, %v2592
    %v2594 = vsub.f32 1.0, %v2593
    %v2595 = vmul.f32 %v2592, %v2594
    %v2596 = vadd.f32 %v2592, %v2595
    %vm2597 = vweird.f32 %v2590
    %vm2598 = vweird.f32 %v2592
    %vm2599 = vmor %vm2597, %vm2598
    %v2600 = vsel %vm2599, %v2592, %v2596
    %v2601 = vand.u32 2147483647, %v2590
    %vm2602 = vcmp.eq.f32.partialorder %v2601, 8.507059e+37
    %v2603 = vand.u32 %v2590, 2147483648
    %v2604 = vor.u32 1.1754944e-38, %v2603
    %v2605 = vsel %vm2602, %v2604, %v2600
    %v2606 = vmul.f32 1.0, %v2605
    %v2607 = vrcp.pop %v2591
    %v2608 = vmul.f32 %v2591, %v2607
    %v2609 = vsub.f32 1.0, %v2608
    %v2610 = vmul.f32 %v2607, %v2609
    %v2611 = vadd.f32 %v2607, %v2610
    %vm2612 = vweird.f32 %v2591
    %vm2613 = vweird.f32 %v2607
    %vm2614 = vmor %vm2612, %vm2613
    %v2615 = vsel %vm2614, %v2607, %v2611
    %v2616 = vand.u32 2147483647, %v2591
    %vm2617 = vcmp.eq.f32.partialorder %v2616, 8.507059e+37
    %v2618 = vand.u32 %v2591, 2147483648
    %v2619 = vor.u32 1.1754944e-38, %v2618
    %v2620 = vsel %vm2617, %v2619, %v2615
    %v2621 = vmul.f32 1.0, %v2620
    %v2622 = vmul.f32 %v2492, %v2606
    %v2623 = vmul.f32 %v2495, %v2621
    %v2624 = vmul.f32 %v2622, %v2579
    %v2625 = vmul.f32 %v2623, %v2582
    %v2626 = vld [vmem:[%s45] sm:$0xff]
    %v2627 = vld [vmem:[%s45 + $0x8] sm:$0xff]
    %v2628 = vld [vmem:[%s45 + $0x10] sm:$0xff]
    %v2629 = vld [vmem:[%s45 + $0x18] sm:$0xff]
    %v2630 = vld [vmem:[%s45 + $0x20] sm:$0xff]
    %v2631 = vld [vmem:[%s45 + $0x28] sm:$0xff]
    %v2632 = vld [vmem:[%s45 + $0x30] sm:$0xff]
    %v2633 = vld [vmem:[%s45 + $0x38] sm:$0xff]
    %2634 = vmatpush.xpose.msra.mxu0 0.0
    %2635 = vmatpush.xpose.msra.mxu0 0.0
    %2636 = vmatpush.xpose.msra.mxu0 0.0
    %2637 = vmatpush.xpose.msra.mxu0 0.0
    %2638 = vmatpush.xpose.msra.mxu0 0.0
    %2639 = vmatpush.xpose.msra.mxu0 0.0
    %2640 = vmatpush.xpose.msra.mxu0 0.0
    %2641 = vmatpush.xpose.msra.mxu0 0.0
    %2642 = vmatpush.xpose.msra.mxu0 %v2633
    %2643 = vmatpush.xpose.msra.mxu0 %v2632
    %2644 = vmatpush.xpose.msra.mxu0 %v2631
    %2645 = vmatpush.xpose.msra.mxu0 %v2630
    %2646 = vmatpush.xpose.msra.mxu0 %v2629
    %2647 = vmatpush.xpose.msra.mxu0 %v2628
    %2648 = vmatpush.xpose.msra.mxu0 %v2627
    %2649 = vmatpush.xpose.msra.mxu0 %v2626
    %2650 = vmatmul.f32.gmra.mxu0 %v2624
    %v2651 = vpop.f32.mrf.mxu0
    %v2652 = vadd.f32 0.0, %v2651
    %2653 = vmatmul.f32.gmra.mxu0 %v2625
    %v2654 = vpop.f32.mrf.mxu0
    %v2655 = vadd.f32 0.0, %v2654
    %2656 = vdwg.mxu0
    %v2657 = vadd.f32 %v2362, %v2652
    %v2658 = vadd.f32 %v2363, %v2655
    %v2659 = vld [vmem:[%s13] sm:$0x1]
    %v2660 = vmul.f32 %v2657, %v2657
    %v2661 = vmul.f32 %v2658, %v2658
    %v2662 = vsel %vm250, %v2660, 0.0
    %2663 = vadd.xlane.f32.xlu0 %v2662
    %v2664 = vpop.xlane.xlu0 %2663
    %v2665 = vsel %vm250, %v2661, 0.0
    %2666 = vadd.xlane.f32.xlu0 %v2665
    %v2667 = vpop.xlane.xlu0 %2666
    %v2668 = vmul.f32 %v2664, %v263
    %v2669 = vmul.f32 %v2667, %v263
    %v2670 = vadd.f32 %v2668, 1e-06
    %v2671 = vadd.f32 %v2669, 1e-06
    %v2672 = vrsqrt.pop %v2670
    %v2673 = vmul.f32 %v2672, %v2670
    %v2674 = vmul.f32 %v2673, %v2672
    %v2675 = vmul.f32 0.5, %v2674
    %v2676 = vsub.f32 1.5, %v2675
    %v2677 = vmul.f32 %v2672, %v2676
    %vm2678 = vweird.f32 %v2670
    %vm2679 = vweird.f32 %v2672
    %vm2680 = vmor %vm2678, %vm2679
    %v2681 = vsel %vm2680, %v2672, %v2677
    %v2682 = vrsqrt.pop %v2671
    %v2683 = vmul.f32 %v2682, %v2671
    %v2684 = vmul.f32 %v2683, %v2682
    %v2685 = vmul.f32 0.5, %v2684
    %v2686 = vsub.f32 1.5, %v2685
    %v2687 = vmul.f32 %v2682, %v2686
    %vm2688 = vweird.f32 %v2671
    %vm2689 = vweird.f32 %v2682
    %vm2690 = vmor %vm2688, %vm2689
    %v2691 = vsel %vm2690, %v2682, %v2687
    %v2692 = vmul.f32 %v2657, %v2681
    %v2693 = vmul.f32 %v2658, %v2691
    %v2695 = vperm.slane %v2659, 0
    %v2697 = vmul.f32 %v2692, %v2695
    %v2698 = vmul.f32 %v2693, %v2695
    %v2700 = vsel %vm250, %v2697, 0
    %v2703 = vsel %vm250, %v2698, 0
    %v2706 = vsel %vm250, %v116, 0
    %v2709 = vsel %vm250, %v117, 0
    %v2712 = vsel %vm250, %v118, 0
    %v2715 = vsel %vm250, %v119, 0
    %v2718 = vsel %vm250, %v120, 0
    %v2721 = vsel %vm250, %v121, 0
    %v2724 = vsel %vm250, %v122, 0
    %v2727 = vsel %vm250, %v123, 0
    %v2730 = vsel %vm250, %v124, 0
    %v2733 = vsel %vm250, %v125, 0
    %v2736 = vsel %vm250, %v126, 0
    %v2739 = vsel %vm250, %v127, 0
    %v2742 = vsel %vm250, %v128, 0
    %v2745 = vsel %vm250, %v129, 0
    %v2748 = vsel %vm250, %v130, 0
    %v2751 = vsel %vm250, %v131, 0
    %v2754 = vsel %vm250, %v132, 0
    %v2757 = vsel %vm250, %v133, 0
    %v2760 = vsel %vm250, %v134, 0
    %v2763 = vsel %vm250, %v135, 0
    %v2766 = vsel %vm250, %v136, 0
    %v2769 = vsel %vm250, %v137, 0
    %v2772 = vsel %vm250, %v138, 0
    %v2775 = vsel %vm250, %v139, 0
    %v2778 = vsel %vm250, %v140, 0
    %v2781 = vsel %vm250, %v141, 0
    %v2784 = vsel %vm250, %v142, 0
    %v2787 = vsel %vm250, %v143, 0
    %v2790 = vsel %vm250, %v144, 0
    %v2793 = vsel %vm250, %v145, 0
    %v2796 = vsel %vm250, %v146, 0
    %v2799 = vsel %vm250, %v147, 0
    %2801 = vmatpush.xpose.msra.mxu0 %v2751
    %2802 = vmatpush.xpose.msra.mxu0 %v2748
    %2803 = vmatpush.xpose.msra.mxu0 %v2745
    %2804 = vmatpush.xpose.msra.mxu0 %v2742
    %2805 = vmatpush.xpose.msra.mxu0 %v2739
    %2806 = vmatpush.xpose.msra.mxu0 %v2736
    %2807 = vmatpush.xpose.msra.mxu0 %v2733
    %2808 = vmatpush.xpose.msra.mxu0 %v2730
    %2809 = vmatpush.xpose.msra.mxu0 %v2727
    %2810 = vmatpush.xpose.msra.mxu0 %v2724
    %2811 = vmatpush.xpose.msra.mxu0 %v2721
    %2812 = vmatpush.xpose.msra.mxu0 %v2718
    %2813 = vmatpush.xpose.msra.mxu0 %v2715
    %2814 = vmatpush.xpose.msra.mxu0 %v2712
    %2815 = vmatpush.xpose.msra.mxu0 %v2709
    %2816 = vmatpush.xpose.msra.mxu0 %v2706
    %2817 = vmatmul.f32.gmra.mxu0 %v2700
    %v2818 = vpop.f32.mrf.mxu0
    %v2819 = vadd.f32 0.0, %v2818
    %2820 = vmatmul.f32.gmra.mxu0 %v2703
    %v2821 = vpop.f32.mrf.mxu0
    %v2822 = vadd.f32 0.0, %v2821
    %2823 = vdwg.mxu0
    %2824 = vmatpush.xpose.msra.mxu0 %v2799
    %2825 = vmatpush.xpose.msra.mxu0 %v2796
    %2826 = vmatpush.xpose.msra.mxu0 %v2793
    %2827 = vmatpush.xpose.msra.mxu0 %v2790
    %2828 = vmatpush.xpose.msra.mxu0 %v2787
    %2829 = vmatpush.xpose.msra.mxu0 %v2784
    %2830 = vmatpush.xpose.msra.mxu0 %v2781
    %2831 = vmatpush.xpose.msra.mxu0 %v2778
    %2832 = vmatpush.xpose.msra.mxu0 %v2775
    %2833 = vmatpush.xpose.msra.mxu0 %v2772
    %2834 = vmatpush.xpose.msra.mxu0 %v2769
    %2835 = vmatpush.xpose.msra.mxu0 %v2766
    %2836 = vmatpush.xpose.msra.mxu0 %v2763
    %2837 = vmatpush.xpose.msra.mxu0 %v2760
    %2838 = vmatpush.xpose.msra.mxu0 %v2757
    %2839 = vmatpush.xpose.msra.mxu0 %v2754
    %2840 = vmatmul.f32.gmra.mxu0 %v2700
    %v2841 = vpop.f32.mrf.mxu0
    %v2842 = vadd.f32 0.0, %v2841
    %2843 = vmatmul.f32.gmra.mxu0 %v2703
    %v2844 = vpop.f32.mrf.mxu0
    %v2845 = vadd.f32 0.0, %v2844
    %2846 = vdwg.mxu0
    %2847 = vst [vmem:[#allocation2] sm:$0xff] %v2819
    %2848 = vst [vmem:[#allocation2 + $0x8] sm:$0xff] %v2842
    %2849 = vst [vmem:[#allocation2 + $0x10] sm:$0xff] %v2822
    %2850 = vst [vmem:[#allocation2 + $0x18] sm:$0xff] %v2845
    // Predicated region
    $region102: #{forward.1} parent=1 // pred_check
      _
    $region103: #{forward.1} parent=1 // pred_check_branch
      %2852 = sbr.rel (0) target = $region105
    $region104: #{forward.1} parent=1 // pred_region
      %2854 = vsyncadd [#allocation3], 0
      %s2855 = sshll.u32 [#allocation2], 4
      %s2856 = int_to_ptr.vmem [resolvable:$true] %s2855
      %s2857 = sshll.u32 %s51, 4
      %s2858 = int_to_ptr.hbm [resolvable:$true] %s2857
      %2863 = dma.vmem_to_hbm [thread:$0]  %s2856, 512, %s2858, [#allocation3], 256, 256, 16
    $region105: #{forward.1} parent=1 // pred_fallthru
      _
    // Predicated region
    $region106: #{forward.1} parent=1 // pred_check
      _
    $region107: #{forward.1} parent=1 // pred_check_branch
      %2865 = sbr.rel (0) target = $region109
    $region108: #{forward.1} parent=1 // pred_region
      _
    $region109: #{forward.1} parent=1 // pred_fallthru
      _
    // Predicated region
    $region110: #{forward.1} parent=1 // pred_check
      _
    $region111: #{forward.1} parent=1 // pred_check_branch
      %2867 = sbr.rel (0) target = $region113
    $region112: #{forward.1} parent=1 // pred_region
      _
    $region113: #{forward.1} parent=1 // pred_fallthru
      _
    // Predicated region
    $region114: #{forward.1} parent=1 // pred_check
      _
    $region115: #{forward.1} parent=1 // pred_check_branch
      %2869 = sbr.rel (0) target = $region117
    $region116: #{forward.1} parent=1 // pred_region
      _
    $region117: #{forward.1} parent=1 // pred_fallthru
      _
    // Predicated region
    $region118: #{forward.1} parent=1 // pred_check
      _
    $region119: #{forward.1} parent=1 // pred_check_branch
      %2871 = sbr.rel (0) target = $region121
    $region120: #{forward.1} parent=1 // pred_region
      _
    $region121: #{forward.1} parent=1 // pred_fallthru
      _
    // Predicated region
    $region122: #{forward.1} parent=1 // pred_check
      _
    $region123: #{forward.1} parent=1 // pred_check_branch
      %2873 = sbr.rel (0) target = $region125
    $region124: #{forward.1} parent=1 // pred_region
      %2875 = dma.done [#allocation3], 512
    $region125: #{forward.1} parent=1 // pred_fallthru
      _
    // Predicated region
    $region126: #{forward.1} parent=1 // pred_check
      _
    $region127: #{forward.1} parent=1 // pred_check_branch
      %2877 = sbr.rel (0) target = $region129
    $region128: #{forward.1} parent=1 // pred_region
      _
    $region129: #{forward.1} parent=1 // pred_fallthru
      _
    // Predicated region
    $region130: #{forward.1} parent=1 // pred_check
      _
    $region131: #{forward.1} parent=1 // pred_check_branch
      %2879 = sbr.rel (0) target = $region133
    $region132: #{forward.1} parent=1 // pred_region
      _
    $region133: #{forward.1} parent=1 // pred_fallthru
      _
    // Predicated region
    $region134: #{forward.1} parent=1 // pred_check
      _
    $region135: #{forward.1} parent=1 // pred_check_branch
      %2881 = sbr.rel (0) target = $region137
    $region136: #{forward.1} parent=1 // pred_region
      _
    $region137: #{forward.1} parent=1 // pred_fallthru
      _
    // Predicated region
    $region138: #{forward.1} parent=1 // pred_check
      _
    $region139: #{forward.1} parent=1 // pred_check_branch
      %2883 = sbr.rel (0) target = $region141
    $region140: #{forward.1} parent=1 // pred_region
      _
    $region141: #{forward.1} parent=1 // pred_fallthru
      _
    %2884 = vsyncpa [#allocation3], 1

</llo_original>
